<compile_context>
chip_gen: v5e
topology: v5e:2x2
jax: 0.10.0
libtpu: 0.0.40
codegen_flags: <defaults>
</compile_context>

<pallas_src>
import jax
import jax.numpy as jnp
from jax.experimental import pallas as pl
from jax.experimental.pallas import tpu as pltpu

FEAT = 2048        # resnet101 feature width
K_TOP = 1000       # topk size
HID = 500          # fc1 output width
OUT = 61           # fc2 output width
CONV_KPAD = 128    # padded im2col contraction dim (9*Cin -> 128)
TOPK_PAD = 1024    # head contraction dim padded to a lane multiple
OUT_PAD = 128      # head output padded to a lane-dense width


# ----------------------------------------------------------------------------
# Kernel 1: fused conv(3x3 via im2col matmul) + bias + ReLU + global mean.
# Single grid step; global-average-pool expressed as a block-diagonal
# averaging matmul so the result is written with one lane-dense (B, FEAT)
# store.
#   patch_ref: (B*HW, CONV_KPAD) bf16     w_ref: (CONV_KPAD, FEAT) bf16
#   b_ref:     (1, FEAT) f32              pool_ref: (B, B*HW) f32
#   out_ref:   (B, FEAT) f32
# ----------------------------------------------------------------------------
def conv_mean_kernel(patch_ref, w_ref, b_ref, pool_ref, out_ref):
    feats = jnp.dot(patch_ref[...], w_ref[...],
                    preferred_element_type=jnp.float32)        # (B*HW, FEAT)
    feats = jnp.maximum(feats + b_ref[...], 0.0)               # bias + ReLU
    # block-diagonal (1/HW) averaging matrix -> per-batch spatial mean
    out_ref[...] = jnp.dot(pool_ref[...], feats,
                           preferred_element_type=jnp.float32)  # (B, FEAT)


def conv_mean(patches_flat, conv_w, conv_b, pool):
    batch = pool.shape[0]
    return pl.pallas_call(
        conv_mean_kernel,
        out_shape=jax.ShapeDtypeStruct((batch, FEAT), jnp.float32),
    )(patches_flat, conv_w, conv_b, pool)


# ----------------------------------------------------------------------------
# Kernel 2: folded head.
#   out = a @ Wa_eff + a_idx_f @ Wb_eff + b_eff     (all-linear fold of
#   fc2(cat(fc1[0](a), fc1[1](a_idx))) done at init time).
#   a_ref: (B, TOPK_PAD) bf16     wa_ref: (TOPK_PAD, OUT_PAD) bf16
#   ai_ref:(B, TOPK_PAD) f32      wb_ref: (TOPK_PAD, OUT_PAD) f32
#   b_ref: (1, OUT_PAD) f32       out_ref:(B, OUT_PAD) f32
# ----------------------------------------------------------------------------
def head_kernel(a_ref, ai_ref, wa_ref, wb_ref, b_ref, out_ref):
    out = jnp.dot(a_ref[...], wa_ref[...], preferred_element_type=jnp.float32)
    out = out + jnp.dot(ai_ref[...], wb_ref[...],
                        preferred_element_type=jnp.float32)
    out_ref[...] = out + b_ref[...]


def head(a_bf16, a_idx_f32, wa_eff, wb_eff, b_eff):
    batch = a_bf16.shape[0]
    return pl.pallas_call(
        head_kernel,
        out_shape=jax.ShapeDtypeStruct((batch, OUT_PAD), jnp.float32),
    )(a_bf16, a_idx_f32, wa_eff, wb_eff, b_eff)


# ----------------------------------------------------------------------------
# Glue (plain JAX): layout conversion, im2col, parameter init/fold, topk.
# ----------------------------------------------------------------------------
def im2col_3x3(x_nhwc):
    B, H, W, C = x_nhwc.shape
    xp = jnp.pad(x_nhwc, ((0, 0), (1, 1), (1, 1), (0, 0)))
    patches = []
    for dh in range(3):
        for dw in range(3):
            patches.append(xp[:, dh:dh + H, dw:dw + W, :])
    p = jnp.stack(patches, axis=3)                  # (B, H, W, 9, C)
    return p.reshape(B, H * W, 9 * C)


def init_params(key, c_in):
    ks = jax.random.split(key, 8)
    k_conv = 9 * c_in
    conv_w = jax.random.normal(ks[0], (k_conv, FEAT), jnp.float32) * 0.05
    conv_b = jax.random.normal(ks[1], (1, FEAT), jnp.float32) * 0.01
    # pad contraction dim for aligned MXU tiles; store bf16 (halved DMA bytes)
    conv_w = jnp.pad(conv_w, ((0, CONV_KPAD - k_conv), (0, 0)))
    conv_w = conv_w.astype(jnp.bfloat16)

    # fc1[0], fc1[1]: Linear(1000, 500) each (stored transposed: (in, out))
    w1a = jax.random.normal(ks[2], (K_TOP, HID), jnp.float32) * 0.02
    b1a = jax.random.normal(ks[3], (1, HID), jnp.float32) * 0.01
    w1b = jax.random.normal(ks[4], (K_TOP, HID), jnp.float32) * 0.02
    b1b = jax.random.normal(ks[5], (1, HID), jnp.float32) * 0.01
    # fc2: Linear(1000, 61), split across the concat boundary
    w2 = jax.random.normal(ks[6], (2 * HID, OUT), jnp.float32) * 0.02
    b2 = jax.random.normal(ks[7], (1, OUT), jnp.float32) * 0.01
    w2a, w2b = w2[:HID], w2[HID:]

    # Algebraic fold (no nonlinearity between fc1 and fc2):
    #   cat(a@W1a+b1a, ai@W1b+b1b) @ W2 + b2
    #     == a @ (W1a@W2a) + ai @ (W1b@W2b) + (b1a@W2a + b1b@W2b + b2)
    wa_eff = w1a @ w2a                                   # (1000, 61)
    wb_eff = w1b @ w2b                                   # (1000, 61)
    b_eff = b1a @ w2a + b1b @ w2b + b2                   # (1, 61)

    # pad to lane-friendly shapes; `a` branch in bf16, index branch stays f32
    wa_eff = jnp.pad(wa_eff, ((0, TOPK_PAD - K_TOP), (0, OUT_PAD - OUT)))
    wa_eff = wa_eff.astype(jnp.bfloat16)
    wb_eff = jnp.pad(wb_eff, ((0, TOPK_PAD - K_TOP), (0, OUT_PAD - OUT)))
    b_eff = jnp.pad(b_eff, ((0, 0), (0, OUT_PAD - OUT)))
    return conv_w, conv_b, wa_eff, wb_eff, b_eff


def top1000_forward(x_nchw, params):
    conv_w, conv_b, wa_eff, wb_eff, b_eff = params
    B = x_nchw.shape[0]

    # --- stem: im2col conv + ReLU + global mean (Pallas kernel 1) -----------
    x_nhwc = jnp.transpose(x_nchw, (0, 2, 3, 1))          # NCHW -> NHWC
    patches = im2col_3x3(x_nhwc)                          # (B, HW, 9*C)
    hw, k = patches.shape[1], patches.shape[2]
    patches = jnp.pad(patches, ((0, 0), (0, 0), (0, CONV_KPAD - k)))
    patches = patches.reshape(B * hw, CONV_KPAD).astype(jnp.bfloat16)
    # block-diagonal averaging matrix: row b averages rows [b*hw, (b+1)*hw)
    pool = jnp.kron(jnp.eye(B, dtype=jnp.float32),
                    jnp.full((1, hw), 1.0 / hw, jnp.float32))   # (B, B*hw)
    pooled = conv_mean(patches, conv_w, conv_b, pool)     # (B, 2048) f32

    # --- topk (plain JAX; no clean in-kernel Pallas equivalent on TPU) ------
    a, a_idx = jax.lax.top_k(pooled, K_TOP)               # (B, 1000) each
    a = jnp.pad(a, ((0, 0), (0, TOPK_PAD - K_TOP))).astype(jnp.bfloat16)
    # keep indices in f32: bf16 would quantize index values >= 256
    a_idx_f = jnp.pad(a_idx.astype(jnp.float32),
                      ((0, 0), (0, TOPK_PAD - K_TOP)))

    # --- folded linear head (Pallas kernel 2), slice padded 128 -> 61 -------
    out_pad = head(a, a_idx_f, wa_eff, wb_eff, b_eff)     # (B, 128)
    return out_pad[:, :OUT]                               # (B, 61)


if __name__ == "__main__":
    key = jax.random.PRNGKey(0)
    k_x, k_p = jax.random.split(key)

    B, C, H, W = 2, 3, 16, 16
    x = jax.random.normal(k_x, (B, C, H, W), jnp.float32)
    params = init_params(k_p, C)

    out = top1000_forward(x, params)
    jax.block_until_ready(out)
    assert out.shape == (B, OUT) and out.dtype == jnp.float32
    print("KERNEL_OK")
</pallas_src>

<mosaic_0001>
module attributes {stable_mosaic.version = 11 : i64} {
  func.func @conv_mean_kernel(%arg0: memref<512x128xbf16, #tpu.memory_space<vmem>>, %arg1: memref<128x2048xbf16, #tpu.memory_space<vmem>>, %arg2: memref<1x2048xf32, #tpu.memory_space<vmem>>, %arg3: memref<2x512xf32, #tpu.memory_space<vmem>>, %arg4: memref<2x2048xf32, #tpu.memory_space<vmem>>) attributes {dimension_semantics = [], scalar_prefetch = 0 : i64, scratch_operands = 0 : i64, tpu.core_type = #tpu.core_type<tc>} {
    %c0 = arith.constant 0 : index
    %c0_0 = arith.constant 0 : index
    %0 = vector.load %arg0[%c0, %c0_0] : memref<512x128xbf16, #tpu.memory_space<vmem>>, vector<512x128xbf16>
    %c0_1 = arith.constant 0 : index
    %c0_2 = arith.constant 0 : index
    %1 = vector.load %arg1[%c0_1, %c0_2] : memref<128x2048xbf16, #tpu.memory_space<vmem>>, vector<128x2048xbf16>
    %cst = arith.constant dense<0.000000e+00> : vector<512x2048xf32>
    %2 = tpu.matmul %0, %1, %cst {dimension_numbers = #tpu.dot_dimension_numbers<[1], [0], [0], [1], [0, 0, 1, 1], [], []>} : vector<512x128xbf16>, vector<128x2048xbf16>, vector<512x2048xf32> -> vector<512x2048xf32>
    %c0_3 = arith.constant 0 : index
    %c0_4 = arith.constant 0 : index
    %3 = vector.load %arg2[%c0_3, %c0_4] : memref<1x2048xf32, #tpu.memory_space<vmem>>, vector<1x2048xf32>
    %4 = vector.broadcast %3 : vector<1x2048xf32> to vector<512x2048xf32>
    %5 = arith.addf %2, %4 : vector<512x2048xf32>
    %cst_5 = arith.constant 0.000000e+00 : f32
    %6 = vector.broadcast %cst_5 : f32 to vector<512x2048xf32>
    %7 = arith.maximumf %5, %6 : vector<512x2048xf32>
    %c0_6 = arith.constant 0 : index
    %c0_7 = arith.constant 0 : index
    %8 = vector.load %arg3[%c0_6, %c0_7] : memref<2x512xf32, #tpu.memory_space<vmem>>, vector<2x512xf32>
    %cst_8 = arith.constant dense<0.000000e+00> : vector<2x2048xf32>
    %9 = tpu.matmul %8, %7, %cst_8 {dimension_numbers = #tpu.dot_dimension_numbers<[1], [0], [0], [1], [0, 0, 1, 1], [], []>} : vector<2x512xf32>, vector<512x2048xf32>, vector<2x2048xf32> -> vector<2x2048xf32>
    %c0_9 = arith.constant 0 : index
    %c0_10 = arith.constant 0 : index
    %10 = vector.load %arg4[%c0_9, %c0_10] : memref<2x2048xf32, #tpu.memory_space<vmem>>, vector<2x2048xf32>
    tpu.vector_store %arg4[%c0_9, %c0_10], %9 {strides = array<i32>} : memref<2x2048xf32, #tpu.memory_space<vmem>>, vector<2x2048xf32>,
    return
  }
}

</mosaic_0001>

<llo_original>
// kernel: tpu_custom_call.1
$region0: #{tpu_custom_call.1}
  #allocation0 [shape = 'u32[]', space=smem, size = 0x4, offset = 0x4, fixed_abs, tag = 'smem constant byte address 0x4 - core index']
  #allocation1 [shape = 'u32[72,128]{1,0:T(1,128)}', space=vmem, size = 0x9000, scoped, tag = 'internal scratch']
  %s0 = inlined_call_operand.hbm [shape: bf16[512,128], index: 0, kind: input, shape index: {}]
  %s1 = inlined_call_operand.hbm [shape: bf16[128,2048], index: 1, kind: input, shape index: {}]
  %s2 = inlined_call_operand.hbm [shape: f32[1,2048], index: 2, kind: input, shape index: {}]
  %s3 = inlined_call_operand.hbm [shape: f32[2,512], index: 3, kind: input, shape index: {}]
  %s4 = inlined_call_operand.hbm [shape: f32[2,2048], index: 4, kind: output, shape index: {}]
  %s5 = sld [smem:[#allocation0]]
  $region42: #{tpu_custom_call.1} parent=0
    _
  %s7 = ssub.s32 1, %s5
  %s8 = scalar_select 0, %s7, %s5
  $region1: #{tpu_custom_call.1} parent=0
    #allocation2 [shape = 'u8[131072]{0}', space=vmem, size = 0x20000, scoped, tag = 'input window, operand 0, single buffered']
    #allocation3 [shape = 's32[1]{0}', space=sflag, size = 0x4, scoped, tag = 'scoped memory for tpu_custom_call.1']
    #allocation4 [shape = 's32[1]{0}', space=sflag, size = 0x4, scoped, tag = 'scoped memory for tpu_custom_call.1']
    #allocation5 [shape = 'u8[524288]{0}', space=vmem, size = 0x80000, scoped, tag = 'input window, operand 1, single buffered']
    #allocation6 [shape = 's32[1]{0}', space=sflag, size = 0x4, scoped, tag = 'scoped memory for tpu_custom_call.1']
    #allocation7 [shape = 'u8[8192]{0}', space=vmem, size = 0x2000, scoped, tag = 'input window, operand 2, single buffered']
    #allocation8 [shape = 'u8[4096]{0}', space=vmem, size = 0x1000, scoped, tag = 'input window, operand 3, single buffered']
    #allocation9 [shape = 's32[1]{0}', space=sflag, size = 0x4, scoped, tag = 'scoped memory for tpu_custom_call.1']
    #allocation10 [shape = 'u8[16384]{0}', space=vmem, size = 0x4000, scoped, tag = 'output window, operand 0, single buffered']
    %9 = vsyncpa [#allocation3], 0
    %10 = vsyncpa [#allocation6], 0
    %11 = vsyncpa [#allocation9], 0
    %12 = vsyncpa [#allocation4], 0
    // Predicated region
    $region2: #{tpu_custom_call.1} parent=1 // pred_check
      _
    $region3: #{tpu_custom_call.1} parent=1 // pred_check_branch
      %14 = sbr.rel (0) target = $region5
    $region4: #{tpu_custom_call.1} parent=1 // pred_region
      %16 = vsyncadd [#allocation3], 0
      %s17 = sshll.u32 %s0, 4
      %s18 = int_to_ptr.hbm [resolvable:$true] %s17
      %s19 = sshll.u32 [#allocation2], 4
      %s20 = int_to_ptr.vmem [resolvable:$true] %s19
      %25 = dma.hbm_to_vmem [thread:$0]  %s18, 4096, %s20, [#allocation3], 64, 64, 4
    $region5: #{tpu_custom_call.1} parent=1 // pred_fallthru
      _
    // Predicated region
    $region6: #{tpu_custom_call.1} parent=1 // pred_check
      _
    $region7: #{tpu_custom_call.1} parent=1 // pred_check_branch
      %27 = sbr.rel (0) target = $region9
    $region8: #{tpu_custom_call.1} parent=1 // pred_region
      %29 = vsyncadd [#allocation6], 0
      %s30 = sshll.u32 %s1, 4
      %s31 = int_to_ptr.hbm [resolvable:$true] %s30
      %s32 = sshll.u32 [#allocation5], 4
      %s33 = int_to_ptr.vmem [resolvable:$true] %s32
      %38 = dma.hbm_to_vmem [thread:$0]  %s31, 16384, %s33, [#allocation6], 1024, 1024, 64
    $region9: #{tpu_custom_call.1} parent=1 // pred_fallthru
      _
    // Predicated region
    $region10: #{tpu_custom_call.1} parent=1 // pred_check
      _
    $region11: #{tpu_custom_call.1} parent=1 // pred_check_branch
      %40 = sbr.rel (0) target = $region13
    $region12: #{tpu_custom_call.1} parent=1 // pred_region
      %42 = vsyncadd [#allocation6], 0
      %s44 = sshll.u32 %s2, 4
      %s45 = int_to_ptr.hbm [resolvable:$true] %s44
      %s46 = sshll.u32 [#allocation7], 4
      %s47 = int_to_ptr.vmem [resolvable:$true] %s46
      %49 = dma.hbm_to_vmem [thread:$0]  %s45, 256, %s47, [#allocation6]
    $region13: #{tpu_custom_call.1} parent=1 // pred_fallthru
      _
    // Predicated region
    $region14: #{tpu_custom_call.1} parent=1 // pred_check
      _
    $region15: #{tpu_custom_call.1} parent=1 // pred_check_branch
      %51 = sbr.rel (0) target = $region17
    $region16: #{tpu_custom_call.1} parent=1 // pred_region
      %53 = vsyncadd [#allocation9], 0
      %s55 = sshll.u32 %s3, 4
      %s56 = int_to_ptr.hbm [resolvable:$true] %s55
      %s57 = sshll.u32 [#allocation8], 4
      %s58 = int_to_ptr.vmem [resolvable:$true] %s57
      %60 = dma.hbm_to_vmem [thread:$0]  %s56, 128, %s58, [#allocation9]
    $region17: #{tpu_custom_call.1} parent=1 // pred_fallthru
      _
    // Predicated region
    $region18: #{tpu_custom_call.1} parent=1 // pred_check
      _
    $region19: #{tpu_custom_call.1} parent=1 // pred_check_branch
      %62 = sbr.rel (0) target = $region21
    $region20: #{tpu_custom_call.1} parent=1 // pred_region
      %64 = dma.done [#allocation3], 4096
    $region21: #{tpu_custom_call.1} parent=1 // pred_fallthru
      _
    // Predicated region
    $region22: #{tpu_custom_call.1} parent=1 // pred_check
      _
    $region23: #{tpu_custom_call.1} parent=1 // pred_check_branch
      %66 = sbr.rel (0) target = $region25
    $region24: #{tpu_custom_call.1} parent=1 // pred_region
      %68 = dma.done [#allocation6], 16384
    $region25: #{tpu_custom_call.1} parent=1 // pred_fallthru
      _
    // Predicated region
    $region26: #{tpu_custom_call.1} parent=1 // pred_check
      _
    $region27: #{tpu_custom_call.1} parent=1 // pred_check_branch
      %70 = sbr.rel (0) target = $region29
    $region28: #{tpu_custom_call.1} parent=1 // pred_region
      %72 = dma.done [#allocation6], 256
    $region29: #{tpu_custom_call.1} parent=1 // pred_fallthru
      _
    // Predicated region
    $region30: #{tpu_custom_call.1} parent=1 // pred_check
      _
    $region31: #{tpu_custom_call.1} parent=1 // pred_check_branch
      %74 = sbr.rel (0) target = $region33
    $region32: #{tpu_custom_call.1} parent=1 // pred_region
      %76 = dma.done [#allocation9], 128
    $region33: #{tpu_custom_call.1} parent=1 // pred_fallthru
      _
    %v77 = vld [vmem:[#allocation2] sm:$0xf]
    %v78 = vld [vmem:[#allocation2 + $0x4] sm:$0xf]
    %v79 = vld [vmem:[#allocation2 + $0x8] sm:$0xf]
    %v80 = vld [vmem:[#allocation2 + $0xc] sm:$0xf]
    %v81 = vld [vmem:[#allocation2 + $0x10] sm:$0xf]
    %v82 = vld [vmem:[#allocation2 + $0x14] sm:$0xf]
    %v83 = vld [vmem:[#allocation2 + $0x18] sm:$0xf]
    %v84 = vld [vmem:[#allocation2 + $0x1c] sm:$0xf]
    %v85 = vld [vmem:[#allocation2 + $0x20] sm:$0xf]
    %v86 = vld [vmem:[#allocation2 + $0x24] sm:$0xf]
    %v87 = vld [vmem:[#allocation2 + $0x28] sm:$0xf]
    %v88 = vld [vmem:[#allocation2 + $0x2c] sm:$0xf]
    %v89 = vld [vmem:[#allocation2 + $0x30] sm:$0xf]
    %v90 = vld [vmem:[#allocation2 + $0x34] sm:$0xf]
    %v91 = vld [vmem:[#allocation2 + $0x38] sm:$0xf]
    %v92 = vld [vmem:[#allocation2 + $0x3c] sm:$0xf]
    %v93 = vld [vmem:[#allocation2 + $0x40] sm:$0xf]
    %v94 = vld [vmem:[#allocation2 + $0x44] sm:$0xf]
    %v95 = vld [vmem:[#allocation2 + $0x48] sm:$0xf]
    %v96 = vld [vmem:[#allocation2 + $0x4c] sm:$0xf]
    %v97 = vld [vmem:[#allocation2 + $0x50] sm:$0xf]
    %v98 = vld [vmem:[#allocation2 + $0x54] sm:$0xf]
    %v99 = vld [vmem:[#allocation2 + $0x58] sm:$0xf]
    %v100 = vld [vmem:[#allocation2 + $0x5c] sm:$0xf]
    %v101 = vld [vmem:[#allocation2 + $0x60] sm:$0xf]
    %v102 = vld [vmem:[#allocation2 + $0x64] sm:$0xf]
    %v103 = vld [vmem:[#allocation2 + $0x68] sm:$0xf]
    %v104 = vld [vmem:[#allocation2 + $0x6c] sm:$0xf]
    %v105 = vld [vmem:[#allocation2 + $0x70] sm:$0xf]
    %v106 = vld [vmem:[#allocation2 + $0x74] sm:$0xf]
    %v107 = vld [vmem:[#allocation2 + $0x78] sm:$0xf]
    %v108 = vld [vmem:[#allocation2 + $0x7c] sm:$0xf]
    %v109 = vld [vmem:[#allocation2 + $0x80] sm:$0xf]
    %v110 = vld [vmem:[#allocation2 + $0x84] sm:$0xf]
    %v111 = vld [vmem:[#allocation2 + $0x88] sm:$0xf]
    %v112 = vld [vmem:[#allocation2 + $0x8c] sm:$0xf]
    %v113 = vld [vmem:[#allocation2 + $0x90] sm:$0xf]
    %v114 = vld [vmem:[#allocation2 + $0x94] sm:$0xf]
    %v115 = vld [vmem:[#allocation2 + $0x98] sm:$0xf]
    %v116 = vld [vmem:[#allocation2 + $0x9c] sm:$0xf]
    %v117 = vld [vmem:[#allocation2 + $0xa0] sm:$0xf]
    %v118 = vld [vmem:[#allocation2 + $0xa4] sm:$0xf]
    %v119 = vld [vmem:[#allocation2 + $0xa8] sm:$0xf]
    %v120 = vld [vmem:[#allocation2 + $0xac] sm:$0xf]
    %v121 = vld [vmem:[#allocation2 + $0xb0] sm:$0xf]
    %v122 = vld [vmem:[#allocation2 + $0xb4] sm:$0xf]
    %v123 = vld [vmem:[#allocation2 + $0xb8] sm:$0xf]
    %v124 = vld [vmem:[#allocation2 + $0xbc] sm:$0xf]
    %v125 = vld [vmem:[#allocation2 + $0xc0] sm:$0xf]
    %v126 = vld [vmem:[#allocation2 + $0xc4] sm:$0xf]
    %v127 = vld [vmem:[#allocation2 + $0xc8] sm:$0xf]
    %v128 = vld [vmem:[#allocation2 + $0xcc] sm:$0xf]
    %v129 = vld [vmem:[#allocation2 + $0xd0] sm:$0xf]
    %v130 = vld [vmem:[#allocation2 + $0xd4] sm:$0xf]
    %v131 = vld [vmem:[#allocation2 + $0xd8] sm:$0xf]
    %v132 = vld [vmem:[#allocation2 + $0xdc] sm:$0xf]
    %v133 = vld [vmem:[#allocation2 + $0xe0] sm:$0xf]
    %v134 = vld [vmem:[#allocation2 + $0xe4] sm:$0xf]
    %v135 = vld [vmem:[#allocation2 + $0xe8] sm:$0xf]
    %v136 = vld [vmem:[#allocation2 + $0xec] sm:$0xf]
    %v137 = vld [vmem:[#allocation2 + $0xf0] sm:$0xf]
    %v138 = vld [vmem:[#allocation2 + $0xf4] sm:$0xf]
    %v139 = vld [vmem:[#allocation2 + $0xf8] sm:$0xf]
    %v140 = vld [vmem:[#allocation2 + $0xfc] sm:$0xf]
    %v141 = vld [vmem:[#allocation5] sm:$0xff]
    %v142 = vld [vmem:[#allocation5 + $0x8] sm:$0xff]
    %v143 = vld [vmem:[#allocation5 + $0x10] sm:$0xff]
    %v144 = vld [vmem:[#allocation5 + $0x18] sm:$0xff]
    %v145 = vld [vmem:[#allocation5 + $0x20] sm:$0xff]
    %v146 = vld [vmem:[#allocation5 + $0x28] sm:$0xff]
    %v147 = vld [vmem:[#allocation5 + $0x30] sm:$0xff]
    %v148 = vld [vmem:[#allocation5 + $0x38] sm:$0xff]
    %v149 = vld [vmem:[#allocation5 + $0x40] sm:$0xff]
    %v150 = vld [vmem:[#allocation5 + $0x48] sm:$0xff]
    %v151 = vld [vmem:[#allocation5 + $0x50] sm:$0xff]
    %v152 = vld [vmem:[#allocation5 + $0x58] sm:$0xff]
    %v153 = vld [vmem:[#allocation5 + $0x60] sm:$0xff]
    %v154 = vld [vmem:[#allocation5 + $0x68] sm:$0xff]
    %v155 = vld [vmem:[#allocation5 + $0x70] sm:$0xff]
    %v156 = vld [vmem:[#allocation5 + $0x78] sm:$0xff]
    %v157 = vld [vmem:[#allocation5 + $0x80] sm:$0xff]
    %v158 = vld [vmem:[#allocation5 + $0x88] sm:$0xff]
    %v159 = vld [vmem:[#allocation5 + $0x90] sm:$0xff]
    %v160 = vld [vmem:[#allocation5 + $0x98] sm:$0xff]
    %v161 = vld [vmem:[#allocation5 + $0xa0] sm:$0xff]
    %v162 = vld [vmem:[#allocation5 + $0xa8] sm:$0xff]
    %v163 = vld [vmem:[#allocation5 + $0xb0] sm:$0xff]
    %v164 = vld [vmem:[#allocation5 + $0xb8] sm:$0xff]
    %v165 = vld [vmem:[#allocation5 + $0xc0] sm:$0xff]
    %v166 = vld [vmem:[#allocation5 + $0xc8] sm:$0xff]
    %v167 = vld [vmem:[#allocation5 + $0xd0] sm:$0xff]
    %v168 = vld [vmem:[#allocation5 + $0xd8] sm:$0xff]
    %v169 = vld [vmem:[#allocation5 + $0xe0] sm:$0xff]
    %v170 = vld [vmem:[#allocation5 + $0xe8] sm:$0xff]
    %v171 = vld [vmem:[#allocation5 + $0xf0] sm:$0xff]
    %v172 = vld [vmem:[#allocation5 + $0xf8] sm:$0xff]
    %v173 = vld [vmem:[#allocation5 + $0x100] sm:$0xff]
    %v174 = vld [vmem:[#allocation5 + $0x108] sm:$0xff]
    %v175 = vld [vmem:[#allocation5 + $0x110] sm:$0xff]
    %v176 = vld [vmem:[#allocation5 + $0x118] sm:$0xff]
    %v177 = vld [vmem:[#allocation5 + $0x120] sm:$0xff]
    %v178 = vld [vmem:[#allocation5 + $0x128] sm:$0xff]
    %v179 = vld [vmem:[#allocation5 + $0x130] sm:$0xff]
    %v180 = vld [vmem:[#allocation5 + $0x138] sm:$0xff]
    %v181 = vld [vmem:[#allocation5 + $0x140] sm:$0xff]
    %v182 = vld [vmem:[#allocation5 + $0x148] sm:$0xff]
    %v183 = vld [vmem:[#allocation5 + $0x150] sm:$0xff]
    %v184 = vld [vmem:[#allocation5 + $0x158] sm:$0xff]
    %v185 = vld [vmem:[#allocation5 + $0x160] sm:$0xff]
    %v186 = vld [vmem:[#allocation5 + $0x168] sm:$0xff]
    %v187 = vld [vmem:[#allocation5 + $0x170] sm:$0xff]
    %v188 = vld [vmem:[#allocation5 + $0x178] sm:$0xff]
    %v189 = vld [vmem:[#allocation5 + $0x180] sm:$0xff]
    %v190 = vld [vmem:[#allocation5 + $0x188] sm:$0xff]
    %v191 = vld [vmem:[#allocation5 + $0x190] sm:$0xff]
    %v192 = vld [vmem:[#allocation5 + $0x198] sm:$0xff]
    %v193 = vld [vmem:[#allocation5 + $0x1a0] sm:$0xff]
    %v194 = vld [vmem:[#allocation5 + $0x1a8] sm:$0xff]
    %v195 = vld [vmem:[#allocation5 + $0x1b0] sm:$0xff]
    %v196 = vld [vmem:[#allocation5 + $0x1b8] sm:$0xff]
    %v197 = vld [vmem:[#allocation5 + $0x1c0] sm:$0xff]
    %v198 = vld [vmem:[#allocation5 + $0x1c8] sm:$0xff]
    %v199 = vld [vmem:[#allocation5 + $0x1d0] sm:$0xff]
    %v200 = vld [vmem:[#allocation5 + $0x1d8] sm:$0xff]
    %v201 = vld [vmem:[#allocation5 + $0x1e0] sm:$0xff]
    %v202 = vld [vmem:[#allocation5 + $0x1e8] sm:$0xff]
    %v203 = vld [vmem:[#allocation5 + $0x1f0] sm:$0xff]
    %v204 = vld [vmem:[#allocation5 + $0x1f8] sm:$0xff]
    %v205 = vld [vmem:[#allocation5 + $0x200] sm:$0xff]
    %v206 = vld [vmem:[#allocation5 + $0x208] sm:$0xff]
    %v207 = vld [vmem:[#allocation5 + $0x210] sm:$0xff]
    %v208 = vld [vmem:[#allocation5 + $0x218] sm:$0xff]
    %v209 = vld [vmem:[#allocation5 + $0x220] sm:$0xff]
    %v210 = vld [vmem:[#allocation5 + $0x228] sm:$0xff]
    %v211 = vld [vmem:[#allocation5 + $0x230] sm:$0xff]
    %v212 = vld [vmem:[#allocation5 + $0x238] sm:$0xff]
    %v213 = vld [vmem:[#allocation5 + $0x240] sm:$0xff]
    %v214 = vld [vmem:[#allocation5 + $0x248] sm:$0xff]
    %v215 = vld [vmem:[#allocation5 + $0x250] sm:$0xff]
    %v216 = vld [vmem:[#allocation5 + $0x258] sm:$0xff]
    %v217 = vld [vmem:[#allocation5 + $0x260] sm:$0xff]
    %v218 = vld [vmem:[#allocation5 + $0x268] sm:$0xff]
    %v219 = vld [vmem:[#allocation5 + $0x270] sm:$0xff]
    %v220 = vld [vmem:[#allocation5 + $0x278] sm:$0xff]
    %v221 = vld [vmem:[#allocation5 + $0x280] sm:$0xff]
    %v222 = vld [vmem:[#allocation5 + $0x288] sm:$0xff]
    %v223 = vld [vmem:[#allocation5 + $0x290] sm:$0xff]
    %v224 = vld [vmem:[#allocation5 + $0x298] sm:$0xff]
    %v225 = vld [vmem:[#allocation5 + $0x2a0] sm:$0xff]
    %v226 = vld [vmem:[#allocation5 + $0x2a8] sm:$0xff]
    %v227 = vld [vmem:[#allocation5 + $0x2b0] sm:$0xff]
    %v228 = vld [vmem:[#allocation5 + $0x2b8] sm:$0xff]
    %v229 = vld [vmem:[#allocation5 + $0x2c0] sm:$0xff]
    %v230 = vld [vmem:[#allocation5 + $0x2c8] sm:$0xff]
    %v231 = vld [vmem:[#allocation5 + $0x2d0] sm:$0xff]
    %v232 = vld [vmem:[#allocation5 + $0x2d8] sm:$0xff]
    %v233 = vld [vmem:[#allocation5 + $0x2e0] sm:$0xff]
    %v234 = vld [vmem:[#allocation5 + $0x2e8] sm:$0xff]
    %v235 = vld [vmem:[#allocation5 + $0x2f0] sm:$0xff]
    %v236 = vld [vmem:[#allocation5 + $0x2f8] sm:$0xff]
    %v237 = vld [vmem:[#allocation5 + $0x300] sm:$0xff]
    %v238 = vld [vmem:[#allocation5 + $0x308] sm:$0xff]
    %v239 = vld [vmem:[#allocation5 + $0x310] sm:$0xff]
    %v240 = vld [vmem:[#allocation5 + $0x318] sm:$0xff]
    %v241 = vld [vmem:[#allocation5 + $0x320] sm:$0xff]
    %v242 = vld [vmem:[#allocation5 + $0x328] sm:$0xff]
    %v243 = vld [vmem:[#allocation5 + $0x330] sm:$0xff]
    %v244 = vld [vmem:[#allocation5 + $0x338] sm:$0xff]
    %v245 = vld [vmem:[#allocation5 + $0x340] sm:$0xff]
    %v246 = vld [vmem:[#allocation5 + $0x348] sm:$0xff]
    %v247 = vld [vmem:[#allocation5 + $0x350] sm:$0xff]
    %v248 = vld [vmem:[#allocation5 + $0x358] sm:$0xff]
    %v249 = vld [vmem:[#allocation5 + $0x360] sm:$0xff]
    %v250 = vld [vmem:[#allocation5 + $0x368] sm:$0xff]
    %v251 = vld [vmem:[#allocation5 + $0x370] sm:$0xff]
    %v252 = vld [vmem:[#allocation5 + $0x378] sm:$0xff]
    %v253 = vld [vmem:[#allocation5 + $0x380] sm:$0xff]
    %v254 = vld [vmem:[#allocation5 + $0x388] sm:$0xff]
    %v255 = vld [vmem:[#allocation5 + $0x390] sm:$0xff]
    %v256 = vld [vmem:[#allocation5 + $0x398] sm:$0xff]
    %v257 = vld [vmem:[#allocation5 + $0x3a0] sm:$0xff]
    %v258 = vld [vmem:[#allocation5 + $0x3a8] sm:$0xff]
    %v259 = vld [vmem:[#allocation5 + $0x3b0] sm:$0xff]
    %v260 = vld [vmem:[#allocation5 + $0x3b8] sm:$0xff]
    %v261 = vld [vmem:[#allocation5 + $0x3c0] sm:$0xff]
    %v262 = vld [vmem:[#allocation5 + $0x3c8] sm:$0xff]
    %v263 = vld [vmem:[#allocation5 + $0x3d0] sm:$0xff]
    %v264 = vld [vmem:[#allocation5 + $0x3d8] sm:$0xff]
    %v265 = vld [vmem:[#allocation5 + $0x3e0] sm:$0xff]
    %v266 = vld [vmem:[#allocation5 + $0x3e8] sm:$0xff]
    %v267 = vld [vmem:[#allocation5 + $0x3f0] sm:$0xff]
    %v268 = vld [vmem:[#allocation5 + $0x3f8] sm:$0xff]
    %v269 = vld [vmem:[#allocation7] sm:$0xff]
    %v270 = vld [vmem:[#allocation7 + $0x8] sm:$0xff]
    %v273 = vperm.slane %v269, 0
    %v274 = vperm.slane %v269, 1
    %v275 = vperm.slane %v269, 2
    %v276 = vperm.slane %v269, 3
    %v277 = vperm.slane %v269, 4
    %v278 = vperm.slane %v269, 5
    %v279 = vperm.slane %v269, 6
    %v280 = vperm.slane %v269, 7
    %v281 = vperm.slane %v270, 0
    %v282 = vperm.slane %v270, 1
    %v283 = vperm.slane %v270, 2
    %v284 = vperm.slane %v270, 3
    %v285 = vperm.slane %v270, 4
    %v286 = vperm.slane %v270, 5
    %v287 = vperm.slane %v270, 6
    %v288 = vperm.slane %v270, 7
    %v369 = vunpack.c.l.b16 %v77
    %v370 = vunpack.c.l.b16 %v78
    %v371 = vunpack.c.l.b16 %v79
    %v372 = vunpack.c.l.b16 %v80
    %v373 = vunpack.c.l.b16 %v81
    %v374 = vunpack.c.l.b16 %v82
    %v375 = vunpack.c.l.b16 %v83
    %v376 = vunpack.c.l.b16 %v84
    %v377 = vunpack.c.l.b16 %v85
    %v378 = vunpack.c.l.b16 %v86
    %v379 = vunpack.c.l.b16 %v87
    %v380 = vunpack.c.l.b16 %v88
    %v381 = vunpack.c.l.b16 %v89
    %v382 = vunpack.c.l.b16 %v90
    %v383 = vunpack.c.l.b16 %v91
    %v384 = vunpack.c.l.b16 %v92
    %v385 = vunpack.c.l.b16 %v93
    %v386 = vunpack.c.l.b16 %v94
    %v387 = vunpack.c.l.b16 %v95
    %v388 = vunpack.c.l.b16 %v96
    %v389 = vunpack.c.l.b16 %v97
    %v390 = vunpack.c.l.b16 %v98
    %v391 = vunpack.c.l.b16 %v99
    %v392 = vunpack.c.l.b16 %v100
    %v393 = vunpack.c.l.b16 %v101
    %v394 = vunpack.c.l.b16 %v102
    %v395 = vunpack.c.l.b16 %v103
    %v396 = vunpack.c.l.b16 %v104
    %v397 = vunpack.c.l.b16 %v105
    %v398 = vunpack.c.l.b16 %v106
    %v399 = vunpack.c.l.b16 %v107
    %v400 = vunpack.c.l.b16 %v108
    %v401 = vunpack.c.l.b16 %v109
    %v402 = vunpack.c.l.b16 %v110
    %v403 = vunpack.c.l.b16 %v111
    %v404 = vunpack.c.l.b16 %v112
    %v405 = vunpack.c.l.b16 %v113
    %v406 = vunpack.c.l.b16 %v114
    %v407 = vunpack.c.l.b16 %v115
    %v408 = vunpack.c.l.b16 %v116
    %v409 = vunpack.c.l.b16 %v117
    %v410 = vunpack.c.l.b16 %v118
    %v411 = vunpack.c.l.b16 %v119
    %v412 = vunpack.c.l.b16 %v120
    %v413 = vunpack.c.l.b16 %v121
    %v414 = vunpack.c.l.b16 %v122
    %v415 = vunpack.c.l.b16 %v123
    %v416 = vunpack.c.l.b16 %v124
    %v417 = vunpack.c.l.b16 %v125
    %v418 = vunpack.c.l.b16 %v126
    %v419 = vunpack.c.l.b16 %v127
    %v420 = vunpack.c.l.b16 %v128
    %v421 = vunpack.c.l.b16 %v129
    %v422 = vunpack.c.l.b16 %v130
    %v423 = vunpack.c.l.b16 %v131
    %v424 = vunpack.c.l.b16 %v132
    %v425 = vunpack.c.l.b16 %v133
    %v426 = vunpack.c.l.b16 %v134
    %v427 = vunpack.c.l.b16 %v135
    %v428 = vunpack.c.l.b16 %v136
    %v429 = vunpack.c.l.b16 %v137
    %v430 = vunpack.c.l.b16 %v138
    %v431 = vunpack.c.l.b16 %v139
    %v432 = vunpack.c.l.b16 %v140
    %v433 = vpack.c.b16 %v370, %v369
    %v434 = vpack.c.b16 %v372, %v371
    %v435 = vpack.c.b16 %v374, %v373
    %v436 = vpack.c.b16 %v376, %v375
    %v437 = vpack.c.b16 %v378, %v377
    %v438 = vpack.c.b16 %v380, %v379
    %v439 = vpack.c.b16 %v382, %v381
    %v440 = vpack.c.b16 %v384, %v383
    %v441 = vpack.c.b16 %v386, %v385
    %v442 = vpack.c.b16 %v388, %v387
    %v443 = vpack.c.b16 %v390, %v389
    %v444 = vpack.c.b16 %v392, %v391
    %v445 = vpack.c.b16 %v394, %v393
    %v446 = vpack.c.b16 %v396, %v395
    %v447 = vpack.c.b16 %v398, %v397
    %v448 = vpack.c.b16 %v400, %v399
    %v449 = vpack.c.b16 %v402, %v401
    %v450 = vpack.c.b16 %v404, %v403
    %v451 = vpack.c.b16 %v406, %v405
    %v452 = vpack.c.b16 %v408, %v407
    %v453 = vpack.c.b16 %v410, %v409
    %v454 = vpack.c.b16 %v412, %v411
    %v455 = vpack.c.b16 %v414, %v413
    %v456 = vpack.c.b16 %v416, %v415
    %v457 = vpack.c.b16 %v418, %v417
    %v458 = vpack.c.b16 %v420, %v419
    %v459 = vpack.c.b16 %v422, %v421
    %v460 = vpack.c.b16 %v424, %v423
    %v461 = vpack.c.b16 %v426, %v425
    %v462 = vpack.c.b16 %v428, %v427
    %v463 = vpack.c.b16 %v430, %v429
    %v464 = vpack.c.b16 %v432, %v431
    %v625 = vunpack.c.l.b16 %v141
    %v626 = vunpack.c.h.b16 %v141
    %v627 = vunpack.c.l.b16 %v142
    %v628 = vunpack.c.h.b16 %v142
    %v629 = vunpack.c.l.b16 %v143
    %v630 = vunpack.c.h.b16 %v143
    %v631 = vunpack.c.l.b16 %v144
    %v632 = vunpack.c.h.b16 %v144
    %v633 = vunpack.c.l.b16 %v145
    %v634 = vunpack.c.h.b16 %v145
    %v635 = vunpack.c.l.b16 %v146
    %v636 = vunpack.c.h.b16 %v146
    %v637 = vunpack.c.l.b16 %v147
    %v638 = vunpack.c.h.b16 %v147
    %v639 = vunpack.c.l.b16 %v148
    %v640 = vunpack.c.h.b16 %v148
    %v641 = vunpack.c.l.b16 %v149
    %v642 = vunpack.c.h.b16 %v149
    %v643 = vunpack.c.l.b16 %v150
    %v644 = vunpack.c.h.b16 %v150
    %v645 = vunpack.c.l.b16 %v151
    %v646 = vunpack.c.h.b16 %v151
    %v647 = vunpack.c.l.b16 %v152
    %v648 = vunpack.c.h.b16 %v152
    %v649 = vunpack.c.l.b16 %v153
    %v650 = vunpack.c.h.b16 %v153
    %v651 = vunpack.c.l.b16 %v154
    %v652 = vunpack.c.h.b16 %v154
    %v653 = vunpack.c.l.b16 %v155
    %v654 = vunpack.c.h.b16 %v155
    %v655 = vunpack.c.l.b16 %v156
    %v656 = vunpack.c.h.b16 %v156
    %v657 = vunpack.c.l.b16 %v157
    %v658 = vunpack.c.h.b16 %v157
    %v659 = vunpack.c.l.b16 %v158
    %v660 = vunpack.c.h.b16 %v158
    %v661 = vunpack.c.l.b16 %v159
    %v662 = vunpack.c.h.b16 %v159
    %v663 = vunpack.c.l.b16 %v160
    %v664 = vunpack.c.h.b16 %v160
    %v665 = vunpack.c.l.b16 %v161
    %v666 = vunpack.c.h.b16 %v161
    %v667 = vunpack.c.l.b16 %v162
    %v668 = vunpack.c.h.b16 %v162
    %v669 = vunpack.c.l.b16 %v163
    %v670 = vunpack.c.h.b16 %v163
    %v671 = vunpack.c.l.b16 %v164
    %v672 = vunpack.c.h.b16 %v164
    %v673 = vunpack.c.l.b16 %v165
    %v674 = vunpack.c.h.b16 %v165
    %v675 = vunpack.c.l.b16 %v166
    %v676 = vunpack.c.h.b16 %v166
    %v677 = vunpack.c.l.b16 %v167
    %v678 = vunpack.c.h.b16 %v167
    %v679 = vunpack.c.l.b16 %v168
    %v680 = vunpack.c.h.b16 %v168
    %v681 = vunpack.c.l.b16 %v169
    %v682 = vunpack.c.h.b16 %v169
    %v683 = vunpack.c.l.b16 %v170
    %v684 = vunpack.c.h.b16 %v170
    %v685 = vunpack.c.l.b16 %v171
    %v686 = vunpack.c.h.b16 %v171
    %v687 = vunpack.c.l.b16 %v172
    %v688 = vunpack.c.h.b16 %v172
    %v689 = vunpack.c.l.b16 %v173
    %v690 = vunpack.c.h.b16 %v173
    %v691 = vunpack.c.l.b16 %v174
    %v692 = vunpack.c.h.b16 %v174
    %v693 = vunpack.c.l.b16 %v175
    %v694 = vunpack.c.h.b16 %v175
    %v695 = vunpack.c.l.b16 %v176
    %v696 = vunpack.c.h.b16 %v176
    %v697 = vunpack.c.l.b16 %v177
    %v698 = vunpack.c.h.b16 %v177
    %v699 = vunpack.c.l.b16 %v178
    %v700 = vunpack.c.h.b16 %v178
    %v701 = vunpack.c.l.b16 %v179
    %v702 = vunpack.c.h.b16 %v179
    %v703 = vunpack.c.l.b16 %v180
    %v704 = vunpack.c.h.b16 %v180
    %v705 = vunpack.c.l.b16 %v181
    %v706 = vunpack.c.h.b16 %v181
    %v707 = vunpack.c.l.b16 %v182
    %v708 = vunpack.c.h.b16 %v182
    %v709 = vunpack.c.l.b16 %v183
    %v710 = vunpack.c.h.b16 %v183
    %v711 = vunpack.c.l.b16 %v184
    %v712 = vunpack.c.h.b16 %v184
    %v713 = vunpack.c.l.b16 %v185
    %v714 = vunpack.c.h.b16 %v185
    %v715 = vunpack.c.l.b16 %v186
    %v716 = vunpack.c.h.b16 %v186
    %v717 = vunpack.c.l.b16 %v187
    %v718 = vunpack.c.h.b16 %v187
    %v719 = vunpack.c.l.b16 %v188
    %v720 = vunpack.c.h.b16 %v188
    %v721 = vunpack.c.l.b16 %v189
    %v722 = vunpack.c.h.b16 %v189
    %v723 = vunpack.c.l.b16 %v190
    %v724 = vunpack.c.h.b16 %v190
    %v725 = vunpack.c.l.b16 %v191
    %v726 = vunpack.c.h.b16 %v191
    %v727 = vunpack.c.l.b16 %v192
    %v728 = vunpack.c.h.b16 %v192
    %v729 = vunpack.c.l.b16 %v193
    %v730 = vunpack.c.h.b16 %v193
    %v731 = vunpack.c.l.b16 %v194
    %v732 = vunpack.c.h.b16 %v194
    %v733 = vunpack.c.l.b16 %v195
    %v734 = vunpack.c.h.b16 %v195
    %v735 = vunpack.c.l.b16 %v196
    %v736 = vunpack.c.h.b16 %v196
    %v737 = vunpack.c.l.b16 %v197
    %v738 = vunpack.c.h.b16 %v197
    %v739 = vunpack.c.l.b16 %v198
    %v740 = vunpack.c.h.b16 %v198
    %v741 = vunpack.c.l.b16 %v199
    %v742 = vunpack.c.h.b16 %v199
    %v743 = vunpack.c.l.b16 %v200
    %v744 = vunpack.c.h.b16 %v200
    %v745 = vunpack.c.l.b16 %v201
    %v746 = vunpack.c.h.b16 %v201
    %v747 = vunpack.c.l.b16 %v202
    %v748 = vunpack.c.h.b16 %v202
    %v749 = vunpack.c.l.b16 %v203
    %v750 = vunpack.c.h.b16 %v203
    %v751 = vunpack.c.l.b16 %v204
    %v752 = vunpack.c.h.b16 %v204
    %v753 = vunpack.c.l.b16 %v205
    %v754 = vunpack.c.h.b16 %v205
    %v755 = vunpack.c.l.b16 %v206
    %v756 = vunpack.c.h.b16 %v206
    %v757 = vunpack.c.l.b16 %v207
    %v758 = vunpack.c.h.b16 %v207
    %v759 = vunpack.c.l.b16 %v208
    %v760 = vunpack.c.h.b16 %v208
    %v761 = vunpack.c.l.b16 %v209
    %v762 = vunpack.c.h.b16 %v209
    %v763 = vunpack.c.l.b16 %v210
    %v764 = vunpack.c.h.b16 %v210
    %v765 = vunpack.c.l.b16 %v211
    %v766 = vunpack.c.h.b16 %v211
    %v767 = vunpack.c.l.b16 %v212
    %v768 = vunpack.c.h.b16 %v212
    %v769 = vunpack.c.l.b16 %v213
    %v770 = vunpack.c.h.b16 %v213
    %v771 = vunpack.c.l.b16 %v214
    %v772 = vunpack.c.h.b16 %v214
    %v773 = vunpack.c.l.b16 %v215
    %v774 = vunpack.c.h.b16 %v215
    %v775 = vunpack.c.l.b16 %v216
    %v776 = vunpack.c.h.b16 %v216
    %v777 = vunpack.c.l.b16 %v217
    %v778 = vunpack.c.h.b16 %v217
    %v779 = vunpack.c.l.b16 %v218
    %v780 = vunpack.c.h.b16 %v218
    %v781 = vunpack.c.l.b16 %v219
    %v782 = vunpack.c.h.b16 %v219
    %v783 = vunpack.c.l.b16 %v220
    %v784 = vunpack.c.h.b16 %v220
    %v785 = vunpack.c.l.b16 %v221
    %v786 = vunpack.c.h.b16 %v221
    %v787 = vunpack.c.l.b16 %v222
    %v788 = vunpack.c.h.b16 %v222
    %v789 = vunpack.c.l.b16 %v223
    %v790 = vunpack.c.h.b16 %v223
    %v791 = vunpack.c.l.b16 %v224
    %v792 = vunpack.c.h.b16 %v224
    %v793 = vunpack.c.l.b16 %v225
    %v794 = vunpack.c.h.b16 %v225
    %v795 = vunpack.c.l.b16 %v226
    %v796 = vunpack.c.h.b16 %v226
    %v797 = vunpack.c.l.b16 %v227
    %v798 = vunpack.c.h.b16 %v227
    %v799 = vunpack.c.l.b16 %v228
    %v800 = vunpack.c.h.b16 %v228
    %v801 = vunpack.c.l.b16 %v229
    %v802 = vunpack.c.h.b16 %v229
    %v803 = vunpack.c.l.b16 %v230
    %v804 = vunpack.c.h.b16 %v230
    %v805 = vunpack.c.l.b16 %v231
    %v806 = vunpack.c.h.b16 %v231
    %v807 = vunpack.c.l.b16 %v232
    %v808 = vunpack.c.h.b16 %v232
    %v809 = vunpack.c.l.b16 %v233
    %v810 = vunpack.c.h.b16 %v233
    %v811 = vunpack.c.l.b16 %v234
    %v812 = vunpack.c.h.b16 %v234
    %v813 = vunpack.c.l.b16 %v235
    %v814 = vunpack.c.h.b16 %v235
    %v815 = vunpack.c.l.b16 %v236
    %v816 = vunpack.c.h.b16 %v236
    %v817 = vunpack.c.l.b16 %v237
    %v818 = vunpack.c.h.b16 %v237
    %v819 = vunpack.c.l.b16 %v238
    %v820 = vunpack.c.h.b16 %v238
    %v821 = vunpack.c.l.b16 %v239
    %v822 = vunpack.c.h.b16 %v239
    %v823 = vunpack.c.l.b16 %v240
    %v824 = vunpack.c.h.b16 %v240
    %v825 = vunpack.c.l.b16 %v241
    %v826 = vunpack.c.h.b16 %v241
    %v827 = vunpack.c.l.b16 %v242
    %v828 = vunpack.c.h.b16 %v242
    %v829 = vunpack.c.l.b16 %v243
    %v830 = vunpack.c.h.b16 %v243
    %v831 = vunpack.c.l.b16 %v244
    %v832 = vunpack.c.h.b16 %v244
    %v833 = vunpack.c.l.b16 %v245
    %v834 = vunpack.c.h.b16 %v245
    %v835 = vunpack.c.l.b16 %v246
    %v836 = vunpack.c.h.b16 %v246
    %v837 = vunpack.c.l.b16 %v247
    %v838 = vunpack.c.h.b16 %v247
    %v839 = vunpack.c.l.b16 %v248
    %v840 = vunpack.c.h.b16 %v248
    %v841 = vunpack.c.l.b16 %v249
    %v842 = vunpack.c.h.b16 %v249
    %v843 = vunpack.c.l.b16 %v250
    %v844 = vunpack.c.h.b16 %v250
    %v845 = vunpack.c.l.b16 %v251
    %v846 = vunpack.c.h.b16 %v251
    %v847 = vunpack.c.l.b16 %v252
    %v848 = vunpack.c.h.b16 %v252
    %v849 = vunpack.c.l.b16 %v253
    %v850 = vunpack.c.h.b16 %v253
    %v851 = vunpack.c.l.b16 %v254
    %v852 = vunpack.c.h.b16 %v254
    %v853 = vunpack.c.l.b16 %v255
    %v854 = vunpack.c.h.b16 %v255
    %v855 = vunpack.c.l.b16 %v256
    %v856 = vunpack.c.h.b16 %v256
    %v857 = vunpack.c.l.b16 %v257
    %v858 = vunpack.c.h.b16 %v257
    %v859 = vunpack.c.l.b16 %v258
    %v860 = vunpack.c.h.b16 %v258
    %v861 = vunpack.c.l.b16 %v259
    %v862 = vunpack.c.h.b16 %v259
    %v863 = vunpack.c.l.b16 %v260
    %v864 = vunpack.c.h.b16 %v260
    %v865 = vunpack.c.l.b16 %v261
    %v866 = vunpack.c.h.b16 %v261
    %v867 = vunpack.c.l.b16 %v262
    %v868 = vunpack.c.h.b16 %v262
    %v869 = vunpack.c.l.b16 %v263
    %v870 = vunpack.c.h.b16 %v263
    %v871 = vunpack.c.l.b16 %v264
    %v872 = vunpack.c.h.b16 %v264
    %v873 = vunpack.c.l.b16 %v265
    %v874 = vunpack.c.h.b16 %v265
    %v875 = vunpack.c.l.b16 %v266
    %v876 = vunpack.c.h.b16 %v266
    %v877 = vunpack.c.l.b16 %v267
    %v878 = vunpack.c.h.b16 %v267
    %v879 = vunpack.c.l.b16 %v268
    %v880 = vunpack.c.h.b16 %v268
    %v881 = vpack.c.b16 %v641, %v625
    %v882 = vpack.c.b16 %v642, %v626
    %v883 = vpack.c.b16 %v643, %v627
    %v884 = vpack.c.b16 %v644, %v628
    %v885 = vpack.c.b16 %v645, %v629
    %v886 = vpack.c.b16 %v646, %v630
    %v887 = vpack.c.b16 %v647, %v631
    %v888 = vpack.c.b16 %v648, %v632
    %v889 = vpack.c.b16 %v649, %v633
    %v890 = vpack.c.b16 %v650, %v634
    %v891 = vpack.c.b16 %v651, %v635
    %v892 = vpack.c.b16 %v652, %v636
    %v893 = vpack.c.b16 %v653, %v637
    %v894 = vpack.c.b16 %v654, %v638
    %v895 = vpack.c.b16 %v655, %v639
    %v896 = vpack.c.b16 %v656, %v640
    %v897 = vpack.c.b16 %v673, %v657
    %v898 = vpack.c.b16 %v674, %v658
    %v899 = vpack.c.b16 %v675, %v659
    %v900 = vpack.c.b16 %v676, %v660
    %v901 = vpack.c.b16 %v677, %v661
    %v902 = vpack.c.b16 %v678, %v662
    %v903 = vpack.c.b16 %v679, %v663
    %v904 = vpack.c.b16 %v680, %v664
    %v905 = vpack.c.b16 %v681, %v665
    %v906 = vpack.c.b16 %v682, %v666
    %v907 = vpack.c.b16 %v683, %v667
    %v908 = vpack.c.b16 %v684, %v668
    %v909 = vpack.c.b16 %v685, %v669
    %v910 = vpack.c.b16 %v686, %v670
    %v911 = vpack.c.b16 %v687, %v671
    %v912 = vpack.c.b16 %v688, %v672
    %v913 = vpack.c.b16 %v705, %v689
    %v914 = vpack.c.b16 %v706, %v690
    %v915 = vpack.c.b16 %v707, %v691
    %v916 = vpack.c.b16 %v708, %v692
    %v917 = vpack.c.b16 %v709, %v693
    %v918 = vpack.c.b16 %v710, %v694
    %v919 = vpack.c.b16 %v711, %v695
    %v920 = vpack.c.b16 %v712, %v696
    %v921 = vpack.c.b16 %v713, %v697
    %v922 = vpack.c.b16 %v714, %v698
    %v923 = vpack.c.b16 %v715, %v699
    %v924 = vpack.c.b16 %v716, %v700
    %v925 = vpack.c.b16 %v717, %v701
    %v926 = vpack.c.b16 %v718, %v702
    %v927 = vpack.c.b16 %v719, %v703
    %v928 = vpack.c.b16 %v720, %v704
    %v929 = vpack.c.b16 %v737, %v721
    %v930 = vpack.c.b16 %v738, %v722
    %v931 = vpack.c.b16 %v739, %v723
    %v932 = vpack.c.b16 %v740, %v724
    %v933 = vpack.c.b16 %v741, %v725
    %v934 = vpack.c.b16 %v742, %v726
    %v935 = vpack.c.b16 %v743, %v727
    %v936 = vpack.c.b16 %v744, %v728
    %v937 = vpack.c.b16 %v745, %v729
    %v938 = vpack.c.b16 %v746, %v730
    %v939 = vpack.c.b16 %v747, %v731
    %v940 = vpack.c.b16 %v748, %v732
    %v941 = vpack.c.b16 %v749, %v733
    %v942 = vpack.c.b16 %v750, %v734
    %v943 = vpack.c.b16 %v751, %v735
    %v944 = vpack.c.b16 %v752, %v736
    %v945 = vpack.c.b16 %v769, %v753
    %v946 = vpack.c.b16 %v770, %v754
    %v947 = vpack.c.b16 %v771, %v755
    %v948 = vpack.c.b16 %v772, %v756
    %v949 = vpack.c.b16 %v773, %v757
    %v950 = vpack.c.b16 %v774, %v758
    %v951 = vpack.c.b16 %v775, %v759
    %v952 = vpack.c.b16 %v776, %v760
    %v953 = vpack.c.b16 %v777, %v761
    %v954 = vpack.c.b16 %v778, %v762
    %v955 = vpack.c.b16 %v779, %v763
    %v956 = vpack.c.b16 %v780, %v764
    %v957 = vpack.c.b16 %v781, %v765
    %v958 = vpack.c.b16 %v782, %v766
    %v959 = vpack.c.b16 %v783, %v767
    %v960 = vpack.c.b16 %v784, %v768
    %v961 = vpack.c.b16 %v801, %v785
    %v962 = vpack.c.b16 %v802, %v786
    %v963 = vpack.c.b16 %v803, %v787
    %v964 = vpack.c.b16 %v804, %v788
    %v965 = vpack.c.b16 %v805, %v789
    %v966 = vpack.c.b16 %v806, %v790
    %v967 = vpack.c.b16 %v807, %v791
    %v968 = vpack.c.b16 %v808, %v792
    %v969 = vpack.c.b16 %v809, %v793
    %v970 = vpack.c.b16 %v810, %v794
    %v971 = vpack.c.b16 %v811, %v795
    %v972 = vpack.c.b16 %v812, %v796
    %v973 = vpack.c.b16 %v813, %v797
    %v974 = vpack.c.b16 %v814, %v798
    %v975 = vpack.c.b16 %v815, %v799
    %v976 = vpack.c.b16 %v816, %v800
    %v977 = vpack.c.b16 %v833, %v817
    %v978 = vpack.c.b16 %v834, %v818
    %v979 = vpack.c.b16 %v835, %v819
    %v980 = vpack.c.b16 %v836, %v820
    %v981 = vpack.c.b16 %v837, %v821
    %v982 = vpack.c.b16 %v838, %v822
    %v983 = vpack.c.b16 %v839, %v823
    %v984 = vpack.c.b16 %v840, %v824
    %v985 = vpack.c.b16 %v841, %v825
    %v986 = vpack.c.b16 %v842, %v826
    %v987 = vpack.c.b16 %v843, %v827
    %v988 = vpack.c.b16 %v844, %v828
    %v989 = vpack.c.b16 %v845, %v829
    %v990 = vpack.c.b16 %v846, %v830
    %v991 = vpack.c.b16 %v847, %v831
    %v992 = vpack.c.b16 %v848, %v832
    %v993 = vpack.c.b16 %v865, %v849
    %v994 = vpack.c.b16 %v866, %v850
    %v995 = vpack.c.b16 %v867, %v851
    %v996 = vpack.c.b16 %v868, %v852
    %v997 = vpack.c.b16 %v869, %v853
    %v998 = vpack.c.b16 %v870, %v854
    %v999 = vpack.c.b16 %v871, %v855
    %v1000 = vpack.c.b16 %v872, %v856
    %v1001 = vpack.c.b16 %v873, %v857
    %v1002 = vpack.c.b16 %v874, %v858
    %v1003 = vpack.c.b16 %v875, %v859
    %v1004 = vpack.c.b16 %v876, %v860
    %v1005 = vpack.c.b16 %v877, %v861
    %v1006 = vpack.c.b16 %v878, %v862
    %v1007 = vpack.c.b16 %v879, %v863
    %v1008 = vpack.c.b16 %v880, %v864
    %1137 = vmatpush.bf16.msra.mxu0 %v993
    %1138 = vmatpush.bf16.msra.mxu0 %v977
    %1139 = vmatpush.bf16.msra.mxu0 %v961
    %1140 = vmatpush.bf16.msra.mxu0 %v945
    %1141 = vmatpush.bf16.msra.mxu0 %v929
    %1142 = vmatpush.bf16.msra.mxu0 %v913
    %1143 = vmatpush.bf16.msra.mxu0 %v897
    %1144 = vmatpush.bf16.msra.mxu0 %v881
    %1145 = vmatmul.bf16.gmra.mxu0 %v433
    %v1146 = vpop.f32.mrf.mxu0
    %v1147 = vadd.f32 %v273, %v1146
    %v1148 = vpop.f32.mrf.mxu0
    %v1149 = vadd.f32 %v273, %v1148
    %1150 = vmatmul.bf16.gmra.mxu0 %v434
    %v1151 = vpop.f32.mrf.mxu0
    %v1152 = vadd.f32 %v273, %v1151
    %v1153 = vpop.f32.mrf.mxu0
    %v1154 = vadd.f32 %v273, %v1153
    %1155 = vmatmul.bf16.gmra.mxu0 %v435
    %v1156 = vpop.f32.mrf.mxu0
    %v1157 = vadd.f32 %v273, %v1156
    %v1158 = vpop.f32.mrf.mxu0
    %v1159 = vadd.f32 %v273, %v1158
    %1160 = vmatmul.bf16.gmra.mxu0 %v436
    %v1161 = vpop.f32.mrf.mxu0
    %v1162 = vadd.f32 %v273, %v1161
    %v1163 = vpop.f32.mrf.mxu0
    %v1164 = vadd.f32 %v273, %v1163
    %1165 = vmatmul.bf16.gmra.mxu0 %v437
    %v1166 = vpop.f32.mrf.mxu0
    %v1167 = vadd.f32 %v273, %v1166
    %v1168 = vpop.f32.mrf.mxu0
    %v1169 = vadd.f32 %v273, %v1168
    %1170 = vmatmul.bf16.gmra.mxu0 %v438
    %v1171 = vpop.f32.mrf.mxu0
    %v1172 = vadd.f32 %v273, %v1171
    %v1173 = vpop.f32.mrf.mxu0
    %v1174 = vadd.f32 %v273, %v1173
    %1175 = vmatmul.bf16.gmra.mxu0 %v439
    %v1176 = vpop.f32.mrf.mxu0
    %v1177 = vadd.f32 %v273, %v1176
    %v1178 = vpop.f32.mrf.mxu0
    %v1179 = vadd.f32 %v273, %v1178
    %1180 = vmatmul.bf16.gmra.mxu0 %v440
    %v1181 = vpop.f32.mrf.mxu0
    %v1182 = vadd.f32 %v273, %v1181
    %v1183 = vpop.f32.mrf.mxu0
    %v1184 = vadd.f32 %v273, %v1183
    %1185 = vmatmul.bf16.gmra.mxu0 %v441
    %v1186 = vpop.f32.mrf.mxu0
    %v1187 = vadd.f32 %v273, %v1186
    %v1188 = vpop.f32.mrf.mxu0
    %v1189 = vadd.f32 %v273, %v1188
    %1190 = vmatmul.bf16.gmra.mxu0 %v442
    %v1191 = vpop.f32.mrf.mxu0
    %v1192 = vadd.f32 %v273, %v1191
    %v1193 = vpop.f32.mrf.mxu0
    %v1194 = vadd.f32 %v273, %v1193
    %1195 = vmatmul.bf16.gmra.mxu0 %v443
    %v1196 = vpop.f32.mrf.mxu0
    %v1197 = vadd.f32 %v273, %v1196
    %v1198 = vpop.f32.mrf.mxu0
    %v1199 = vadd.f32 %v273, %v1198
    %1200 = vmatmul.bf16.gmra.mxu0 %v444
    %v1201 = vpop.f32.mrf.mxu0
    %v1202 = vadd.f32 %v273, %v1201
    %v1203 = vpop.f32.mrf.mxu0
    %v1204 = vadd.f32 %v273, %v1203
    %1205 = vmatmul.bf16.gmra.mxu0 %v445
    %v1206 = vpop.f32.mrf.mxu0
    %v1207 = vadd.f32 %v273, %v1206
    %v1208 = vpop.f32.mrf.mxu0
    %v1209 = vadd.f32 %v273, %v1208
    %1210 = vmatmul.bf16.gmra.mxu0 %v446
    %v1211 = vpop.f32.mrf.mxu0
    %v1212 = vadd.f32 %v273, %v1211
    %v1213 = vpop.f32.mrf.mxu0
    %v1214 = vadd.f32 %v273, %v1213
    %1215 = vmatmul.bf16.gmra.mxu0 %v447
    %v1216 = vpop.f32.mrf.mxu0
    %v1217 = vadd.f32 %v273, %v1216
    %v1218 = vpop.f32.mrf.mxu0
    %v1219 = vadd.f32 %v273, %v1218
    %1220 = vmatmul.bf16.gmra.mxu0 %v448
    %v1221 = vpop.f32.mrf.mxu0
    %v1222 = vadd.f32 %v273, %v1221
    %v1223 = vpop.f32.mrf.mxu0
    %v1224 = vadd.f32 %v273, %v1223
    %1225 = vmatmul.bf16.gmra.mxu0 %v449
    %v1226 = vpop.f32.mrf.mxu0
    %v1227 = vadd.f32 %v273, %v1226
    %v1228 = vpop.f32.mrf.mxu0
    %v1229 = vadd.f32 %v273, %v1228
    %1230 = vmatmul.bf16.gmra.mxu0 %v450
    %v1231 = vpop.f32.mrf.mxu0
    %v1232 = vadd.f32 %v273, %v1231
    %v1233 = vpop.f32.mrf.mxu0
    %v1234 = vadd.f32 %v273, %v1233
    %1235 = vmatmul.bf16.gmra.mxu0 %v451
    %v1236 = vpop.f32.mrf.mxu0
    %v1237 = vadd.f32 %v273, %v1236
    %v1238 = vpop.f32.mrf.mxu0
    %v1239 = vadd.f32 %v273, %v1238
    %1240 = vmatmul.bf16.gmra.mxu0 %v452
    %v1241 = vpop.f32.mrf.mxu0
    %v1242 = vadd.f32 %v273, %v1241
    %v1243 = vpop.f32.mrf.mxu0
    %v1244 = vadd.f32 %v273, %v1243
    %1245 = vmatmul.bf16.gmra.mxu0 %v453
    %v1246 = vpop.f32.mrf.mxu0
    %v1247 = vadd.f32 %v273, %v1246
    %v1248 = vpop.f32.mrf.mxu0
    %v1249 = vadd.f32 %v273, %v1248
    %1250 = vmatmul.bf16.gmra.mxu0 %v454
    %v1251 = vpop.f32.mrf.mxu0
    %v1252 = vadd.f32 %v273, %v1251
    %v1253 = vpop.f32.mrf.mxu0
    %v1254 = vadd.f32 %v273, %v1253
    %1255 = vmatmul.bf16.gmra.mxu0 %v455
    %v1256 = vpop.f32.mrf.mxu0
    %v1257 = vadd.f32 %v273, %v1256
    %v1258 = vpop.f32.mrf.mxu0
    %v1259 = vadd.f32 %v273, %v1258
    %1260 = vmatmul.bf16.gmra.mxu0 %v456
    %v1261 = vpop.f32.mrf.mxu0
    %v1262 = vadd.f32 %v273, %v1261
    %v1263 = vpop.f32.mrf.mxu0
    %v1264 = vadd.f32 %v273, %v1263
    %1265 = vmatmul.bf16.gmra.mxu0 %v457
    %v1266 = vpop.f32.mrf.mxu0
    %v1267 = vadd.f32 %v273, %v1266
    %v1268 = vpop.f32.mrf.mxu0
    %v1269 = vadd.f32 %v273, %v1268
    %1270 = vmatmul.bf16.gmra.mxu0 %v458
    %v1271 = vpop.f32.mrf.mxu0
    %v1272 = vadd.f32 %v273, %v1271
    %v1273 = vpop.f32.mrf.mxu0
    %v1274 = vadd.f32 %v273, %v1273
    %1275 = vmatmul.bf16.gmra.mxu0 %v459
    %v1276 = vpop.f32.mrf.mxu0
    %v1277 = vadd.f32 %v273, %v1276
    %v1278 = vpop.f32.mrf.mxu0
    %v1279 = vadd.f32 %v273, %v1278
    %1280 = vmatmul.bf16.gmra.mxu0 %v460
    %v1281 = vpop.f32.mrf.mxu0
    %v1282 = vadd.f32 %v273, %v1281
    %v1283 = vpop.f32.mrf.mxu0
    %v1284 = vadd.f32 %v273, %v1283
    %1285 = vmatmul.bf16.gmra.mxu0 %v461
    %v1286 = vpop.f32.mrf.mxu0
    %v1287 = vadd.f32 %v273, %v1286
    %v1288 = vpop.f32.mrf.mxu0
    %v1289 = vadd.f32 %v273, %v1288
    %1290 = vmatmul.bf16.gmra.mxu0 %v462
    %v1291 = vpop.f32.mrf.mxu0
    %v1292 = vadd.f32 %v273, %v1291
    %v1293 = vpop.f32.mrf.mxu0
    %v1294 = vadd.f32 %v273, %v1293
    %1295 = vmatmul.bf16.gmra.mxu0 %v463
    %v1296 = vpop.f32.mrf.mxu0
    %v1297 = vadd.f32 %v273, %v1296
    %v1298 = vpop.f32.mrf.mxu0
    %v1299 = vadd.f32 %v273, %v1298
    %1300 = vmatmul.bf16.gmra.mxu0 %v464
    %v1301 = vpop.f32.mrf.mxu0
    %v1302 = vadd.f32 %v273, %v1301
    %v1303 = vpop.f32.mrf.mxu0
    %v1304 = vadd.f32 %v273, %v1303
    %1305 = vdwg.mxu0
    %1306 = vmatpush.bf16.msra.mxu0 %v994
    %1307 = vmatpush.bf16.msra.mxu0 %v978
    %1308 = vmatpush.bf16.msra.mxu0 %v962
    %1309 = vmatpush.bf16.msra.mxu0 %v946
    %1310 = vmatpush.bf16.msra.mxu0 %v930
    %1311 = vmatpush.bf16.msra.mxu0 %v914
    %1312 = vmatpush.bf16.msra.mxu0 %v898
    %1313 = vmatpush.bf16.msra.mxu0 %v882
    %1314 = vmatmul.bf16.gmra.mxu0 %v433
    %v1315 = vpop.f32.mrf.mxu0
    %v1316 = vadd.f32 %v274, %v1315
    %v1317 = vpop.f32.mrf.mxu0
    %v1318 = vadd.f32 %v274, %v1317
    %1319 = vmatmul.bf16.gmra.mxu0 %v434
    %v1320 = vpop.f32.mrf.mxu0
    %v1321 = vadd.f32 %v274, %v1320
    %v1322 = vpop.f32.mrf.mxu0
    %v1323 = vadd.f32 %v274, %v1322
    %1324 = vmatmul.bf16.gmra.mxu0 %v435
    %v1325 = vpop.f32.mrf.mxu0
    %v1326 = vadd.f32 %v274, %v1325
    %v1327 = vpop.f32.mrf.mxu0
    %v1328 = vadd.f32 %v274, %v1327
    %1329 = vmatmul.bf16.gmra.mxu0 %v436
    %v1330 = vpop.f32.mrf.mxu0
    %v1331 = vadd.f32 %v274, %v1330
    %v1332 = vpop.f32.mrf.mxu0
    %v1333 = vadd.f32 %v274, %v1332
    %1334 = vmatmul.bf16.gmra.mxu0 %v437
    %v1335 = vpop.f32.mrf.mxu0
    %v1336 = vadd.f32 %v274, %v1335
    %v1337 = vpop.f32.mrf.mxu0
    %v1338 = vadd.f32 %v274, %v1337
    %1339 = vmatmul.bf16.gmra.mxu0 %v438
    %v1340 = vpop.f32.mrf.mxu0
    %v1341 = vadd.f32 %v274, %v1340
    %v1342 = vpop.f32.mrf.mxu0
    %v1343 = vadd.f32 %v274, %v1342
    %1344 = vmatmul.bf16.gmra.mxu0 %v439
    %v1345 = vpop.f32.mrf.mxu0
    %v1346 = vadd.f32 %v274, %v1345
    %v1347 = vpop.f32.mrf.mxu0
    %v1348 = vadd.f32 %v274, %v1347
    %1349 = vmatmul.bf16.gmra.mxu0 %v440
    %v1350 = vpop.f32.mrf.mxu0
    %v1351 = vadd.f32 %v274, %v1350
    %v1352 = vpop.f32.mrf.mxu0
    %v1353 = vadd.f32 %v274, %v1352
    %1354 = vmatmul.bf16.gmra.mxu0 %v441
    %v1355 = vpop.f32.mrf.mxu0
    %v1356 = vadd.f32 %v274, %v1355
    %v1357 = vpop.f32.mrf.mxu0
    %v1358 = vadd.f32 %v274, %v1357
    %1359 = vmatmul.bf16.gmra.mxu0 %v442
    %v1360 = vpop.f32.mrf.mxu0
    %v1361 = vadd.f32 %v274, %v1360
    %v1362 = vpop.f32.mrf.mxu0
    %v1363 = vadd.f32 %v274, %v1362
    %1364 = vmatmul.bf16.gmra.mxu0 %v443
    %v1365 = vpop.f32.mrf.mxu0
    %v1366 = vadd.f32 %v274, %v1365
    %v1367 = vpop.f32.mrf.mxu0
    %v1368 = vadd.f32 %v274, %v1367
    %1369 = vmatmul.bf16.gmra.mxu0 %v444
    %v1370 = vpop.f32.mrf.mxu0
    %v1371 = vadd.f32 %v274, %v1370
    %v1372 = vpop.f32.mrf.mxu0
    %v1373 = vadd.f32 %v274, %v1372
    %1374 = vmatmul.bf16.gmra.mxu0 %v445
    %v1375 = vpop.f32.mrf.mxu0
    %v1376 = vadd.f32 %v274, %v1375
    %v1377 = vpop.f32.mrf.mxu0
    %v1378 = vadd.f32 %v274, %v1377
    %1379 = vmatmul.bf16.gmra.mxu0 %v446
    %v1380 = vpop.f32.mrf.mxu0
    %v1381 = vadd.f32 %v274, %v1380
    %v1382 = vpop.f32.mrf.mxu0
    %v1383 = vadd.f32 %v274, %v1382
    %1384 = vmatmul.bf16.gmra.mxu0 %v447
    %v1385 = vpop.f32.mrf.mxu0
    %v1386 = vadd.f32 %v274, %v1385
    %v1387 = vpop.f32.mrf.mxu0
    %v1388 = vadd.f32 %v274, %v1387
    %1389 = vmatmul.bf16.gmra.mxu0 %v448
    %v1390 = vpop.f32.mrf.mxu0
    %v1391 = vadd.f32 %v274, %v1390
    %v1392 = vpop.f32.mrf.mxu0
    %v1393 = vadd.f32 %v274, %v1392
    %1394 = vmatmul.bf16.gmra.mxu0 %v449
    %v1395 = vpop.f32.mrf.mxu0
    %v1396 = vadd.f32 %v274, %v1395
    %v1397 = vpop.f32.mrf.mxu0
    %v1398 = vadd.f32 %v274, %v1397
    %1399 = vmatmul.bf16.gmra.mxu0 %v450
    %v1400 = vpop.f32.mrf.mxu0
    %v1401 = vadd.f32 %v274, %v1400
    %v1402 = vpop.f32.mrf.mxu0
    %v1403 = vadd.f32 %v274, %v1402
    %1404 = vmatmul.bf16.gmra.mxu0 %v451
    %v1405 = vpop.f32.mrf.mxu0
    %v1406 = vadd.f32 %v274, %v1405
    %v1407 = vpop.f32.mrf.mxu0
    %v1408 = vadd.f32 %v274, %v1407
    %1409 = vmatmul.bf16.gmra.mxu0 %v452
    %v1410 = vpop.f32.mrf.mxu0
    %v1411 = vadd.f32 %v274, %v1410
    %v1412 = vpop.f32.mrf.mxu0
    %v1413 = vadd.f32 %v274, %v1412
    %1414 = vmatmul.bf16.gmra.mxu0 %v453
    %v1415 = vpop.f32.mrf.mxu0
    %v1416 = vadd.f32 %v274, %v1415
    %v1417 = vpop.f32.mrf.mxu0
    %v1418 = vadd.f32 %v274, %v1417
    %1419 = vmatmul.bf16.gmra.mxu0 %v454
    %v1420 = vpop.f32.mrf.mxu0
    %v1421 = vadd.f32 %v274, %v1420
    %v1422 = vpop.f32.mrf.mxu0
    %v1423 = vadd.f32 %v274, %v1422
    %1424 = vmatmul.bf16.gmra.mxu0 %v455
    %v1425 = vpop.f32.mrf.mxu0
    %v1426 = vadd.f32 %v274, %v1425
    %v1427 = vpop.f32.mrf.mxu0
    %v1428 = vadd.f32 %v274, %v1427
    %1429 = vmatmul.bf16.gmra.mxu0 %v456
    %v1430 = vpop.f32.mrf.mxu0
    %v1431 = vadd.f32 %v274, %v1430
    %v1432 = vpop.f32.mrf.mxu0
    %v1433 = vadd.f32 %v274, %v1432
    %1434 = vmatmul.bf16.gmra.mxu0 %v457
    %v1435 = vpop.f32.mrf.mxu0
    %v1436 = vadd.f32 %v274, %v1435
    %v1437 = vpop.f32.mrf.mxu0
    %v1438 = vadd.f32 %v274, %v1437
    %1439 = vmatmul.bf16.gmra.mxu0 %v458
    %v1440 = vpop.f32.mrf.mxu0
    %v1441 = vadd.f32 %v274, %v1440
    %v1442 = vpop.f32.mrf.mxu0
    %v1443 = vadd.f32 %v274, %v1442
    %1444 = vmatmul.bf16.gmra.mxu0 %v459
    %v1445 = vpop.f32.mrf.mxu0
    %v1446 = vadd.f32 %v274, %v1445
    %v1447 = vpop.f32.mrf.mxu0
    %v1448 = vadd.f32 %v274, %v1447
    %1449 = vmatmul.bf16.gmra.mxu0 %v460
    %v1450 = vpop.f32.mrf.mxu0
    %v1451 = vadd.f32 %v274, %v1450
    %v1452 = vpop.f32.mrf.mxu0
    %v1453 = vadd.f32 %v274, %v1452
    %1454 = vmatmul.bf16.gmra.mxu0 %v461
    %v1455 = vpop.f32.mrf.mxu0
    %v1456 = vadd.f32 %v274, %v1455
    %v1457 = vpop.f32.mrf.mxu0
    %v1458 = vadd.f32 %v274, %v1457
    %1459 = vmatmul.bf16.gmra.mxu0 %v462
    %v1460 = vpop.f32.mrf.mxu0
    %v1461 = vadd.f32 %v274, %v1460
    %v1462 = vpop.f32.mrf.mxu0
    %v1463 = vadd.f32 %v274, %v1462
    %1464 = vmatmul.bf16.gmra.mxu0 %v463
    %v1465 = vpop.f32.mrf.mxu0
    %v1466 = vadd.f32 %v274, %v1465
    %v1467 = vpop.f32.mrf.mxu0
    %v1468 = vadd.f32 %v274, %v1467
    %1469 = vmatmul.bf16.gmra.mxu0 %v464
    %v1470 = vpop.f32.mrf.mxu0
    %v1471 = vadd.f32 %v274, %v1470
    %v1472 = vpop.f32.mrf.mxu0
    %v1473 = vadd.f32 %v274, %v1472
    %1474 = vdwg.mxu0
    %1475 = vmatpush.bf16.msra.mxu0 %v995
    %1476 = vmatpush.bf16.msra.mxu0 %v979
    %1477 = vmatpush.bf16.msra.mxu0 %v963
    %1478 = vmatpush.bf16.msra.mxu0 %v947
    %1479 = vmatpush.bf16.msra.mxu0 %v931
    %1480 = vmatpush.bf16.msra.mxu0 %v915
    %1481 = vmatpush.bf16.msra.mxu0 %v899
    %1482 = vmatpush.bf16.msra.mxu0 %v883
    %1483 = vmatmul.bf16.gmra.mxu0 %v433
    %v1484 = vpop.f32.mrf.mxu0
    %v1485 = vadd.f32 %v275, %v1484
    %v1486 = vpop.f32.mrf.mxu0
    %v1487 = vadd.f32 %v275, %v1486
    %1488 = vmatmul.bf16.gmra.mxu0 %v434
    %v1489 = vpop.f32.mrf.mxu0
    %v1490 = vadd.f32 %v275, %v1489
    %v1491 = vpop.f32.mrf.mxu0
    %v1492 = vadd.f32 %v275, %v1491
    %1493 = vmatmul.bf16.gmra.mxu0 %v435
    %v1494 = vpop.f32.mrf.mxu0
    %v1495 = vadd.f32 %v275, %v1494
    %v1496 = vpop.f32.mrf.mxu0
    %v1497 = vadd.f32 %v275, %v1496
    %1498 = vmatmul.bf16.gmra.mxu0 %v436
    %v1499 = vpop.f32.mrf.mxu0
    %v1500 = vadd.f32 %v275, %v1499
    %v1501 = vpop.f32.mrf.mxu0
    %v1502 = vadd.f32 %v275, %v1501
    %1503 = vmatmul.bf16.gmra.mxu0 %v437
    %v1504 = vpop.f32.mrf.mxu0
    %v1505 = vadd.f32 %v275, %v1504
    %v1506 = vpop.f32.mrf.mxu0
    %v1507 = vadd.f32 %v275, %v1506
    %1508 = vmatmul.bf16.gmra.mxu0 %v438
    %v1509 = vpop.f32.mrf.mxu0
    %v1510 = vadd.f32 %v275, %v1509
    %v1511 = vpop.f32.mrf.mxu0
    %v1512 = vadd.f32 %v275, %v1511
    %1513 = vmatmul.bf16.gmra.mxu0 %v439
    %v1514 = vpop.f32.mrf.mxu0
    %v1515 = vadd.f32 %v275, %v1514
    %v1516 = vpop.f32.mrf.mxu0
    %v1517 = vadd.f32 %v275, %v1516
    %1518 = vmatmul.bf16.gmra.mxu0 %v440
    %v1519 = vpop.f32.mrf.mxu0
    %v1520 = vadd.f32 %v275, %v1519
    %v1521 = vpop.f32.mrf.mxu0
    %v1522 = vadd.f32 %v275, %v1521
    %1523 = vmatmul.bf16.gmra.mxu0 %v441
    %v1524 = vpop.f32.mrf.mxu0
    %v1525 = vadd.f32 %v275, %v1524
    %v1526 = vpop.f32.mrf.mxu0
    %v1527 = vadd.f32 %v275, %v1526
    %1528 = vmatmul.bf16.gmra.mxu0 %v442
    %v1529 = vpop.f32.mrf.mxu0
    %v1530 = vadd.f32 %v275, %v1529
    %v1531 = vpop.f32.mrf.mxu0
    %v1532 = vadd.f32 %v275, %v1531
    %1533 = vmatmul.bf16.gmra.mxu0 %v443
    %v1534 = vpop.f32.mrf.mxu0
    %v1535 = vadd.f32 %v275, %v1534
    %v1536 = vpop.f32.mrf.mxu0
    %v1537 = vadd.f32 %v275, %v1536
    %1538 = vmatmul.bf16.gmra.mxu0 %v444
    %v1539 = vpop.f32.mrf.mxu0
    %v1540 = vadd.f32 %v275, %v1539
    %v1541 = vpop.f32.mrf.mxu0
    %v1542 = vadd.f32 %v275, %v1541
    %1543 = vmatmul.bf16.gmra.mxu0 %v445
    %v1544 = vpop.f32.mrf.mxu0
    %v1545 = vadd.f32 %v275, %v1544
    %v1546 = vpop.f32.mrf.mxu0
    %v1547 = vadd.f32 %v275, %v1546
    %1548 = vmatmul.bf16.gmra.mxu0 %v446
    %v1549 = vpop.f32.mrf.mxu0
    %v1550 = vadd.f32 %v275, %v1549
    %v1551 = vpop.f32.mrf.mxu0
    %v1552 = vadd.f32 %v275, %v1551
    %1553 = vmatmul.bf16.gmra.mxu0 %v447
    %v1554 = vpop.f32.mrf.mxu0
    %v1555 = vadd.f32 %v275, %v1554
    %v1556 = vpop.f32.mrf.mxu0
    %v1557 = vadd.f32 %v275, %v1556
    %1558 = vmatmul.bf16.gmra.mxu0 %v448
    %v1559 = vpop.f32.mrf.mxu0
    %v1560 = vadd.f32 %v275, %v1559
    %v1561 = vpop.f32.mrf.mxu0
    %v1562 = vadd.f32 %v275, %v1561
    %1563 = vmatmul.bf16.gmra.mxu0 %v449
    %v1564 = vpop.f32.mrf.mxu0
    %v1565 = vadd.f32 %v275, %v1564
    %v1566 = vpop.f32.mrf.mxu0
    %v1567 = vadd.f32 %v275, %v1566
    %1568 = vmatmul.bf16.gmra.mxu0 %v450
    %v1569 = vpop.f32.mrf.mxu0
    %v1570 = vadd.f32 %v275, %v1569
    %v1571 = vpop.f32.mrf.mxu0
    %v1572 = vadd.f32 %v275, %v1571
    %1573 = vmatmul.bf16.gmra.mxu0 %v451
    %v1574 = vpop.f32.mrf.mxu0
    %v1575 = vadd.f32 %v275, %v1574
    %v1576 = vpop.f32.mrf.mxu0
    %v1577 = vadd.f32 %v275, %v1576
    %1578 = vmatmul.bf16.gmra.mxu0 %v452
    %v1579 = vpop.f32.mrf.mxu0
    %v1580 = vadd.f32 %v275, %v1579
    %v1581 = vpop.f32.mrf.mxu0
    %v1582 = vadd.f32 %v275, %v1581
    %1583 = vmatmul.bf16.gmra.mxu0 %v453
    %v1584 = vpop.f32.mrf.mxu0
    %v1585 = vadd.f32 %v275, %v1584
    %v1586 = vpop.f32.mrf.mxu0
    %v1587 = vadd.f32 %v275, %v1586
    %1588 = vmatmul.bf16.gmra.mxu0 %v454
    %v1589 = vpop.f32.mrf.mxu0
    %v1590 = vadd.f32 %v275, %v1589
    %v1591 = vpop.f32.mrf.mxu0
    %v1592 = vadd.f32 %v275, %v1591
    %1593 = vmatmul.bf16.gmra.mxu0 %v455
    %v1594 = vpop.f32.mrf.mxu0
    %v1595 = vadd.f32 %v275, %v1594
    %v1596 = vpop.f32.mrf.mxu0
    %v1597 = vadd.f32 %v275, %v1596
    %1598 = vmatmul.bf16.gmra.mxu0 %v456
    %v1599 = vpop.f32.mrf.mxu0
    %v1600 = vadd.f32 %v275, %v1599
    %v1601 = vpop.f32.mrf.mxu0
    %v1602 = vadd.f32 %v275, %v1601
    %1603 = vmatmul.bf16.gmra.mxu0 %v457
    %v1604 = vpop.f32.mrf.mxu0
    %v1605 = vadd.f32 %v275, %v1604
    %v1606 = vpop.f32.mrf.mxu0
    %v1607 = vadd.f32 %v275, %v1606
    %1608 = vmatmul.bf16.gmra.mxu0 %v458
    %v1609 = vpop.f32.mrf.mxu0
    %v1610 = vadd.f32 %v275, %v1609
    %v1611 = vpop.f32.mrf.mxu0
    %v1612 = vadd.f32 %v275, %v1611
    %1613 = vmatmul.bf16.gmra.mxu0 %v459
    %v1614 = vpop.f32.mrf.mxu0
    %v1615 = vadd.f32 %v275, %v1614
    %v1616 = vpop.f32.mrf.mxu0
    %v1617 = vadd.f32 %v275, %v1616
    %1618 = vmatmul.bf16.gmra.mxu0 %v460
    %v1619 = vpop.f32.mrf.mxu0
    %v1620 = vadd.f32 %v275, %v1619
    %v1621 = vpop.f32.mrf.mxu0
    %v1622 = vadd.f32 %v275, %v1621
    %1623 = vmatmul.bf16.gmra.mxu0 %v461
    %v1624 = vpop.f32.mrf.mxu0
    %v1625 = vadd.f32 %v275, %v1624
    %v1626 = vpop.f32.mrf.mxu0
    %v1627 = vadd.f32 %v275, %v1626
    %1628 = vmatmul.bf16.gmra.mxu0 %v462
    %v1629 = vpop.f32.mrf.mxu0
    %v1630 = vadd.f32 %v275, %v1629
    %v1631 = vpop.f32.mrf.mxu0
    %v1632 = vadd.f32 %v275, %v1631
    %1633 = vmatmul.bf16.gmra.mxu0 %v463
    %v1634 = vpop.f32.mrf.mxu0
    %v1635 = vadd.f32 %v275, %v1634
    %v1636 = vpop.f32.mrf.mxu0
    %v1637 = vadd.f32 %v275, %v1636
    %1638 = vmatmul.bf16.gmra.mxu0 %v464
    %v1639 = vpop.f32.mrf.mxu0
    %v1640 = vadd.f32 %v275, %v1639
    %v1641 = vpop.f32.mrf.mxu0
    %v1642 = vadd.f32 %v275, %v1641
    %1643 = vdwg.mxu0
    %1644 = vmatpush.bf16.msra.mxu0 %v996
    %1645 = vmatpush.bf16.msra.mxu0 %v980
    %1646 = vmatpush.bf16.msra.mxu0 %v964
    %1647 = vmatpush.bf16.msra.mxu0 %v948
    %1648 = vmatpush.bf16.msra.mxu0 %v932
    %1649 = vmatpush.bf16.msra.mxu0 %v916
    %1650 = vmatpush.bf16.msra.mxu0 %v900
    %1651 = vmatpush.bf16.msra.mxu0 %v884
    %1652 = vmatmul.bf16.gmra.mxu0 %v433
    %v1653 = vpop.f32.mrf.mxu0
    %v1654 = vadd.f32 %v276, %v1653
    %v1655 = vpop.f32.mrf.mxu0
    %v1656 = vadd.f32 %v276, %v1655
    %1657 = vmatmul.bf16.gmra.mxu0 %v434
    %v1658 = vpop.f32.mrf.mxu0
    %v1659 = vadd.f32 %v276, %v1658
    %v1660 = vpop.f32.mrf.mxu0
    %v1661 = vadd.f32 %v276, %v1660
    %1662 = vmatmul.bf16.gmra.mxu0 %v435
    %v1663 = vpop.f32.mrf.mxu0
    %v1664 = vadd.f32 %v276, %v1663
    %v1665 = vpop.f32.mrf.mxu0
    %v1666 = vadd.f32 %v276, %v1665
    %1667 = vmatmul.bf16.gmra.mxu0 %v436
    %v1668 = vpop.f32.mrf.mxu0
    %v1669 = vadd.f32 %v276, %v1668
    %v1670 = vpop.f32.mrf.mxu0
    %v1671 = vadd.f32 %v276, %v1670
    %1672 = vmatmul.bf16.gmra.mxu0 %v437
    %v1673 = vpop.f32.mrf.mxu0
    %v1674 = vadd.f32 %v276, %v1673
    %v1675 = vpop.f32.mrf.mxu0
    %v1676 = vadd.f32 %v276, %v1675
    %1677 = vmatmul.bf16.gmra.mxu0 %v438
    %v1678 = vpop.f32.mrf.mxu0
    %v1679 = vadd.f32 %v276, %v1678
    %v1680 = vpop.f32.mrf.mxu0
    %v1681 = vadd.f32 %v276, %v1680
    %1682 = vmatmul.bf16.gmra.mxu0 %v439
    %v1683 = vpop.f32.mrf.mxu0
    %v1684 = vadd.f32 %v276, %v1683
    %v1685 = vpop.f32.mrf.mxu0
    %v1686 = vadd.f32 %v276, %v1685
    %1687 = vmatmul.bf16.gmra.mxu0 %v440
    %v1688 = vpop.f32.mrf.mxu0
    %v1689 = vadd.f32 %v276, %v1688
    %v1690 = vpop.f32.mrf.mxu0
    %v1691 = vadd.f32 %v276, %v1690
    %1692 = vmatmul.bf16.gmra.mxu0 %v441
    %v1693 = vpop.f32.mrf.mxu0
    %v1694 = vadd.f32 %v276, %v1693
    %v1695 = vpop.f32.mrf.mxu0
    %v1696 = vadd.f32 %v276, %v1695
    %1697 = vmatmul.bf16.gmra.mxu0 %v442
    %v1698 = vpop.f32.mrf.mxu0
    %v1699 = vadd.f32 %v276, %v1698
    %v1700 = vpop.f32.mrf.mxu0
    %v1701 = vadd.f32 %v276, %v1700
    %1702 = vmatmul.bf16.gmra.mxu0 %v443
    %v1703 = vpop.f32.mrf.mxu0
    %v1704 = vadd.f32 %v276, %v1703
    %v1705 = vpop.f32.mrf.mxu0
    %v1706 = vadd.f32 %v276, %v1705
    %1707 = vmatmul.bf16.gmra.mxu0 %v444
    %v1708 = vpop.f32.mrf.mxu0
    %v1709 = vadd.f32 %v276, %v1708
    %v1710 = vpop.f32.mrf.mxu0
    %v1711 = vadd.f32 %v276, %v1710
    %1712 = vmatmul.bf16.gmra.mxu0 %v445
    %v1713 = vpop.f32.mrf.mxu0
    %v1714 = vadd.f32 %v276, %v1713
    %v1715 = vpop.f32.mrf.mxu0
    %v1716 = vadd.f32 %v276, %v1715
    %1717 = vmatmul.bf16.gmra.mxu0 %v446
    %v1718 = vpop.f32.mrf.mxu0
    %v1719 = vadd.f32 %v276, %v1718
    %v1720 = vpop.f32.mrf.mxu0
    %v1721 = vadd.f32 %v276, %v1720
    %1722 = vmatmul.bf16.gmra.mxu0 %v447
    %v1723 = vpop.f32.mrf.mxu0
    %v1724 = vadd.f32 %v276, %v1723
    %v1725 = vpop.f32.mrf.mxu0
    %v1726 = vadd.f32 %v276, %v1725
    %1727 = vmatmul.bf16.gmra.mxu0 %v448
    %v1728 = vpop.f32.mrf.mxu0
    %v1729 = vadd.f32 %v276, %v1728
    %v1730 = vpop.f32.mrf.mxu0
    %v1731 = vadd.f32 %v276, %v1730
    %1732 = vmatmul.bf16.gmra.mxu0 %v449
    %v1733 = vpop.f32.mrf.mxu0
    %v1734 = vadd.f32 %v276, %v1733
    %v1735 = vpop.f32.mrf.mxu0
    %v1736 = vadd.f32 %v276, %v1735
    %1737 = vmatmul.bf16.gmra.mxu0 %v450
    %v1738 = vpop.f32.mrf.mxu0
    %v1739 = vadd.f32 %v276, %v1738
    %v1740 = vpop.f32.mrf.mxu0
    %v1741 = vadd.f32 %v276, %v1740
    %1742 = vmatmul.bf16.gmra.mxu0 %v451
    %v1743 = vpop.f32.mrf.mxu0
    %v1744 = vadd.f32 %v276, %v1743
    %v1745 = vpop.f32.mrf.mxu0
    %v1746 = vadd.f32 %v276, %v1745
    %1747 = vmatmul.bf16.gmra.mxu0 %v452
    %v1748 = vpop.f32.mrf.mxu0
    %v1749 = vadd.f32 %v276, %v1748
    %v1750 = vpop.f32.mrf.mxu0
    %v1751 = vadd.f32 %v276, %v1750
    %1752 = vmatmul.bf16.gmra.mxu0 %v453
    %v1753 = vpop.f32.mrf.mxu0
    %v1754 = vadd.f32 %v276, %v1753
    %v1755 = vpop.f32.mrf.mxu0
    %v1756 = vadd.f32 %v276, %v1755
    %1757 = vmatmul.bf16.gmra.mxu0 %v454
    %v1758 = vpop.f32.mrf.mxu0
    %v1759 = vadd.f32 %v276, %v1758
    %v1760 = vpop.f32.mrf.mxu0
    %v1761 = vadd.f32 %v276, %v1760
    %1762 = vmatmul.bf16.gmra.mxu0 %v455
    %v1763 = vpop.f32.mrf.mxu0
    %v1764 = vadd.f32 %v276, %v1763
    %v1765 = vpop.f32.mrf.mxu0
    %v1766 = vadd.f32 %v276, %v1765
    %1767 = vmatmul.bf16.gmra.mxu0 %v456
    %v1768 = vpop.f32.mrf.mxu0
    %v1769 = vadd.f32 %v276, %v1768
    %v1770 = vpop.f32.mrf.mxu0
    %v1771 = vadd.f32 %v276, %v1770
    %1772 = vmatmul.bf16.gmra.mxu0 %v457
    %v1773 = vpop.f32.mrf.mxu0
    %v1774 = vadd.f32 %v276, %v1773
    %v1775 = vpop.f32.mrf.mxu0
    %v1776 = vadd.f32 %v276, %v1775
    %1777 = vmatmul.bf16.gmra.mxu0 %v458
    %v1778 = vpop.f32.mrf.mxu0
    %v1779 = vadd.f32 %v276, %v1778
    %v1780 = vpop.f32.mrf.mxu0
    %v1781 = vadd.f32 %v276, %v1780
    %1782 = vmatmul.bf16.gmra.mxu0 %v459
    %v1783 = vpop.f32.mrf.mxu0
    %v1784 = vadd.f32 %v276, %v1783
    %v1785 = vpop.f32.mrf.mxu0
    %v1786 = vadd.f32 %v276, %v1785
    %1787 = vmatmul.bf16.gmra.mxu0 %v460
    %v1788 = vpop.f32.mrf.mxu0
    %v1789 = vadd.f32 %v276, %v1788
    %v1790 = vpop.f32.mrf.mxu0
    %v1791 = vadd.f32 %v276, %v1790
    %1792 = vmatmul.bf16.gmra.mxu0 %v461
    %v1793 = vpop.f32.mrf.mxu0
    %v1794 = vadd.f32 %v276, %v1793
    %v1795 = vpop.f32.mrf.mxu0
    %v1796 = vadd.f32 %v276, %v1795
    %1797 = vmatmul.bf16.gmra.mxu0 %v462
    %v1798 = vpop.f32.mrf.mxu0
    %v1799 = vadd.f32 %v276, %v1798
    %v1800 = vpop.f32.mrf.mxu0
    %v1801 = vadd.f32 %v276, %v1800
    %1802 = vmatmul.bf16.gmra.mxu0 %v463
    %v1803 = vpop.f32.mrf.mxu0
    %v1804 = vadd.f32 %v276, %v1803
    %v1805 = vpop.f32.mrf.mxu0
    %v1806 = vadd.f32 %v276, %v1805
    %1807 = vmatmul.bf16.gmra.mxu0 %v464
    %v1808 = vpop.f32.mrf.mxu0
    %v1809 = vadd.f32 %v276, %v1808
    %v1810 = vpop.f32.mrf.mxu0
    %v1811 = vadd.f32 %v276, %v1810
    %1812 = vdwg.mxu0
    %1813 = vmatpush.bf16.msra.mxu0 %v997
    %1814 = vmatpush.bf16.msra.mxu0 %v981
    %1815 = vmatpush.bf16.msra.mxu0 %v965
    %1816 = vmatpush.bf16.msra.mxu0 %v949
    %1817 = vmatpush.bf16.msra.mxu0 %v933
    %1818 = vmatpush.bf16.msra.mxu0 %v917
    %1819 = vmatpush.bf16.msra.mxu0 %v901
    %1820 = vmatpush.bf16.msra.mxu0 %v885
    %1821 = vmatmul.bf16.gmra.mxu0 %v433
    %v1822 = vpop.f32.mrf.mxu0
    %v1823 = vadd.f32 %v277, %v1822
    %v1824 = vpop.f32.mrf.mxu0
    %v1825 = vadd.f32 %v277, %v1824
    %1826 = vmatmul.bf16.gmra.mxu0 %v434
    %v1827 = vpop.f32.mrf.mxu0
    %v1828 = vadd.f32 %v277, %v1827
    %v1829 = vpop.f32.mrf.mxu0
    %v1830 = vadd.f32 %v277, %v1829
    %1831 = vmatmul.bf16.gmra.mxu0 %v435
    %v1832 = vpop.f32.mrf.mxu0
    %v1833 = vadd.f32 %v277, %v1832
    %v1834 = vpop.f32.mrf.mxu0
    %v1835 = vadd.f32 %v277, %v1834
    %1836 = vmatmul.bf16.gmra.mxu0 %v436
    %v1837 = vpop.f32.mrf.mxu0
    %v1838 = vadd.f32 %v277, %v1837
    %v1839 = vpop.f32.mrf.mxu0
    %v1840 = vadd.f32 %v277, %v1839
    %1841 = vmatmul.bf16.gmra.mxu0 %v437
    %v1842 = vpop.f32.mrf.mxu0
    %v1843 = vadd.f32 %v277, %v1842
    %v1844 = vpop.f32.mrf.mxu0
    %v1845 = vadd.f32 %v277, %v1844
    %1846 = vmatmul.bf16.gmra.mxu0 %v438
    %v1847 = vpop.f32.mrf.mxu0
    %v1848 = vadd.f32 %v277, %v1847
    %v1849 = vpop.f32.mrf.mxu0
    %v1850 = vadd.f32 %v277, %v1849
    %1851 = vmatmul.bf16.gmra.mxu0 %v439
    %v1852 = vpop.f32.mrf.mxu0
    %v1853 = vadd.f32 %v277, %v1852
    %v1854 = vpop.f32.mrf.mxu0
    %v1855 = vadd.f32 %v277, %v1854
    %1856 = vmatmul.bf16.gmra.mxu0 %v440
    %v1857 = vpop.f32.mrf.mxu0
    %v1858 = vadd.f32 %v277, %v1857
    %v1859 = vpop.f32.mrf.mxu0
    %v1860 = vadd.f32 %v277, %v1859
    %1861 = vmatmul.bf16.gmra.mxu0 %v441
    %v1862 = vpop.f32.mrf.mxu0
    %v1863 = vadd.f32 %v277, %v1862
    %v1864 = vpop.f32.mrf.mxu0
    %v1865 = vadd.f32 %v277, %v1864
    %1866 = vmatmul.bf16.gmra.mxu0 %v442
    %v1867 = vpop.f32.mrf.mxu0
    %v1868 = vadd.f32 %v277, %v1867
    %v1869 = vpop.f32.mrf.mxu0
    %v1870 = vadd.f32 %v277, %v1869
    %1871 = vmatmul.bf16.gmra.mxu0 %v443
    %v1872 = vpop.f32.mrf.mxu0
    %v1873 = vadd.f32 %v277, %v1872
    %v1874 = vpop.f32.mrf.mxu0
    %v1875 = vadd.f32 %v277, %v1874
    %1876 = vmatmul.bf16.gmra.mxu0 %v444
    %v1877 = vpop.f32.mrf.mxu0
    %v1878 = vadd.f32 %v277, %v1877
    %v1879 = vpop.f32.mrf.mxu0
    %v1880 = vadd.f32 %v277, %v1879
    %1881 = vmatmul.bf16.gmra.mxu0 %v445
    %v1882 = vpop.f32.mrf.mxu0
    %v1883 = vadd.f32 %v277, %v1882
    %v1884 = vpop.f32.mrf.mxu0
    %v1885 = vadd.f32 %v277, %v1884
    %1886 = vmatmul.bf16.gmra.mxu0 %v446
    %v1887 = vpop.f32.mrf.mxu0
    %v1888 = vadd.f32 %v277, %v1887
    %v1889 = vpop.f32.mrf.mxu0
    %v1890 = vadd.f32 %v277, %v1889
    %1891 = vmatmul.bf16.gmra.mxu0 %v447
    %v1892 = vpop.f32.mrf.mxu0
    %v1893 = vadd.f32 %v277, %v1892
    %v1894 = vpop.f32.mrf.mxu0
    %v1895 = vadd.f32 %v277, %v1894
    %1896 = vmatmul.bf16.gmra.mxu0 %v448
    %v1897 = vpop.f32.mrf.mxu0
    %v1898 = vadd.f32 %v277, %v1897
    %v1899 = vpop.f32.mrf.mxu0
    %v1900 = vadd.f32 %v277, %v1899
    %1901 = vmatmul.bf16.gmra.mxu0 %v449
    %v1902 = vpop.f32.mrf.mxu0
    %v1903 = vadd.f32 %v277, %v1902
    %v1904 = vpop.f32.mrf.mxu0
    %v1905 = vadd.f32 %v277, %v1904
    %1906 = vmatmul.bf16.gmra.mxu0 %v450
    %v1907 = vpop.f32.mrf.mxu0
    %v1908 = vadd.f32 %v277, %v1907
    %v1909 = vpop.f32.mrf.mxu0
    %v1910 = vadd.f32 %v277, %v1909
    %1911 = vmatmul.bf16.gmra.mxu0 %v451
    %v1912 = vpop.f32.mrf.mxu0
    %v1913 = vadd.f32 %v277, %v1912
    %v1914 = vpop.f32.mrf.mxu0
    %v1915 = vadd.f32 %v277, %v1914
    %1916 = vmatmul.bf16.gmra.mxu0 %v452
    %v1917 = vpop.f32.mrf.mxu0
    %v1918 = vadd.f32 %v277, %v1917
    %v1919 = vpop.f32.mrf.mxu0
    %v1920 = vadd.f32 %v277, %v1919
    %1921 = vmatmul.bf16.gmra.mxu0 %v453
    %v1922 = vpop.f32.mrf.mxu0
    %v1923 = vadd.f32 %v277, %v1922
    %v1924 = vpop.f32.mrf.mxu0
    %v1925 = vadd.f32 %v277, %v1924
    %1926 = vmatmul.bf16.gmra.mxu0 %v454
    %v1927 = vpop.f32.mrf.mxu0
    %v1928 = vadd.f32 %v277, %v1927
    %v1929 = vpop.f32.mrf.mxu0
    %v1930 = vadd.f32 %v277, %v1929
    %1931 = vmatmul.bf16.gmra.mxu0 %v455
    %v1932 = vpop.f32.mrf.mxu0
    %v1933 = vadd.f32 %v277, %v1932
    %v1934 = vpop.f32.mrf.mxu0
    %v1935 = vadd.f32 %v277, %v1934
    %1936 = vmatmul.bf16.gmra.mxu0 %v456
    %v1937 = vpop.f32.mrf.mxu0
    %v1938 = vadd.f32 %v277, %v1937
    %v1939 = vpop.f32.mrf.mxu0
    %v1940 = vadd.f32 %v277, %v1939
    %1941 = vmatmul.bf16.gmra.mxu0 %v457
    %v1942 = vpop.f32.mrf.mxu0
    %v1943 = vadd.f32 %v277, %v1942
    %v1944 = vpop.f32.mrf.mxu0
    %v1945 = vadd.f32 %v277, %v1944
    %1946 = vmatmul.bf16.gmra.mxu0 %v458
    %v1947 = vpop.f32.mrf.mxu0
    %v1948 = vadd.f32 %v277, %v1947
    %v1949 = vpop.f32.mrf.mxu0
    %v1950 = vadd.f32 %v277, %v1949
    %1951 = vmatmul.bf16.gmra.mxu0 %v459
    %v1952 = vpop.f32.mrf.mxu0
    %v1953 = vadd.f32 %v277, %v1952
    %v1954 = vpop.f32.mrf.mxu0
    %v1955 = vadd.f32 %v277, %v1954
    %1956 = vmatmul.bf16.gmra.mxu0 %v460
    %v1957 = vpop.f32.mrf.mxu0
    %v1958 = vadd.f32 %v277, %v1957
    %v1959 = vpop.f32.mrf.mxu0
    %v1960 = vadd.f32 %v277, %v1959
    %1961 = vmatmul.bf16.gmra.mxu0 %v461
    %v1962 = vpop.f32.mrf.mxu0
    %v1963 = vadd.f32 %v277, %v1962
    %v1964 = vpop.f32.mrf.mxu0
    %v1965 = vadd.f32 %v277, %v1964
    %1966 = vmatmul.bf16.gmra.mxu0 %v462
    %v1967 = vpop.f32.mrf.mxu0
    %v1968 = vadd.f32 %v277, %v1967
    %v1969 = vpop.f32.mrf.mxu0
    %v1970 = vadd.f32 %v277, %v1969
    %1971 = vmatmul.bf16.gmra.mxu0 %v463
    %v1972 = vpop.f32.mrf.mxu0
    %v1973 = vadd.f32 %v277, %v1972
    %v1974 = vpop.f32.mrf.mxu0
    %v1975 = vadd.f32 %v277, %v1974
    %1976 = vmatmul.bf16.gmra.mxu0 %v464
    %v1977 = vpop.f32.mrf.mxu0
    %v1978 = vadd.f32 %v277, %v1977
    %v1979 = vpop.f32.mrf.mxu0
    %v1980 = vadd.f32 %v277, %v1979
    %1981 = vdwg.mxu0
    %1982 = vmatpush.bf16.msra.mxu0 %v998
    %1983 = vmatpush.bf16.msra.mxu0 %v982
    %1984 = vmatpush.bf16.msra.mxu0 %v966
    %1985 = vmatpush.bf16.msra.mxu0 %v950
    %1986 = vmatpush.bf16.msra.mxu0 %v934
    %1987 = vmatpush.bf16.msra.mxu0 %v918
    %1988 = vmatpush.bf16.msra.mxu0 %v902
    %1989 = vmatpush.bf16.msra.mxu0 %v886
    %1990 = vmatmul.bf16.gmra.mxu0 %v433
    %v1991 = vpop.f32.mrf.mxu0
    %v1992 = vadd.f32 %v278, %v1991
    %v1993 = vpop.f32.mrf.mxu0
    %v1994 = vadd.f32 %v278, %v1993
    %1995 = vmatmul.bf16.gmra.mxu0 %v434
    %v1996 = vpop.f32.mrf.mxu0
    %v1997 = vadd.f32 %v278, %v1996
    %v1998 = vpop.f32.mrf.mxu0
    %v1999 = vadd.f32 %v278, %v1998
    %2000 = vmatmul.bf16.gmra.mxu0 %v435
    %v2001 = vpop.f32.mrf.mxu0
    %v2002 = vadd.f32 %v278, %v2001
    %v2003 = vpop.f32.mrf.mxu0
    %v2004 = vadd.f32 %v278, %v2003
    %2005 = vmatmul.bf16.gmra.mxu0 %v436
    %v2006 = vpop.f32.mrf.mxu0
    %v2007 = vadd.f32 %v278, %v2006
    %v2008 = vpop.f32.mrf.mxu0
    %v2009 = vadd.f32 %v278, %v2008
    %2010 = vmatmul.bf16.gmra.mxu0 %v437
    %v2011 = vpop.f32.mrf.mxu0
    %v2012 = vadd.f32 %v278, %v2011
    %v2013 = vpop.f32.mrf.mxu0
    %v2014 = vadd.f32 %v278, %v2013
    %2015 = vmatmul.bf16.gmra.mxu0 %v438
    %v2016 = vpop.f32.mrf.mxu0
    %v2017 = vadd.f32 %v278, %v2016
    %v2018 = vpop.f32.mrf.mxu0
    %v2019 = vadd.f32 %v278, %v2018
    %2020 = vmatmul.bf16.gmra.mxu0 %v439
    %v2021 = vpop.f32.mrf.mxu0
    %v2022 = vadd.f32 %v278, %v2021
    %v2023 = vpop.f32.mrf.mxu0
    %v2024 = vadd.f32 %v278, %v2023
    %2025 = vmatmul.bf16.gmra.mxu0 %v440
    %v2026 = vpop.f32.mrf.mxu0
    %v2027 = vadd.f32 %v278, %v2026
    %v2028 = vpop.f32.mrf.mxu0
    %v2029 = vadd.f32 %v278, %v2028
    %2030 = vmatmul.bf16.gmra.mxu0 %v441
    %v2031 = vpop.f32.mrf.mxu0
    %v2032 = vadd.f32 %v278, %v2031
    %v2033 = vpop.f32.mrf.mxu0
    %v2034 = vadd.f32 %v278, %v2033
    %2035 = vmatmul.bf16.gmra.mxu0 %v442
    %v2036 = vpop.f32.mrf.mxu0
    %v2037 = vadd.f32 %v278, %v2036
    %v2038 = vpop.f32.mrf.mxu0
    %v2039 = vadd.f32 %v278, %v2038
    %2040 = vmatmul.bf16.gmra.mxu0 %v443
    %v2041 = vpop.f32.mrf.mxu0
    %v2042 = vadd.f32 %v278, %v2041
    %v2043 = vpop.f32.mrf.mxu0
    %v2044 = vadd.f32 %v278, %v2043
    %2045 = vmatmul.bf16.gmra.mxu0 %v444
    %v2046 = vpop.f32.mrf.mxu0
    %v2047 = vadd.f32 %v278, %v2046
    %v2048 = vpop.f32.mrf.mxu0
    %v2049 = vadd.f32 %v278, %v2048
    %2050 = vmatmul.bf16.gmra.mxu0 %v445
    %v2051 = vpop.f32.mrf.mxu0
    %v2052 = vadd.f32 %v278, %v2051
    %v2053 = vpop.f32.mrf.mxu0
    %v2054 = vadd.f32 %v278, %v2053
    %2055 = vmatmul.bf16.gmra.mxu0 %v446
    %v2056 = vpop.f32.mrf.mxu0
    %v2057 = vadd.f32 %v278, %v2056
    %v2058 = vpop.f32.mrf.mxu0
    %v2059 = vadd.f32 %v278, %v2058
    %2060 = vmatmul.bf16.gmra.mxu0 %v447
    %v2061 = vpop.f32.mrf.mxu0
    %v2062 = vadd.f32 %v278, %v2061
    %v2063 = vpop.f32.mrf.mxu0
    %v2064 = vadd.f32 %v278, %v2063
    %2065 = vmatmul.bf16.gmra.mxu0 %v448
    %v2066 = vpop.f32.mrf.mxu0
    %v2067 = vadd.f32 %v278, %v2066
    %v2068 = vpop.f32.mrf.mxu0
    %v2069 = vadd.f32 %v278, %v2068
    %2070 = vmatmul.bf16.gmra.mxu0 %v449
    %v2071 = vpop.f32.mrf.mxu0
    %v2072 = vadd.f32 %v278, %v2071
    %v2073 = vpop.f32.mrf.mxu0
    %v2074 = vadd.f32 %v278, %v2073
    %2075 = vmatmul.bf16.gmra.mxu0 %v450
    %v2076 = vpop.f32.mrf.mxu0
    %v2077 = vadd.f32 %v278, %v2076
    %v2078 = vpop.f32.mrf.mxu0
    %v2079 = vadd.f32 %v278, %v2078
    %2080 = vmatmul.bf16.gmra.mxu0 %v451
    %v2081 = vpop.f32.mrf.mxu0
    %v2082 = vadd.f32 %v278, %v2081
    %v2083 = vpop.f32.mrf.mxu0
    %v2084 = vadd.f32 %v278, %v2083
    %2085 = vmatmul.bf16.gmra.mxu0 %v452
    %v2086 = vpop.f32.mrf.mxu0
    %v2087 = vadd.f32 %v278, %v2086
    %v2088 = vpop.f32.mrf.mxu0
    %v2089 = vadd.f32 %v278, %v2088
    %2090 = vmatmul.bf16.gmra.mxu0 %v453
    %v2091 = vpop.f32.mrf.mxu0
    %v2092 = vadd.f32 %v278, %v2091
    %v2093 = vpop.f32.mrf.mxu0
    %v2094 = vadd.f32 %v278, %v2093
    %2095 = vmatmul.bf16.gmra.mxu0 %v454
    %v2096 = vpop.f32.mrf.mxu0
    %v2097 = vadd.f32 %v278, %v2096
    %v2098 = vpop.f32.mrf.mxu0
    %v2099 = vadd.f32 %v278, %v2098
    %2100 = vmatmul.bf16.gmra.mxu0 %v455
    %v2101 = vpop.f32.mrf.mxu0
    %v2102 = vadd.f32 %v278, %v2101
    %v2103 = vpop.f32.mrf.mxu0
    %v2104 = vadd.f32 %v278, %v2103
    %2105 = vmatmul.bf16.gmra.mxu0 %v456
    %v2106 = vpop.f32.mrf.mxu0
    %v2107 = vadd.f32 %v278, %v2106
    %v2108 = vpop.f32.mrf.mxu0
    %v2109 = vadd.f32 %v278, %v2108
    %2110 = vmatmul.bf16.gmra.mxu0 %v457
    %v2111 = vpop.f32.mrf.mxu0
    %v2112 = vadd.f32 %v278, %v2111
    %v2113 = vpop.f32.mrf.mxu0
    %v2114 = vadd.f32 %v278, %v2113
    %2115 = vmatmul.bf16.gmra.mxu0 %v458
    %v2116 = vpop.f32.mrf.mxu0
    %v2117 = vadd.f32 %v278, %v2116
    %v2118 = vpop.f32.mrf.mxu0
    %v2119 = vadd.f32 %v278, %v2118
    %2120 = vmatmul.bf16.gmra.mxu0 %v459
    %v2121 = vpop.f32.mrf.mxu0
    %v2122 = vadd.f32 %v278, %v2121
    %v2123 = vpop.f32.mrf.mxu0
    %v2124 = vadd.f32 %v278, %v2123
    %2125 = vmatmul.bf16.gmra.mxu0 %v460
    %v2126 = vpop.f32.mrf.mxu0
    %v2127 = vadd.f32 %v278, %v2126
    %v2128 = vpop.f32.mrf.mxu0
    %v2129 = vadd.f32 %v278, %v2128
    %2130 = vmatmul.bf16.gmra.mxu0 %v461
    %v2131 = vpop.f32.mrf.mxu0
    %v2132 = vadd.f32 %v278, %v2131
    %v2133 = vpop.f32.mrf.mxu0
    %v2134 = vadd.f32 %v278, %v2133
    %2135 = vmatmul.bf16.gmra.mxu0 %v462
    %v2136 = vpop.f32.mrf.mxu0
    %v2137 = vadd.f32 %v278, %v2136
    %v2138 = vpop.f32.mrf.mxu0
    %v2139 = vadd.f32 %v278, %v2138
    %2140 = vmatmul.bf16.gmra.mxu0 %v463
    %v2141 = vpop.f32.mrf.mxu0
    %v2142 = vadd.f32 %v278, %v2141
    %v2143 = vpop.f32.mrf.mxu0
    %v2144 = vadd.f32 %v278, %v2143
    %2145 = vmatmul.bf16.gmra.mxu0 %v464
    %v2146 = vpop.f32.mrf.mxu0
    %v2147 = vadd.f32 %v278, %v2146
    %v2148 = vpop.f32.mrf.mxu0
    %v2149 = vadd.f32 %v278, %v2148
    %2150 = vdwg.mxu0
    %2151 = vmatpush.bf16.msra.mxu0 %v999
    %2152 = vmatpush.bf16.msra.mxu0 %v983
    %2153 = vmatpush.bf16.msra.mxu0 %v967
    %2154 = vmatpush.bf16.msra.mxu0 %v951
    %2155 = vmatpush.bf16.msra.mxu0 %v935
    %2156 = vmatpush.bf16.msra.mxu0 %v919
    %2157 = vmatpush.bf16.msra.mxu0 %v903
    %2158 = vmatpush.bf16.msra.mxu0 %v887
    %2159 = vmatmul.bf16.gmra.mxu0 %v433
    %v2160 = vpop.f32.mrf.mxu0
    %v2161 = vadd.f32 %v279, %v2160
    %v2162 = vpop.f32.mrf.mxu0
    %v2163 = vadd.f32 %v279, %v2162
    %2164 = vmatmul.bf16.gmra.mxu0 %v434
    %v2165 = vpop.f32.mrf.mxu0
    %v2166 = vadd.f32 %v279, %v2165
    %v2167 = vpop.f32.mrf.mxu0
    %v2168 = vadd.f32 %v279, %v2167
    %2169 = vmatmul.bf16.gmra.mxu0 %v435
    %v2170 = vpop.f32.mrf.mxu0
    %v2171 = vadd.f32 %v279, %v2170
    %v2172 = vpop.f32.mrf.mxu0
    %v2173 = vadd.f32 %v279, %v2172
    %2174 = vmatmul.bf16.gmra.mxu0 %v436
    %v2175 = vpop.f32.mrf.mxu0
    %v2176 = vadd.f32 %v279, %v2175
    %v2177 = vpop.f32.mrf.mxu0
    %v2178 = vadd.f32 %v279, %v2177
    %2179 = vmatmul.bf16.gmra.mxu0 %v437
    %v2180 = vpop.f32.mrf.mxu0
    %v2181 = vadd.f32 %v279, %v2180
    %v2182 = vpop.f32.mrf.mxu0
    %v2183 = vadd.f32 %v279, %v2182
    %2184 = vmatmul.bf16.gmra.mxu0 %v438
    %v2185 = vpop.f32.mrf.mxu0
    %v2186 = vadd.f32 %v279, %v2185
    %v2187 = vpop.f32.mrf.mxu0
    %v2188 = vadd.f32 %v279, %v2187
    %2189 = vmatmul.bf16.gmra.mxu0 %v439
    %v2190 = vpop.f32.mrf.mxu0
    %v2191 = vadd.f32 %v279, %v2190
    %v2192 = vpop.f32.mrf.mxu0
    %v2193 = vadd.f32 %v279, %v2192
    %2194 = vmatmul.bf16.gmra.mxu0 %v440
    %v2195 = vpop.f32.mrf.mxu0
    %v2196 = vadd.f32 %v279, %v2195
    %v2197 = vpop.f32.mrf.mxu0
    %v2198 = vadd.f32 %v279, %v2197
    %2199 = vmatmul.bf16.gmra.mxu0 %v441
    %v2200 = vpop.f32.mrf.mxu0
    %v2201 = vadd.f32 %v279, %v2200
    %v2202 = vpop.f32.mrf.mxu0
    %v2203 = vadd.f32 %v279, %v2202
    %2204 = vmatmul.bf16.gmra.mxu0 %v442
    %v2205 = vpop.f32.mrf.mxu0
    %v2206 = vadd.f32 %v279, %v2205
    %v2207 = vpop.f32.mrf.mxu0
    %v2208 = vadd.f32 %v279, %v2207
    %2209 = vmatmul.bf16.gmra.mxu0 %v443
    %v2210 = vpop.f32.mrf.mxu0
    %v2211 = vadd.f32 %v279, %v2210
    %v2212 = vpop.f32.mrf.mxu0
    %v2213 = vadd.f32 %v279, %v2212
    %2214 = vmatmul.bf16.gmra.mxu0 %v444
    %v2215 = vpop.f32.mrf.mxu0
    %v2216 = vadd.f32 %v279, %v2215
    %v2217 = vpop.f32.mrf.mxu0
    %v2218 = vadd.f32 %v279, %v2217
    %2219 = vmatmul.bf16.gmra.mxu0 %v445
    %v2220 = vpop.f32.mrf.mxu0
    %v2221 = vadd.f32 %v279, %v2220
    %v2222 = vpop.f32.mrf.mxu0
    %v2223 = vadd.f32 %v279, %v2222
    %2224 = vmatmul.bf16.gmra.mxu0 %v446
    %v2225 = vpop.f32.mrf.mxu0
    %v2226 = vadd.f32 %v279, %v2225
    %v2227 = vpop.f32.mrf.mxu0
    %v2228 = vadd.f32 %v279, %v2227
    %2229 = vmatmul.bf16.gmra.mxu0 %v447
    %v2230 = vpop.f32.mrf.mxu0
    %v2231 = vadd.f32 %v279, %v2230
    %v2232 = vpop.f32.mrf.mxu0
    %v2233 = vadd.f32 %v279, %v2232
    %2234 = vmatmul.bf16.gmra.mxu0 %v448
    %v2235 = vpop.f32.mrf.mxu0
    %v2236 = vadd.f32 %v279, %v2235
    %v2237 = vpop.f32.mrf.mxu0
    %v2238 = vadd.f32 %v279, %v2237
    %2239 = vmatmul.bf16.gmra.mxu0 %v449
    %v2240 = vpop.f32.mrf.mxu0
    %v2241 = vadd.f32 %v279, %v2240
    %v2242 = vpop.f32.mrf.mxu0
    %v2243 = vadd.f32 %v279, %v2242
    %2244 = vmatmul.bf16.gmra.mxu0 %v450
    %v2245 = vpop.f32.mrf.mxu0
    %v2246 = vadd.f32 %v279, %v2245
    %v2247 = vpop.f32.mrf.mxu0
    %v2248 = vadd.f32 %v279, %v2247
    %2249 = vmatmul.bf16.gmra.mxu0 %v451
    %v2250 = vpop.f32.mrf.mxu0
    %v2251 = vadd.f32 %v279, %v2250
    %v2252 = vpop.f32.mrf.mxu0
    %v2253 = vadd.f32 %v279, %v2252
    %2254 = vmatmul.bf16.gmra.mxu0 %v452
    %v2255 = vpop.f32.mrf.mxu0
    %v2256 = vadd.f32 %v279, %v2255
    %v2257 = vpop.f32.mrf.mxu0
    %v2258 = vadd.f32 %v279, %v2257
    %2259 = vmatmul.bf16.gmra.mxu0 %v453
    %v2260 = vpop.f32.mrf.mxu0
    %v2261 = vadd.f32 %v279, %v2260
    %v2262 = vpop.f32.mrf.mxu0
    %v2263 = vadd.f32 %v279, %v2262
    %2264 = vmatmul.bf16.gmra.mxu0 %v454
    %v2265 = vpop.f32.mrf.mxu0
    %v2266 = vadd.f32 %v279, %v2265
    %v2267 = vpop.f32.mrf.mxu0
    %v2268 = vadd.f32 %v279, %v2267
    %2269 = vmatmul.bf16.gmra.mxu0 %v455
    %v2270 = vpop.f32.mrf.mxu0
    %v2271 = vadd.f32 %v279, %v2270
    %v2272 = vpop.f32.mrf.mxu0
    %v2273 = vadd.f32 %v279, %v2272
    %2274 = vmatmul.bf16.gmra.mxu0 %v456
    %v2275 = vpop.f32.mrf.mxu0
    %v2276 = vadd.f32 %v279, %v2275
    %v2277 = vpop.f32.mrf.mxu0
    %v2278 = vadd.f32 %v279, %v2277
    %2279 = vmatmul.bf16.gmra.mxu0 %v457
    %v2280 = vpop.f32.mrf.mxu0
    %v2281 = vadd.f32 %v279, %v2280
    %v2282 = vpop.f32.mrf.mxu0
    %v2283 = vadd.f32 %v279, %v2282
    %2284 = vmatmul.bf16.gmra.mxu0 %v458
    %v2285 = vpop.f32.mrf.mxu0
    %v2286 = vadd.f32 %v279, %v2285
    %v2287 = vpop.f32.mrf.mxu0
    %v2288 = vadd.f32 %v279, %v2287
    %2289 = vmatmul.bf16.gmra.mxu0 %v459
    %v2290 = vpop.f32.mrf.mxu0
    %v2291 = vadd.f32 %v279, %v2290
    %v2292 = vpop.f32.mrf.mxu0
    %v2293 = vadd.f32 %v279, %v2292
    %2294 = vmatmul.bf16.gmra.mxu0 %v460
    %v2295 = vpop.f32.mrf.mxu0
    %v2296 = vadd.f32 %v279, %v2295
    %v2297 = vpop.f32.mrf.mxu0
    %v2298 = vadd.f32 %v279, %v2297
    %2299 = vmatmul.bf16.gmra.mxu0 %v461
    %v2300 = vpop.f32.mrf.mxu0
    %v2301 = vadd.f32 %v279, %v2300
    %v2302 = vpop.f32.mrf.mxu0
    %v2303 = vadd.f32 %v279, %v2302
    %2304 = vmatmul.bf16.gmra.mxu0 %v462
    %v2305 = vpop.f32.mrf.mxu0
    %v2306 = vadd.f32 %v279, %v2305
    %v2307 = vpop.f32.mrf.mxu0
    %v2308 = vadd.f32 %v279, %v2307
    %2309 = vmatmul.bf16.gmra.mxu0 %v463
    %v2310 = vpop.f32.mrf.mxu0
    %v2311 = vadd.f32 %v279, %v2310
    %v2312 = vpop.f32.mrf.mxu0
    %v2313 = vadd.f32 %v279, %v2312
    %2314 = vmatmul.bf16.gmra.mxu0 %v464
    %v2315 = vpop.f32.mrf.mxu0
    %v2316 = vadd.f32 %v279, %v2315
    %v2317 = vpop.f32.mrf.mxu0
    %v2318 = vadd.f32 %v279, %v2317
    %2319 = vdwg.mxu0
    %2320 = vmatpush.bf16.msra.mxu0 %v1000
    %2321 = vmatpush.bf16.msra.mxu0 %v984
    %2322 = vmatpush.bf16.msra.mxu0 %v968
    %2323 = vmatpush.bf16.msra.mxu0 %v952
    %2324 = vmatpush.bf16.msra.mxu0 %v936
    %2325 = vmatpush.bf16.msra.mxu0 %v920
    %2326 = vmatpush.bf16.msra.mxu0 %v904
    %2327 = vmatpush.bf16.msra.mxu0 %v888
    %2328 = vmatmul.bf16.gmra.mxu0 %v433
    %v2329 = vpop.f32.mrf.mxu0
    %v2330 = vadd.f32 %v280, %v2329
    %v2331 = vpop.f32.mrf.mxu0
    %v2332 = vadd.f32 %v280, %v2331
    %2333 = vmatmul.bf16.gmra.mxu0 %v434
    %v2334 = vpop.f32.mrf.mxu0
    %v2335 = vadd.f32 %v280, %v2334
    %v2336 = vpop.f32.mrf.mxu0
    %v2337 = vadd.f32 %v280, %v2336
    %2338 = vmatmul.bf16.gmra.mxu0 %v435
    %v2339 = vpop.f32.mrf.mxu0
    %v2340 = vadd.f32 %v280, %v2339
    %v2341 = vpop.f32.mrf.mxu0
    %v2342 = vadd.f32 %v280, %v2341
    %2343 = vmatmul.bf16.gmra.mxu0 %v436
    %v2344 = vpop.f32.mrf.mxu0
    %v2345 = vadd.f32 %v280, %v2344
    %v2346 = vpop.f32.mrf.mxu0
    %v2347 = vadd.f32 %v280, %v2346
    %2348 = vmatmul.bf16.gmra.mxu0 %v437
    %v2349 = vpop.f32.mrf.mxu0
    %v2350 = vadd.f32 %v280, %v2349
    %v2351 = vpop.f32.mrf.mxu0
    %v2352 = vadd.f32 %v280, %v2351
    %2353 = vmatmul.bf16.gmra.mxu0 %v438
    %v2354 = vpop.f32.mrf.mxu0
    %v2355 = vadd.f32 %v280, %v2354
    %v2356 = vpop.f32.mrf.mxu0
    %v2357 = vadd.f32 %v280, %v2356
    %2358 = vmatmul.bf16.gmra.mxu0 %v439
    %v2359 = vpop.f32.mrf.mxu0
    %v2360 = vadd.f32 %v280, %v2359
    %v2361 = vpop.f32.mrf.mxu0
    %v2362 = vadd.f32 %v280, %v2361
    %2363 = vmatmul.bf16.gmra.mxu0 %v440
    %v2364 = vpop.f32.mrf.mxu0
    %v2365 = vadd.f32 %v280, %v2364
    %v2366 = vpop.f32.mrf.mxu0
    %v2367 = vadd.f32 %v280, %v2366
    %2368 = vmatmul.bf16.gmra.mxu0 %v441
    %v2369 = vpop.f32.mrf.mxu0
    %v2370 = vadd.f32 %v280, %v2369
    %v2371 = vpop.f32.mrf.mxu0
    %v2372 = vadd.f32 %v280, %v2371
    %2373 = vmatmul.bf16.gmra.mxu0 %v442
    %v2374 = vpop.f32.mrf.mxu0
    %v2375 = vadd.f32 %v280, %v2374
    %v2376 = vpop.f32.mrf.mxu0
    %v2377 = vadd.f32 %v280, %v2376
    %2378 = vmatmul.bf16.gmra.mxu0 %v443
    %v2379 = vpop.f32.mrf.mxu0
    %v2380 = vadd.f32 %v280, %v2379
    %v2381 = vpop.f32.mrf.mxu0
    %v2382 = vadd.f32 %v280, %v2381
    %2383 = vmatmul.bf16.gmra.mxu0 %v444
    %v2384 = vpop.f32.mrf.mxu0
    %v2385 = vadd.f32 %v280, %v2384
    %v2386 = vpop.f32.mrf.mxu0
    %v2387 = vadd.f32 %v280, %v2386
    %2388 = vmatmul.bf16.gmra.mxu0 %v445
    %v2389 = vpop.f32.mrf.mxu0
    %v2390 = vadd.f32 %v280, %v2389
    %v2391 = vpop.f32.mrf.mxu0
    %v2392 = vadd.f32 %v280, %v2391
    %2393 = vmatmul.bf16.gmra.mxu0 %v446
    %v2394 = vpop.f32.mrf.mxu0
    %v2395 = vadd.f32 %v280, %v2394
    %v2396 = vpop.f32.mrf.mxu0
    %v2397 = vadd.f32 %v280, %v2396
    %2398 = vmatmul.bf16.gmra.mxu0 %v447
    %v2399 = vpop.f32.mrf.mxu0
    %v2400 = vadd.f32 %v280, %v2399
    %v2401 = vpop.f32.mrf.mxu0
    %v2402 = vadd.f32 %v280, %v2401
    %2403 = vmatmul.bf16.gmra.mxu0 %v448
    %v2404 = vpop.f32.mrf.mxu0
    %v2405 = vadd.f32 %v280, %v2404
    %v2406 = vpop.f32.mrf.mxu0
    %v2407 = vadd.f32 %v280, %v2406
    %2408 = vmatmul.bf16.gmra.mxu0 %v449
    %v2409 = vpop.f32.mrf.mxu0
    %v2410 = vadd.f32 %v280, %v2409
    %v2411 = vpop.f32.mrf.mxu0
    %v2412 = vadd.f32 %v280, %v2411
    %2413 = vmatmul.bf16.gmra.mxu0 %v450
    %v2414 = vpop.f32.mrf.mxu0
    %v2415 = vadd.f32 %v280, %v2414
    %v2416 = vpop.f32.mrf.mxu0
    %v2417 = vadd.f32 %v280, %v2416
    %2418 = vmatmul.bf16.gmra.mxu0 %v451
    %v2419 = vpop.f32.mrf.mxu0
    %v2420 = vadd.f32 %v280, %v2419
    %v2421 = vpop.f32.mrf.mxu0
    %v2422 = vadd.f32 %v280, %v2421
    %2423 = vmatmul.bf16.gmra.mxu0 %v452
    %v2424 = vpop.f32.mrf.mxu0
    %v2425 = vadd.f32 %v280, %v2424
    %v2426 = vpop.f32.mrf.mxu0
    %v2427 = vadd.f32 %v280, %v2426
    %2428 = vmatmul.bf16.gmra.mxu0 %v453
    %v2429 = vpop.f32.mrf.mxu0
    %v2430 = vadd.f32 %v280, %v2429
    %v2431 = vpop.f32.mrf.mxu0
    %v2432 = vadd.f32 %v280, %v2431
    %2433 = vmatmul.bf16.gmra.mxu0 %v454
    %v2434 = vpop.f32.mrf.mxu0
    %v2435 = vadd.f32 %v280, %v2434
    %v2436 = vpop.f32.mrf.mxu0
    %v2437 = vadd.f32 %v280, %v2436
    %2438 = vmatmul.bf16.gmra.mxu0 %v455
    %v2439 = vpop.f32.mrf.mxu0
    %v2440 = vadd.f32 %v280, %v2439
    %v2441 = vpop.f32.mrf.mxu0
    %v2442 = vadd.f32 %v280, %v2441
    %2443 = vmatmul.bf16.gmra.mxu0 %v456
    %v2444 = vpop.f32.mrf.mxu0
    %v2445 = vadd.f32 %v280, %v2444
    %v2446 = vpop.f32.mrf.mxu0
    %v2447 = vadd.f32 %v280, %v2446
    %2448 = vmatmul.bf16.gmra.mxu0 %v457
    %v2449 = vpop.f32.mrf.mxu0
    %v2450 = vadd.f32 %v280, %v2449
    %v2451 = vpop.f32.mrf.mxu0
    %v2452 = vadd.f32 %v280, %v2451
    %2453 = vmatmul.bf16.gmra.mxu0 %v458
    %v2454 = vpop.f32.mrf.mxu0
    %v2455 = vadd.f32 %v280, %v2454
    %v2456 = vpop.f32.mrf.mxu0
    %v2457 = vadd.f32 %v280, %v2456
    %2458 = vmatmul.bf16.gmra.mxu0 %v459
    %v2459 = vpop.f32.mrf.mxu0
    %v2460 = vadd.f32 %v280, %v2459
    %v2461 = vpop.f32.mrf.mxu0
    %v2462 = vadd.f32 %v280, %v2461
    %2463 = vmatmul.bf16.gmra.mxu0 %v460
    %v2464 = vpop.f32.mrf.mxu0
    %v2465 = vadd.f32 %v280, %v2464
    %v2466 = vpop.f32.mrf.mxu0
    %v2467 = vadd.f32 %v280, %v2466
    %2468 = vmatmul.bf16.gmra.mxu0 %v461
    %v2469 = vpop.f32.mrf.mxu0
    %v2470 = vadd.f32 %v280, %v2469
    %v2471 = vpop.f32.mrf.mxu0
    %v2472 = vadd.f32 %v280, %v2471
    %2473 = vmatmul.bf16.gmra.mxu0 %v462
    %v2474 = vpop.f32.mrf.mxu0
    %v2475 = vadd.f32 %v280, %v2474
    %v2476 = vpop.f32.mrf.mxu0
    %v2477 = vadd.f32 %v280, %v2476
    %2478 = vmatmul.bf16.gmra.mxu0 %v463
    %v2479 = vpop.f32.mrf.mxu0
    %v2480 = vadd.f32 %v280, %v2479
    %v2481 = vpop.f32.mrf.mxu0
    %v2482 = vadd.f32 %v280, %v2481
    %2483 = vmatmul.bf16.gmra.mxu0 %v464
    %v2484 = vpop.f32.mrf.mxu0
    %v2485 = vadd.f32 %v280, %v2484
    %v2486 = vpop.f32.mrf.mxu0
    %v2487 = vadd.f32 %v280, %v2486
    %2488 = vdwg.mxu0
    %2489 = vmatpush.bf16.msra.mxu0 %v1001
    %2490 = vmatpush.bf16.msra.mxu0 %v985
    %2491 = vmatpush.bf16.msra.mxu0 %v969
    %2492 = vmatpush.bf16.msra.mxu0 %v953
    %2493 = vmatpush.bf16.msra.mxu0 %v937
    %2494 = vmatpush.bf16.msra.mxu0 %v921
    %2495 = vmatpush.bf16.msra.mxu0 %v905
    %2496 = vmatpush.bf16.msra.mxu0 %v889
    %2497 = vmatmul.bf16.gmra.mxu0 %v433
    %v2498 = vpop.f32.mrf.mxu0
    %v2499 = vadd.f32 %v281, %v2498
    %v2500 = vpop.f32.mrf.mxu0
    %v2501 = vadd.f32 %v281, %v2500
    %2502 = vmatmul.bf16.gmra.mxu0 %v434
    %v2503 = vpop.f32.mrf.mxu0
    %v2504 = vadd.f32 %v281, %v2503
    %v2505 = vpop.f32.mrf.mxu0
    %v2506 = vadd.f32 %v281, %v2505
    %2507 = vmatmul.bf16.gmra.mxu0 %v435
    %v2508 = vpop.f32.mrf.mxu0
    %v2509 = vadd.f32 %v281, %v2508
    %v2510 = vpop.f32.mrf.mxu0
    %v2511 = vadd.f32 %v281, %v2510
    %2512 = vmatmul.bf16.gmra.mxu0 %v436
    %v2513 = vpop.f32.mrf.mxu0
    %v2514 = vadd.f32 %v281, %v2513
    %v2515 = vpop.f32.mrf.mxu0
    %v2516 = vadd.f32 %v281, %v2515
    %2517 = vmatmul.bf16.gmra.mxu0 %v437
    %v2518 = vpop.f32.mrf.mxu0
    %v2519 = vadd.f32 %v281, %v2518
    %v2520 = vpop.f32.mrf.mxu0
    %v2521 = vadd.f32 %v281, %v2520
    %2522 = vmatmul.bf16.gmra.mxu0 %v438
    %v2523 = vpop.f32.mrf.mxu0
    %v2524 = vadd.f32 %v281, %v2523
    %v2525 = vpop.f32.mrf.mxu0
    %v2526 = vadd.f32 %v281, %v2525
    %2527 = vmatmul.bf16.gmra.mxu0 %v439
    %v2528 = vpop.f32.mrf.mxu0
    %v2529 = vadd.f32 %v281, %v2528
    %v2530 = vpop.f32.mrf.mxu0
    %v2531 = vadd.f32 %v281, %v2530
    %2532 = vmatmul.bf16.gmra.mxu0 %v440
    %v2533 = vpop.f32.mrf.mxu0
    %v2534 = vadd.f32 %v281, %v2533
    %v2535 = vpop.f32.mrf.mxu0
    %v2536 = vadd.f32 %v281, %v2535
    %2537 = vmatmul.bf16.gmra.mxu0 %v441
    %v2538 = vpop.f32.mrf.mxu0
    %v2539 = vadd.f32 %v281, %v2538
    %v2540 = vpop.f32.mrf.mxu0
    %v2541 = vadd.f32 %v281, %v2540
    %2542 = vmatmul.bf16.gmra.mxu0 %v442
    %v2543 = vpop.f32.mrf.mxu0
    %v2544 = vadd.f32 %v281, %v2543
    %v2545 = vpop.f32.mrf.mxu0
    %v2546 = vadd.f32 %v281, %v2545
    %2547 = vmatmul.bf16.gmra.mxu0 %v443
    %v2548 = vpop.f32.mrf.mxu0
    %v2549 = vadd.f32 %v281, %v2548
    %v2550 = vpop.f32.mrf.mxu0
    %v2551 = vadd.f32 %v281, %v2550
    %2552 = vmatmul.bf16.gmra.mxu0 %v444
    %v2553 = vpop.f32.mrf.mxu0
    %v2554 = vadd.f32 %v281, %v2553
    %v2555 = vpop.f32.mrf.mxu0
    %v2556 = vadd.f32 %v281, %v2555
    %2557 = vmatmul.bf16.gmra.mxu0 %v445
    %v2558 = vpop.f32.mrf.mxu0
    %v2559 = vadd.f32 %v281, %v2558
    %v2560 = vpop.f32.mrf.mxu0
    %v2561 = vadd.f32 %v281, %v2560
    %2562 = vmatmul.bf16.gmra.mxu0 %v446
    %v2563 = vpop.f32.mrf.mxu0
    %v2564 = vadd.f32 %v281, %v2563
    %v2565 = vpop.f32.mrf.mxu0
    %v2566 = vadd.f32 %v281, %v2565
    %2567 = vmatmul.bf16.gmra.mxu0 %v447
    %v2568 = vpop.f32.mrf.mxu0
    %v2569 = vadd.f32 %v281, %v2568
    %v2570 = vpop.f32.mrf.mxu0
    %v2571 = vadd.f32 %v281, %v2570
    %2572 = vmatmul.bf16.gmra.mxu0 %v448
    %v2573 = vpop.f32.mrf.mxu0
    %v2574 = vadd.f32 %v281, %v2573
    %v2575 = vpop.f32.mrf.mxu0
    %v2576 = vadd.f32 %v281, %v2575
    %2577 = vmatmul.bf16.gmra.mxu0 %v449
    %v2578 = vpop.f32.mrf.mxu0
    %v2579 = vadd.f32 %v281, %v2578
    %v2580 = vpop.f32.mrf.mxu0
    %v2581 = vadd.f32 %v281, %v2580
    %2582 = vmatmul.bf16.gmra.mxu0 %v450
    %v2583 = vpop.f32.mrf.mxu0
    %v2584 = vadd.f32 %v281, %v2583
    %v2585 = vpop.f32.mrf.mxu0
    %v2586 = vadd.f32 %v281, %v2585
    %2587 = vmatmul.bf16.gmra.mxu0 %v451
    %v2588 = vpop.f32.mrf.mxu0
    %v2589 = vadd.f32 %v281, %v2588
    %v2590 = vpop.f32.mrf.mxu0
    %v2591 = vadd.f32 %v281, %v2590
    %2592 = vmatmul.bf16.gmra.mxu0 %v452
    %v2593 = vpop.f32.mrf.mxu0
    %v2594 = vadd.f32 %v281, %v2593
    %v2595 = vpop.f32.mrf.mxu0
    %v2596 = vadd.f32 %v281, %v2595
    %2597 = vmatmul.bf16.gmra.mxu0 %v453
    %v2598 = vpop.f32.mrf.mxu0
    %v2599 = vadd.f32 %v281, %v2598
    %v2600 = vpop.f32.mrf.mxu0
    %v2601 = vadd.f32 %v281, %v2600
    %2602 = vmatmul.bf16.gmra.mxu0 %v454
    %v2603 = vpop.f32.mrf.mxu0
    %v2604 = vadd.f32 %v281, %v2603
    %v2605 = vpop.f32.mrf.mxu0
    %v2606 = vadd.f32 %v281, %v2605
    %2607 = vmatmul.bf16.gmra.mxu0 %v455
    %v2608 = vpop.f32.mrf.mxu0
    %v2609 = vadd.f32 %v281, %v2608
    %v2610 = vpop.f32.mrf.mxu0
    %v2611 = vadd.f32 %v281, %v2610
    %2612 = vmatmul.bf16.gmra.mxu0 %v456
    %v2613 = vpop.f32.mrf.mxu0
    %v2614 = vadd.f32 %v281, %v2613
    %v2615 = vpop.f32.mrf.mxu0
    %v2616 = vadd.f32 %v281, %v2615
    %2617 = vmatmul.bf16.gmra.mxu0 %v457
    %v2618 = vpop.f32.mrf.mxu0
    %v2619 = vadd.f32 %v281, %v2618
    %v2620 = vpop.f32.mrf.mxu0
    %v2621 = vadd.f32 %v281, %v2620
    %2622 = vmatmul.bf16.gmra.mxu0 %v458
    %v2623 = vpop.f32.mrf.mxu0
    %v2624 = vadd.f32 %v281, %v2623
    %v2625 = vpop.f32.mrf.mxu0
    %v2626 = vadd.f32 %v281, %v2625
    %2627 = vmatmul.bf16.gmra.mxu0 %v459
    %v2628 = vpop.f32.mrf.mxu0
    %v2629 = vadd.f32 %v281, %v2628
    %v2630 = vpop.f32.mrf.mxu0
    %v2631 = vadd.f32 %v281, %v2630
    %2632 = vmatmul.bf16.gmra.mxu0 %v460
    %v2633 = vpop.f32.mrf.mxu0
    %v2634 = vadd.f32 %v281, %v2633
    %v2635 = vpop.f32.mrf.mxu0
    %v2636 = vadd.f32 %v281, %v2635
    %2637 = vmatmul.bf16.gmra.mxu0 %v461
    %v2638 = vpop.f32.mrf.mxu0
    %v2639 = vadd.f32 %v281, %v2638
    %v2640 = vpop.f32.mrf.mxu0
    %v2641 = vadd.f32 %v281, %v2640
    %2642 = vmatmul.bf16.gmra.mxu0 %v462
    %v2643 = vpop.f32.mrf.mxu0
    %v2644 = vadd.f32 %v281, %v2643
    %v2645 = vpop.f32.mrf.mxu0
    %v2646 = vadd.f32 %v281, %v2645
    %2647 = vmatmul.bf16.gmra.mxu0 %v463
    %v2648 = vpop.f32.mrf.mxu0
    %v2649 = vadd.f32 %v281, %v2648
    %v2650 = vpop.f32.mrf.mxu0
    %v2651 = vadd.f32 %v281, %v2650
    %2652 = vmatmul.bf16.gmra.mxu0 %v464
    %v2653 = vpop.f32.mrf.mxu0
    %v2654 = vadd.f32 %v281, %v2653
    %v2655 = vpop.f32.mrf.mxu0
    %v2656 = vadd.f32 %v281, %v2655
    %2657 = vdwg.mxu0
    %2658 = vmatpush.bf16.msra.mxu0 %v1002
    %2659 = vmatpush.bf16.msra.mxu0 %v986
    %2660 = vmatpush.bf16.msra.mxu0 %v970
    %2661 = vmatpush.bf16.msra.mxu0 %v954
    %2662 = vmatpush.bf16.msra.mxu0 %v938
    %2663 = vmatpush.bf16.msra.mxu0 %v922
    %2664 = vmatpush.bf16.msra.mxu0 %v906
    %2665 = vmatpush.bf16.msra.mxu0 %v890
    %2666 = vmatmul.bf16.gmra.mxu0 %v433
    %v2667 = vpop.f32.mrf.mxu0
    %v2668 = vadd.f32 %v282, %v2667
    %v2669 = vpop.f32.mrf.mxu0
    %v2670 = vadd.f32 %v282, %v2669
    %2671 = vmatmul.bf16.gmra.mxu0 %v434
    %v2672 = vpop.f32.mrf.mxu0
    %v2673 = vadd.f32 %v282, %v2672
    %v2674 = vpop.f32.mrf.mxu0
    %v2675 = vadd.f32 %v282, %v2674
    %2676 = vmatmul.bf16.gmra.mxu0 %v435
    %v2677 = vpop.f32.mrf.mxu0
    %v2678 = vadd.f32 %v282, %v2677
    %v2679 = vpop.f32.mrf.mxu0
    %v2680 = vadd.f32 %v282, %v2679
    %2681 = vmatmul.bf16.gmra.mxu0 %v436
    %v2682 = vpop.f32.mrf.mxu0
    %v2683 = vadd.f32 %v282, %v2682
    %v2684 = vpop.f32.mrf.mxu0
    %v2685 = vadd.f32 %v282, %v2684
    %2686 = vmatmul.bf16.gmra.mxu0 %v437
    %v2687 = vpop.f32.mrf.mxu0
    %v2688 = vadd.f32 %v282, %v2687
    %v2689 = vpop.f32.mrf.mxu0
    %v2690 = vadd.f32 %v282, %v2689
    %2691 = vmatmul.bf16.gmra.mxu0 %v438
    %v2692 = vpop.f32.mrf.mxu0
    %v2693 = vadd.f32 %v282, %v2692
    %v2694 = vpop.f32.mrf.mxu0
    %v2695 = vadd.f32 %v282, %v2694
    %2696 = vmatmul.bf16.gmra.mxu0 %v439
    %v2697 = vpop.f32.mrf.mxu0
    %v2698 = vadd.f32 %v282, %v2697
    %v2699 = vpop.f32.mrf.mxu0
    %v2700 = vadd.f32 %v282, %v2699
    %2701 = vmatmul.bf16.gmra.mxu0 %v440
    %v2702 = vpop.f32.mrf.mxu0
    %v2703 = vadd.f32 %v282, %v2702
    %v2704 = vpop.f32.mrf.mxu0
    %v2705 = vadd.f32 %v282, %v2704
    %2706 = vmatmul.bf16.gmra.mxu0 %v441
    %v2707 = vpop.f32.mrf.mxu0
    %v2708 = vadd.f32 %v282, %v2707
    %v2709 = vpop.f32.mrf.mxu0
    %v2710 = vadd.f32 %v282, %v2709
    %2711 = vmatmul.bf16.gmra.mxu0 %v442
    %v2712 = vpop.f32.mrf.mxu0
    %v2713 = vadd.f32 %v282, %v2712
    %v2714 = vpop.f32.mrf.mxu0
    %v2715 = vadd.f32 %v282, %v2714
    %2716 = vmatmul.bf16.gmra.mxu0 %v443
    %v2717 = vpop.f32.mrf.mxu0
    %v2718 = vadd.f32 %v282, %v2717
    %v2719 = vpop.f32.mrf.mxu0
    %v2720 = vadd.f32 %v282, %v2719
    %2721 = vmatmul.bf16.gmra.mxu0 %v444
    %v2722 = vpop.f32.mrf.mxu0
    %v2723 = vadd.f32 %v282, %v2722
    %v2724 = vpop.f32.mrf.mxu0
    %v2725 = vadd.f32 %v282, %v2724
    %2726 = vmatmul.bf16.gmra.mxu0 %v445
    %v2727 = vpop.f32.mrf.mxu0
    %v2728 = vadd.f32 %v282, %v2727
    %v2729 = vpop.f32.mrf.mxu0
    %v2730 = vadd.f32 %v282, %v2729
    %2731 = vmatmul.bf16.gmra.mxu0 %v446
    %v2732 = vpop.f32.mrf.mxu0
    %v2733 = vadd.f32 %v282, %v2732
    %v2734 = vpop.f32.mrf.mxu0
    %v2735 = vadd.f32 %v282, %v2734
    %2736 = vmatmul.bf16.gmra.mxu0 %v447
    %v2737 = vpop.f32.mrf.mxu0
    %v2738 = vadd.f32 %v282, %v2737
    %v2739 = vpop.f32.mrf.mxu0
    %v2740 = vadd.f32 %v282, %v2739
    %2741 = vmatmul.bf16.gmra.mxu0 %v448
    %v2742 = vpop.f32.mrf.mxu0
    %v2743 = vadd.f32 %v282, %v2742
    %v2744 = vpop.f32.mrf.mxu0
    %v2745 = vadd.f32 %v282, %v2744
    %2746 = vmatmul.bf16.gmra.mxu0 %v449
    %v2747 = vpop.f32.mrf.mxu0
    %v2748 = vadd.f32 %v282, %v2747
    %v2749 = vpop.f32.mrf.mxu0
    %v2750 = vadd.f32 %v282, %v2749
    %2751 = vmatmul.bf16.gmra.mxu0 %v450
    %v2752 = vpop.f32.mrf.mxu0
    %v2753 = vadd.f32 %v282, %v2752
    %v2754 = vpop.f32.mrf.mxu0
    %v2755 = vadd.f32 %v282, %v2754
    %2756 = vmatmul.bf16.gmra.mxu0 %v451
    %v2757 = vpop.f32.mrf.mxu0
    %v2758 = vadd.f32 %v282, %v2757
    %v2759 = vpop.f32.mrf.mxu0
    %v2760 = vadd.f32 %v282, %v2759
    %2761 = vmatmul.bf16.gmra.mxu0 %v452
    %v2762 = vpop.f32.mrf.mxu0
    %v2763 = vadd.f32 %v282, %v2762
    %v2764 = vpop.f32.mrf.mxu0
    %v2765 = vadd.f32 %v282, %v2764
    %2766 = vmatmul.bf16.gmra.mxu0 %v453
    %v2767 = vpop.f32.mrf.mxu0
    %v2768 = vadd.f32 %v282, %v2767
    %v2769 = vpop.f32.mrf.mxu0
    %v2770 = vadd.f32 %v282, %v2769
    %2771 = vmatmul.bf16.gmra.mxu0 %v454
    %v2772 = vpop.f32.mrf.mxu0
    %v2773 = vadd.f32 %v282, %v2772
    %v2774 = vpop.f32.mrf.mxu0
    %v2775 = vadd.f32 %v282, %v2774
    %2776 = vmatmul.bf16.gmra.mxu0 %v455
    %v2777 = vpop.f32.mrf.mxu0
    %v2778 = vadd.f32 %v282, %v2777
    %v2779 = vpop.f32.mrf.mxu0
    %v2780 = vadd.f32 %v282, %v2779
    %2781 = vmatmul.bf16.gmra.mxu0 %v456
    %v2782 = vpop.f32.mrf.mxu0
    %v2783 = vadd.f32 %v282, %v2782
    %v2784 = vpop.f32.mrf.mxu0
    %v2785 = vadd.f32 %v282, %v2784
    %2786 = vmatmul.bf16.gmra.mxu0 %v457
    %v2787 = vpop.f32.mrf.mxu0
    %v2788 = vadd.f32 %v282, %v2787
    %v2789 = vpop.f32.mrf.mxu0
    %v2790 = vadd.f32 %v282, %v2789
    %2791 = vmatmul.bf16.gmra.mxu0 %v458
    %v2792 = vpop.f32.mrf.mxu0
    %v2793 = vadd.f32 %v282, %v2792
    %v2794 = vpop.f32.mrf.mxu0
    %v2795 = vadd.f32 %v282, %v2794
    %2796 = vmatmul.bf16.gmra.mxu0 %v459
    %v2797 = vpop.f32.mrf.mxu0
    %v2798 = vadd.f32 %v282, %v2797
    %v2799 = vpop.f32.mrf.mxu0
    %v2800 = vadd.f32 %v282, %v2799
    %2801 = vmatmul.bf16.gmra.mxu0 %v460
    %v2802 = vpop.f32.mrf.mxu0
    %v2803 = vadd.f32 %v282, %v2802
    %v2804 = vpop.f32.mrf.mxu0
    %v2805 = vadd.f32 %v282, %v2804
    %2806 = vmatmul.bf16.gmra.mxu0 %v461
    %v2807 = vpop.f32.mrf.mxu0
    %v2808 = vadd.f32 %v282, %v2807
    %v2809 = vpop.f32.mrf.mxu0
    %v2810 = vadd.f32 %v282, %v2809
    %2811 = vmatmul.bf16.gmra.mxu0 %v462
    %v2812 = vpop.f32.mrf.mxu0
    %v2813 = vadd.f32 %v282, %v2812
    %v2814 = vpop.f32.mrf.mxu0
    %v2815 = vadd.f32 %v282, %v2814
    %2816 = vmatmul.bf16.gmra.mxu0 %v463
    %v2817 = vpop.f32.mrf.mxu0
    %v2818 = vadd.f32 %v282, %v2817
    %v2819 = vpop.f32.mrf.mxu0
    %v2820 = vadd.f32 %v282, %v2819
    %2821 = vmatmul.bf16.gmra.mxu0 %v464
    %v2822 = vpop.f32.mrf.mxu0
    %v2823 = vadd.f32 %v282, %v2822
    %v2824 = vpop.f32.mrf.mxu0
    %v2825 = vadd.f32 %v282, %v2824
    %2826 = vdwg.mxu0
    %2827 = vmatpush.bf16.msra.mxu0 %v1003
    %2828 = vmatpush.bf16.msra.mxu0 %v987
    %2829 = vmatpush.bf16.msra.mxu0 %v971
    %2830 = vmatpush.bf16.msra.mxu0 %v955
    %2831 = vmatpush.bf16.msra.mxu0 %v939
    %2832 = vmatpush.bf16.msra.mxu0 %v923
    %2833 = vmatpush.bf16.msra.mxu0 %v907
    %2834 = vmatpush.bf16.msra.mxu0 %v891
    %2835 = vmatmul.bf16.gmra.mxu0 %v433
    %v2836 = vpop.f32.mrf.mxu0
    %v2837 = vadd.f32 %v283, %v2836
    %v2838 = vpop.f32.mrf.mxu0
    %v2839 = vadd.f32 %v283, %v2838
    %2840 = vmatmul.bf16.gmra.mxu0 %v434
    %v2841 = vpop.f32.mrf.mxu0
    %v2842 = vadd.f32 %v283, %v2841
    %v2843 = vpop.f32.mrf.mxu0
    %v2844 = vadd.f32 %v283, %v2843
    %2845 = vmatmul.bf16.gmra.mxu0 %v435
    %v2846 = vpop.f32.mrf.mxu0
    %v2847 = vadd.f32 %v283, %v2846
    %v2848 = vpop.f32.mrf.mxu0
    %v2849 = vadd.f32 %v283, %v2848
    %2850 = vmatmul.bf16.gmra.mxu0 %v436
    %v2851 = vpop.f32.mrf.mxu0
    %v2852 = vadd.f32 %v283, %v2851
    %v2853 = vpop.f32.mrf.mxu0
    %v2854 = vadd.f32 %v283, %v2853
    %2855 = vmatmul.bf16.gmra.mxu0 %v437
    %v2856 = vpop.f32.mrf.mxu0
    %v2857 = vadd.f32 %v283, %v2856
    %v2858 = vpop.f32.mrf.mxu0
    %v2859 = vadd.f32 %v283, %v2858
    %2860 = vmatmul.bf16.gmra.mxu0 %v438
    %v2861 = vpop.f32.mrf.mxu0
    %v2862 = vadd.f32 %v283, %v2861
    %v2863 = vpop.f32.mrf.mxu0
    %v2864 = vadd.f32 %v283, %v2863
    %2865 = vmatmul.bf16.gmra.mxu0 %v439
    %v2866 = vpop.f32.mrf.mxu0
    %v2867 = vadd.f32 %v283, %v2866
    %v2868 = vpop.f32.mrf.mxu0
    %v2869 = vadd.f32 %v283, %v2868
    %2870 = vmatmul.bf16.gmra.mxu0 %v440
    %v2871 = vpop.f32.mrf.mxu0
    %v2872 = vadd.f32 %v283, %v2871
    %v2873 = vpop.f32.mrf.mxu0
    %v2874 = vadd.f32 %v283, %v2873
    %2875 = vmatmul.bf16.gmra.mxu0 %v441
    %v2876 = vpop.f32.mrf.mxu0
    %v2877 = vadd.f32 %v283, %v2876
    %v2878 = vpop.f32.mrf.mxu0
    %v2879 = vadd.f32 %v283, %v2878
    %2880 = vmatmul.bf16.gmra.mxu0 %v442
    %v2881 = vpop.f32.mrf.mxu0
    %v2882 = vadd.f32 %v283, %v2881
    %v2883 = vpop.f32.mrf.mxu0
    %v2884 = vadd.f32 %v283, %v2883
    %2885 = vmatmul.bf16.gmra.mxu0 %v443
    %v2886 = vpop.f32.mrf.mxu0
    %v2887 = vadd.f32 %v283, %v2886
    %v2888 = vpop.f32.mrf.mxu0
    %v2889 = vadd.f32 %v283, %v2888
    %2890 = vmatmul.bf16.gmra.mxu0 %v444
    %v2891 = vpop.f32.mrf.mxu0
    %v2892 = vadd.f32 %v283, %v2891
    %v2893 = vpop.f32.mrf.mxu0
    %v2894 = vadd.f32 %v283, %v2893
    %2895 = vmatmul.bf16.gmra.mxu0 %v445
    %v2896 = vpop.f32.mrf.mxu0
    %v2897 = vadd.f32 %v283, %v2896
    %v2898 = vpop.f32.mrf.mxu0
    %v2899 = vadd.f32 %v283, %v2898
    %2900 = vmatmul.bf16.gmra.mxu0 %v446
    %v2901 = vpop.f32.mrf.mxu0
    %v2902 = vadd.f32 %v283, %v2901
    %v2903 = vpop.f32.mrf.mxu0
    %v2904 = vadd.f32 %v283, %v2903
    %2905 = vmatmul.bf16.gmra.mxu0 %v447
    %v2906 = vpop.f32.mrf.mxu0
    %v2907 = vadd.f32 %v283, %v2906
    %v2908 = vpop.f32.mrf.mxu0
    %v2909 = vadd.f32 %v283, %v2908
    %2910 = vmatmul.bf16.gmra.mxu0 %v448
    %v2911 = vpop.f32.mrf.mxu0
    %v2912 = vadd.f32 %v283, %v2911
    %v2913 = vpop.f32.mrf.mxu0
    %v2914 = vadd.f32 %v283, %v2913
    %2915 = vmatmul.bf16.gmra.mxu0 %v449
    %v2916 = vpop.f32.mrf.mxu0
    %v2917 = vadd.f32 %v283, %v2916
    %v2918 = vpop.f32.mrf.mxu0
    %v2919 = vadd.f32 %v283, %v2918
    %2920 = vmatmul.bf16.gmra.mxu0 %v450
    %v2921 = vpop.f32.mrf.mxu0
    %v2922 = vadd.f32 %v283, %v2921
    %v2923 = vpop.f32.mrf.mxu0
    %v2924 = vadd.f32 %v283, %v2923
    %2925 = vmatmul.bf16.gmra.mxu0 %v451
    %v2926 = vpop.f32.mrf.mxu0
    %v2927 = vadd.f32 %v283, %v2926
    %v2928 = vpop.f32.mrf.mxu0
    %v2929 = vadd.f32 %v283, %v2928
    %2930 = vmatmul.bf16.gmra.mxu0 %v452
    %v2931 = vpop.f32.mrf.mxu0
    %v2932 = vadd.f32 %v283, %v2931
    %v2933 = vpop.f32.mrf.mxu0
    %v2934 = vadd.f32 %v283, %v2933
    %2935 = vmatmul.bf16.gmra.mxu0 %v453
    %v2936 = vpop.f32.mrf.mxu0
    %v2937 = vadd.f32 %v283, %v2936
    %v2938 = vpop.f32.mrf.mxu0
    %v2939 = vadd.f32 %v283, %v2938
    %2940 = vmatmul.bf16.gmra.mxu0 %v454
    %v2941 = vpop.f32.mrf.mxu0
    %v2942 = vadd.f32 %v283, %v2941
    %v2943 = vpop.f32.mrf.mxu0
    %v2944 = vadd.f32 %v283, %v2943
    %2945 = vmatmul.bf16.gmra.mxu0 %v455
    %v2946 = vpop.f32.mrf.mxu0
    %v2947 = vadd.f32 %v283, %v2946
    %v2948 = vpop.f32.mrf.mxu0
    %v2949 = vadd.f32 %v283, %v2948
    %2950 = vmatmul.bf16.gmra.mxu0 %v456
    %v2951 = vpop.f32.mrf.mxu0
    %v2952 = vadd.f32 %v283, %v2951
    %v2953 = vpop.f32.mrf.mxu0
    %v2954 = vadd.f32 %v283, %v2953
    %2955 = vmatmul.bf16.gmra.mxu0 %v457
    %v2956 = vpop.f32.mrf.mxu0
    %v2957 = vadd.f32 %v283, %v2956
    %v2958 = vpop.f32.mrf.mxu0
    %v2959 = vadd.f32 %v283, %v2958
    %2960 = vmatmul.bf16.gmra.mxu0 %v458
    %v2961 = vpop.f32.mrf.mxu0
    %v2962 = vadd.f32 %v283, %v2961
    %v2963 = vpop.f32.mrf.mxu0
    %v2964 = vadd.f32 %v283, %v2963
    %2965 = vmatmul.bf16.gmra.mxu0 %v459
    %v2966 = vpop.f32.mrf.mxu0
    %v2967 = vadd.f32 %v283, %v2966
    %v2968 = vpop.f32.mrf.mxu0
    %v2969 = vadd.f32 %v283, %v2968
    %2970 = vmatmul.bf16.gmra.mxu0 %v460
    %v2971 = vpop.f32.mrf.mxu0
    %v2972 = vadd.f32 %v283, %v2971
    %v2973 = vpop.f32.mrf.mxu0
    %v2974 = vadd.f32 %v283, %v2973
    %2975 = vmatmul.bf16.gmra.mxu0 %v461
    %v2976 = vpop.f32.mrf.mxu0
    %v2977 = vadd.f32 %v283, %v2976
    %v2978 = vpop.f32.mrf.mxu0
    %v2979 = vadd.f32 %v283, %v2978
    %2980 = vmatmul.bf16.gmra.mxu0 %v462
    %v2981 = vpop.f32.mrf.mxu0
    %v2982 = vadd.f32 %v283, %v2981
    %v2983 = vpop.f32.mrf.mxu0
    %v2984 = vadd.f32 %v283, %v2983
    %2985 = vmatmul.bf16.gmra.mxu0 %v463
    %v2986 = vpop.f32.mrf.mxu0
    %v2987 = vadd.f32 %v283, %v2986
    %v2988 = vpop.f32.mrf.mxu0
    %v2989 = vadd.f32 %v283, %v2988
    %2990 = vmatmul.bf16.gmra.mxu0 %v464
    %v2991 = vpop.f32.mrf.mxu0
    %v2992 = vadd.f32 %v283, %v2991
    %v2993 = vpop.f32.mrf.mxu0
    %v2994 = vadd.f32 %v283, %v2993
    %2995 = vdwg.mxu0
    %2996 = vmatpush.bf16.msra.mxu0 %v1004
    %2997 = vmatpush.bf16.msra.mxu0 %v988
    %2998 = vmatpush.bf16.msra.mxu0 %v972
    %2999 = vmatpush.bf16.msra.mxu0 %v956
    %3000 = vmatpush.bf16.msra.mxu0 %v940
    %3001 = vmatpush.bf16.msra.mxu0 %v924
    %3002 = vmatpush.bf16.msra.mxu0 %v908
    %3003 = vmatpush.bf16.msra.mxu0 %v892
    %3004 = vmatmul.bf16.gmra.mxu0 %v433
    %v3005 = vpop.f32.mrf.mxu0
    %v3006 = vadd.f32 %v284, %v3005
    %v3007 = vpop.f32.mrf.mxu0
    %v3008 = vadd.f32 %v284, %v3007
    %3009 = vmatmul.bf16.gmra.mxu0 %v434
    %v3010 = vpop.f32.mrf.mxu0
    %v3011 = vadd.f32 %v284, %v3010
    %v3012 = vpop.f32.mrf.mxu0
    %v3013 = vadd.f32 %v284, %v3012
    %3014 = vmatmul.bf16.gmra.mxu0 %v435
    %v3015 = vpop.f32.mrf.mxu0
    %v3016 = vadd.f32 %v284, %v3015
    %v3017 = vpop.f32.mrf.mxu0
    %v3018 = vadd.f32 %v284, %v3017
    %3019 = vmatmul.bf16.gmra.mxu0 %v436
    %v3020 = vpop.f32.mrf.mxu0
    %v3021 = vadd.f32 %v284, %v3020
    %v3022 = vpop.f32.mrf.mxu0
    %v3023 = vadd.f32 %v284, %v3022
    %3024 = vmatmul.bf16.gmra.mxu0 %v437
    %v3025 = vpop.f32.mrf.mxu0
    %v3026 = vadd.f32 %v284, %v3025
    %v3027 = vpop.f32.mrf.mxu0
    %v3028 = vadd.f32 %v284, %v3027
    %3029 = vmatmul.bf16.gmra.mxu0 %v438
    %v3030 = vpop.f32.mrf.mxu0
    %v3031 = vadd.f32 %v284, %v3030
    %v3032 = vpop.f32.mrf.mxu0
    %v3033 = vadd.f32 %v284, %v3032
    %3034 = vmatmul.bf16.gmra.mxu0 %v439
    %v3035 = vpop.f32.mrf.mxu0
    %v3036 = vadd.f32 %v284, %v3035
    %v3037 = vpop.f32.mrf.mxu0
    %v3038 = vadd.f32 %v284, %v3037
    %3039 = vmatmul.bf16.gmra.mxu0 %v440
    %v3040 = vpop.f32.mrf.mxu0
    %v3041 = vadd.f32 %v284, %v3040
    %v3042 = vpop.f32.mrf.mxu0
    %v3043 = vadd.f32 %v284, %v3042
    %3044 = vmatmul.bf16.gmra.mxu0 %v441
    %v3045 = vpop.f32.mrf.mxu0
    %v3046 = vadd.f32 %v284, %v3045
    %v3047 = vpop.f32.mrf.mxu0
    %v3048 = vadd.f32 %v284, %v3047
    %3049 = vmatmul.bf16.gmra.mxu0 %v442
    %v3050 = vpop.f32.mrf.mxu0
    %v3051 = vadd.f32 %v284, %v3050
    %v3052 = vpop.f32.mrf.mxu0
    %v3053 = vadd.f32 %v284, %v3052
    %3054 = vmatmul.bf16.gmra.mxu0 %v443
    %v3055 = vpop.f32.mrf.mxu0
    %v3056 = vadd.f32 %v284, %v3055
    %v3057 = vpop.f32.mrf.mxu0
    %v3058 = vadd.f32 %v284, %v3057
    %3059 = vmatmul.bf16.gmra.mxu0 %v444
    %v3060 = vpop.f32.mrf.mxu0
    %v3061 = vadd.f32 %v284, %v3060
    %v3062 = vpop.f32.mrf.mxu0
    %v3063 = vadd.f32 %v284, %v3062
    %3064 = vmatmul.bf16.gmra.mxu0 %v445
    %v3065 = vpop.f32.mrf.mxu0
    %v3066 = vadd.f32 %v284, %v3065
    %v3067 = vpop.f32.mrf.mxu0
    %v3068 = vadd.f32 %v284, %v3067
    %3069 = vmatmul.bf16.gmra.mxu0 %v446
    %v3070 = vpop.f32.mrf.mxu0
    %v3071 = vadd.f32 %v284, %v3070
    %v3072 = vpop.f32.mrf.mxu0
    %v3073 = vadd.f32 %v284, %v3072
    %3074 = vmatmul.bf16.gmra.mxu0 %v447
    %v3075 = vpop.f32.mrf.mxu0
    %v3076 = vadd.f32 %v284, %v3075
    %v3077 = vpop.f32.mrf.mxu0
    %v3078 = vadd.f32 %v284, %v3077
    %3079 = vmatmul.bf16.gmra.mxu0 %v448
    %v3080 = vpop.f32.mrf.mxu0
    %v3081 = vadd.f32 %v284, %v3080
    %v3082 = vpop.f32.mrf.mxu0
    %v3083 = vadd.f32 %v284, %v3082
    %3084 = vmatmul.bf16.gmra.mxu0 %v449
    %v3085 = vpop.f32.mrf.mxu0
    %v3086 = vadd.f32 %v284, %v3085
    %v3087 = vpop.f32.mrf.mxu0
    %v3088 = vadd.f32 %v284, %v3087
    %3089 = vmatmul.bf16.gmra.mxu0 %v450
    %v3090 = vpop.f32.mrf.mxu0
    %v3091 = vadd.f32 %v284, %v3090
    %v3092 = vpop.f32.mrf.mxu0
    %v3093 = vadd.f32 %v284, %v3092
    %3094 = vmatmul.bf16.gmra.mxu0 %v451
    %v3095 = vpop.f32.mrf.mxu0
    %v3096 = vadd.f32 %v284, %v3095
    %v3097 = vpop.f32.mrf.mxu0
    %v3098 = vadd.f32 %v284, %v3097
    %3099 = vmatmul.bf16.gmra.mxu0 %v452
    %v3100 = vpop.f32.mrf.mxu0
    %v3101 = vadd.f32 %v284, %v3100
    %v3102 = vpop.f32.mrf.mxu0
    %v3103 = vadd.f32 %v284, %v3102
    %3104 = vmatmul.bf16.gmra.mxu0 %v453
    %v3105 = vpop.f32.mrf.mxu0
    %v3106 = vadd.f32 %v284, %v3105
    %v3107 = vpop.f32.mrf.mxu0
    %v3108 = vadd.f32 %v284, %v3107
    %3109 = vmatmul.bf16.gmra.mxu0 %v454
    %v3110 = vpop.f32.mrf.mxu0
    %v3111 = vadd.f32 %v284, %v3110
    %v3112 = vpop.f32.mrf.mxu0
    %v3113 = vadd.f32 %v284, %v3112
    %3114 = vmatmul.bf16.gmra.mxu0 %v455
    %v3115 = vpop.f32.mrf.mxu0
    %v3116 = vadd.f32 %v284, %v3115
    %v3117 = vpop.f32.mrf.mxu0
    %v3118 = vadd.f32 %v284, %v3117
    %3119 = vmatmul.bf16.gmra.mxu0 %v456
    %v3120 = vpop.f32.mrf.mxu0
    %v3121 = vadd.f32 %v284, %v3120
    %v3122 = vpop.f32.mrf.mxu0
    %v3123 = vadd.f32 %v284, %v3122
    %3124 = vmatmul.bf16.gmra.mxu0 %v457
    %v3125 = vpop.f32.mrf.mxu0
    %v3126 = vadd.f32 %v284, %v3125
    %v3127 = vpop.f32.mrf.mxu0
    %v3128 = vadd.f32 %v284, %v3127
    %3129 = vmatmul.bf16.gmra.mxu0 %v458
    %v3130 = vpop.f32.mrf.mxu0
    %v3131 = vadd.f32 %v284, %v3130
    %v3132 = vpop.f32.mrf.mxu0
    %v3133 = vadd.f32 %v284, %v3132
    %3134 = vmatmul.bf16.gmra.mxu0 %v459
    %v3135 = vpop.f32.mrf.mxu0
    %v3136 = vadd.f32 %v284, %v3135
    %v3137 = vpop.f32.mrf.mxu0
    %v3138 = vadd.f32 %v284, %v3137
    %3139 = vmatmul.bf16.gmra.mxu0 %v460
    %v3140 = vpop.f32.mrf.mxu0
    %v3141 = vadd.f32 %v284, %v3140
    %v3142 = vpop.f32.mrf.mxu0
    %v3143 = vadd.f32 %v284, %v3142
    %3144 = vmatmul.bf16.gmra.mxu0 %v461
    %v3145 = vpop.f32.mrf.mxu0
    %v3146 = vadd.f32 %v284, %v3145
    %v3147 = vpop.f32.mrf.mxu0
    %v3148 = vadd.f32 %v284, %v3147
    %3149 = vmatmul.bf16.gmra.mxu0 %v462
    %v3150 = vpop.f32.mrf.mxu0
    %v3151 = vadd.f32 %v284, %v3150
    %v3152 = vpop.f32.mrf.mxu0
    %v3153 = vadd.f32 %v284, %v3152
    %3154 = vmatmul.bf16.gmra.mxu0 %v463
    %v3155 = vpop.f32.mrf.mxu0
    %v3156 = vadd.f32 %v284, %v3155
    %v3157 = vpop.f32.mrf.mxu0
    %v3158 = vadd.f32 %v284, %v3157
    %3159 = vmatmul.bf16.gmra.mxu0 %v464
    %v3160 = vpop.f32.mrf.mxu0
    %v3161 = vadd.f32 %v284, %v3160
    %v3162 = vpop.f32.mrf.mxu0
    %v3163 = vadd.f32 %v284, %v3162
    %3164 = vdwg.mxu0
    %3165 = vmatpush.bf16.msra.mxu0 %v1005
    %3166 = vmatpush.bf16.msra.mxu0 %v989
    %3167 = vmatpush.bf16.msra.mxu0 %v973
    %3168 = vmatpush.bf16.msra.mxu0 %v957
    %3169 = vmatpush.bf16.msra.mxu0 %v941
    %3170 = vmatpush.bf16.msra.mxu0 %v925
    %3171 = vmatpush.bf16.msra.mxu0 %v909
    %3172 = vmatpush.bf16.msra.mxu0 %v893
    %3173 = vmatmul.bf16.gmra.mxu0 %v433
    %v3174 = vpop.f32.mrf.mxu0
    %v3175 = vadd.f32 %v285, %v3174
    %v3176 = vpop.f32.mrf.mxu0
    %v3177 = vadd.f32 %v285, %v3176
    %3178 = vmatmul.bf16.gmra.mxu0 %v434
    %v3179 = vpop.f32.mrf.mxu0
    %v3180 = vadd.f32 %v285, %v3179
    %v3181 = vpop.f32.mrf.mxu0
    %v3182 = vadd.f32 %v285, %v3181
    %3183 = vmatmul.bf16.gmra.mxu0 %v435
    %v3184 = vpop.f32.mrf.mxu0
    %v3185 = vadd.f32 %v285, %v3184
    %v3186 = vpop.f32.mrf.mxu0
    %v3187 = vadd.f32 %v285, %v3186
    %3188 = vmatmul.bf16.gmra.mxu0 %v436
    %v3189 = vpop.f32.mrf.mxu0
    %v3190 = vadd.f32 %v285, %v3189
    %v3191 = vpop.f32.mrf.mxu0
    %v3192 = vadd.f32 %v285, %v3191
    %3193 = vmatmul.bf16.gmra.mxu0 %v437
    %v3194 = vpop.f32.mrf.mxu0
    %v3195 = vadd.f32 %v285, %v3194
    %v3196 = vpop.f32.mrf.mxu0
    %v3197 = vadd.f32 %v285, %v3196
    %3198 = vmatmul.bf16.gmra.mxu0 %v438
    %v3199 = vpop.f32.mrf.mxu0
    %v3200 = vadd.f32 %v285, %v3199
    %v3201 = vpop.f32.mrf.mxu0
    %v3202 = vadd.f32 %v285, %v3201
    %3203 = vmatmul.bf16.gmra.mxu0 %v439
    %v3204 = vpop.f32.mrf.mxu0
    %v3205 = vadd.f32 %v285, %v3204
    %v3206 = vpop.f32.mrf.mxu0
    %v3207 = vadd.f32 %v285, %v3206
    %3208 = vmatmul.bf16.gmra.mxu0 %v440
    %v3209 = vpop.f32.mrf.mxu0
    %v3210 = vadd.f32 %v285, %v3209
    %v3211 = vpop.f32.mrf.mxu0
    %v3212 = vadd.f32 %v285, %v3211
    %3213 = vmatmul.bf16.gmra.mxu0 %v441
    %v3214 = vpop.f32.mrf.mxu0
    %v3215 = vadd.f32 %v285, %v3214
    %v3216 = vpop.f32.mrf.mxu0
    %v3217 = vadd.f32 %v285, %v3216
    %3218 = vmatmul.bf16.gmra.mxu0 %v442
    %v3219 = vpop.f32.mrf.mxu0
    %v3220 = vadd.f32 %v285, %v3219
    %v3221 = vpop.f32.mrf.mxu0
    %v3222 = vadd.f32 %v285, %v3221
    %3223 = vmatmul.bf16.gmra.mxu0 %v443
    %v3224 = vpop.f32.mrf.mxu0
    %v3225 = vadd.f32 %v285, %v3224
    %v3226 = vpop.f32.mrf.mxu0
    %v3227 = vadd.f32 %v285, %v3226
    %3228 = vmatmul.bf16.gmra.mxu0 %v444
    %v3229 = vpop.f32.mrf.mxu0
    %v3230 = vadd.f32 %v285, %v3229
    %v3231 = vpop.f32.mrf.mxu0
    %v3232 = vadd.f32 %v285, %v3231
    %3233 = vmatmul.bf16.gmra.mxu0 %v445
    %v3234 = vpop.f32.mrf.mxu0
    %v3235 = vadd.f32 %v285, %v3234
    %v3236 = vpop.f32.mrf.mxu0
    %v3237 = vadd.f32 %v285, %v3236
    %3238 = vmatmul.bf16.gmra.mxu0 %v446
    %v3239 = vpop.f32.mrf.mxu0
    %v3240 = vadd.f32 %v285, %v3239
    %v3241 = vpop.f32.mrf.mxu0
    %v3242 = vadd.f32 %v285, %v3241
    %3243 = vmatmul.bf16.gmra.mxu0 %v447
    %v3244 = vpop.f32.mrf.mxu0
    %v3245 = vadd.f32 %v285, %v3244
    %v3246 = vpop.f32.mrf.mxu0
    %v3247 = vadd.f32 %v285, %v3246
    %3248 = vmatmul.bf16.gmra.mxu0 %v448
    %v3249 = vpop.f32.mrf.mxu0
    %v3250 = vadd.f32 %v285, %v3249
    %v3251 = vpop.f32.mrf.mxu0
    %v3252 = vadd.f32 %v285, %v3251
    %3253 = vmatmul.bf16.gmra.mxu0 %v449
    %v3254 = vpop.f32.mrf.mxu0
    %v3255 = vadd.f32 %v285, %v3254
    %v3256 = vpop.f32.mrf.mxu0
    %v3257 = vadd.f32 %v285, %v3256
    %3258 = vmatmul.bf16.gmra.mxu0 %v450
    %v3259 = vpop.f32.mrf.mxu0
    %v3260 = vadd.f32 %v285, %v3259
    %v3261 = vpop.f32.mrf.mxu0
    %v3262 = vadd.f32 %v285, %v3261
    %3263 = vmatmul.bf16.gmra.mxu0 %v451
    %v3264 = vpop.f32.mrf.mxu0
    %v3265 = vadd.f32 %v285, %v3264
    %v3266 = vpop.f32.mrf.mxu0
    %v3267 = vadd.f32 %v285, %v3266
    %3268 = vmatmul.bf16.gmra.mxu0 %v452
    %v3269 = vpop.f32.mrf.mxu0
    %v3270 = vadd.f32 %v285, %v3269
    %v3271 = vpop.f32.mrf.mxu0
    %v3272 = vadd.f32 %v285, %v3271
    %3273 = vmatmul.bf16.gmra.mxu0 %v453
    %v3274 = vpop.f32.mrf.mxu0
    %v3275 = vadd.f32 %v285, %v3274
    %v3276 = vpop.f32.mrf.mxu0
    %v3277 = vadd.f32 %v285, %v3276
    %3278 = vmatmul.bf16.gmra.mxu0 %v454
    %v3279 = vpop.f32.mrf.mxu0
    %v3280 = vadd.f32 %v285, %v3279
    %v3281 = vpop.f32.mrf.mxu0
    %v3282 = vadd.f32 %v285, %v3281
    %3283 = vmatmul.bf16.gmra.mxu0 %v455
    %v3284 = vpop.f32.mrf.mxu0
    %v3285 = vadd.f32 %v285, %v3284
    %v3286 = vpop.f32.mrf.mxu0
    %v3287 = vadd.f32 %v285, %v3286
    %3288 = vmatmul.bf16.gmra.mxu0 %v456
    %v3289 = vpop.f32.mrf.mxu0
    %v3290 = vadd.f32 %v285, %v3289
    %v3291 = vpop.f32.mrf.mxu0
    %v3292 = vadd.f32 %v285, %v3291
    %3293 = vmatmul.bf16.gmra.mxu0 %v457
    %v3294 = vpop.f32.mrf.mxu0
    %v3295 = vadd.f32 %v285, %v3294
    %v3296 = vpop.f32.mrf.mxu0
    %v3297 = vadd.f32 %v285, %v3296
    %3298 = vmatmul.bf16.gmra.mxu0 %v458
    %v3299 = vpop.f32.mrf.mxu0
    %v3300 = vadd.f32 %v285, %v3299
    %v3301 = vpop.f32.mrf.mxu0
    %v3302 = vadd.f32 %v285, %v3301
    %3303 = vmatmul.bf16.gmra.mxu0 %v459
    %v3304 = vpop.f32.mrf.mxu0
    %v3305 = vadd.f32 %v285, %v3304
    %v3306 = vpop.f32.mrf.mxu0
    %v3307 = vadd.f32 %v285, %v3306
    %3308 = vmatmul.bf16.gmra.mxu0 %v460
    %v3309 = vpop.f32.mrf.mxu0
    %v3310 = vadd.f32 %v285, %v3309
    %v3311 = vpop.f32.mrf.mxu0
    %v3312 = vadd.f32 %v285, %v3311
    %3313 = vmatmul.bf16.gmra.mxu0 %v461
    %v3314 = vpop.f32.mrf.mxu0
    %v3315 = vadd.f32 %v285, %v3314
    %v3316 = vpop.f32.mrf.mxu0
    %v3317 = vadd.f32 %v285, %v3316
    %3318 = vmatmul.bf16.gmra.mxu0 %v462
    %v3319 = vpop.f32.mrf.mxu0
    %v3320 = vadd.f32 %v285, %v3319
    %v3321 = vpop.f32.mrf.mxu0
    %v3322 = vadd.f32 %v285, %v3321
    %3323 = vmatmul.bf16.gmra.mxu0 %v463
    %v3324 = vpop.f32.mrf.mxu0
    %v3325 = vadd.f32 %v285, %v3324
    %v3326 = vpop.f32.mrf.mxu0
    %v3327 = vadd.f32 %v285, %v3326
    %3328 = vmatmul.bf16.gmra.mxu0 %v464
    %v3329 = vpop.f32.mrf.mxu0
    %v3330 = vadd.f32 %v285, %v3329
    %v3331 = vpop.f32.mrf.mxu0
    %v3332 = vadd.f32 %v285, %v3331
    %3333 = vdwg.mxu0
    %3334 = vmatpush.bf16.msra.mxu0 %v1006
    %3335 = vmatpush.bf16.msra.mxu0 %v990
    %3336 = vmatpush.bf16.msra.mxu0 %v974
    %3337 = vmatpush.bf16.msra.mxu0 %v958
    %3338 = vmatpush.bf16.msra.mxu0 %v942
    %3339 = vmatpush.bf16.msra.mxu0 %v926
    %3340 = vmatpush.bf16.msra.mxu0 %v910
    %3341 = vmatpush.bf16.msra.mxu0 %v894
    %3342 = vmatmul.bf16.gmra.mxu0 %v433
    %v3343 = vpop.f32.mrf.mxu0
    %v3344 = vadd.f32 %v286, %v3343
    %v3345 = vpop.f32.mrf.mxu0
    %v3346 = vadd.f32 %v286, %v3345
    %3347 = vmatmul.bf16.gmra.mxu0 %v434
    %v3348 = vpop.f32.mrf.mxu0
    %v3349 = vadd.f32 %v286, %v3348
    %v3350 = vpop.f32.mrf.mxu0
    %v3351 = vadd.f32 %v286, %v3350
    %3352 = vmatmul.bf16.gmra.mxu0 %v435
    %v3353 = vpop.f32.mrf.mxu0
    %v3354 = vadd.f32 %v286, %v3353
    %v3355 = vpop.f32.mrf.mxu0
    %v3356 = vadd.f32 %v286, %v3355
    %3357 = vmatmul.bf16.gmra.mxu0 %v436
    %v3358 = vpop.f32.mrf.mxu0
    %v3359 = vadd.f32 %v286, %v3358
    %v3360 = vpop.f32.mrf.mxu0
    %v3361 = vadd.f32 %v286, %v3360
    %3362 = vmatmul.bf16.gmra.mxu0 %v437
    %v3363 = vpop.f32.mrf.mxu0
    %v3364 = vadd.f32 %v286, %v3363
    %v3365 = vpop.f32.mrf.mxu0
    %v3366 = vadd.f32 %v286, %v3365
    %3367 = vmatmul.bf16.gmra.mxu0 %v438
    %v3368 = vpop.f32.mrf.mxu0
    %v3369 = vadd.f32 %v286, %v3368
    %v3370 = vpop.f32.mrf.mxu0
    %v3371 = vadd.f32 %v286, %v3370
    %3372 = vmatmul.bf16.gmra.mxu0 %v439
    %v3373 = vpop.f32.mrf.mxu0
    %v3374 = vadd.f32 %v286, %v3373
    %v3375 = vpop.f32.mrf.mxu0
    %v3376 = vadd.f32 %v286, %v3375
    %3377 = vmatmul.bf16.gmra.mxu0 %v440
    %v3378 = vpop.f32.mrf.mxu0
    %v3379 = vadd.f32 %v286, %v3378
    %v3380 = vpop.f32.mrf.mxu0
    %v3381 = vadd.f32 %v286, %v3380
    %3382 = vmatmul.bf16.gmra.mxu0 %v441
    %v3383 = vpop.f32.mrf.mxu0
    %v3384 = vadd.f32 %v286, %v3383
    %v3385 = vpop.f32.mrf.mxu0
    %v3386 = vadd.f32 %v286, %v3385
    %3387 = vmatmul.bf16.gmra.mxu0 %v442
    %v3388 = vpop.f32.mrf.mxu0
    %v3389 = vadd.f32 %v286, %v3388
    %v3390 = vpop.f32.mrf.mxu0
    %v3391 = vadd.f32 %v286, %v3390
    %3392 = vmatmul.bf16.gmra.mxu0 %v443
    %v3393 = vpop.f32.mrf.mxu0
    %v3394 = vadd.f32 %v286, %v3393
    %v3395 = vpop.f32.mrf.mxu0
    %v3396 = vadd.f32 %v286, %v3395
    %3397 = vmatmul.bf16.gmra.mxu0 %v444
    %v3398 = vpop.f32.mrf.mxu0
    %v3399 = vadd.f32 %v286, %v3398
    %v3400 = vpop.f32.mrf.mxu0
    %v3401 = vadd.f32 %v286, %v3400
    %3402 = vmatmul.bf16.gmra.mxu0 %v445
    %v3403 = vpop.f32.mrf.mxu0
    %v3404 = vadd.f32 %v286, %v3403
    %v3405 = vpop.f32.mrf.mxu0
    %v3406 = vadd.f32 %v286, %v3405
    %3407 = vmatmul.bf16.gmra.mxu0 %v446
    %v3408 = vpop.f32.mrf.mxu0
    %v3409 = vadd.f32 %v286, %v3408
    %v3410 = vpop.f32.mrf.mxu0
    %v3411 = vadd.f32 %v286, %v3410
    %3412 = vmatmul.bf16.gmra.mxu0 %v447
    %v3413 = vpop.f32.mrf.mxu0
    %v3414 = vadd.f32 %v286, %v3413
    %v3415 = vpop.f32.mrf.mxu0
    %v3416 = vadd.f32 %v286, %v3415
    %3417 = vmatmul.bf16.gmra.mxu0 %v448
    %v3418 = vpop.f32.mrf.mxu0
    %v3419 = vadd.f32 %v286, %v3418
    %v3420 = vpop.f32.mrf.mxu0
    %v3421 = vadd.f32 %v286, %v3420
    %3422 = vmatmul.bf16.gmra.mxu0 %v449
    %v3423 = vpop.f32.mrf.mxu0
    %v3424 = vadd.f32 %v286, %v3423
    %v3425 = vpop.f32.mrf.mxu0
    %v3426 = vadd.f32 %v286, %v3425
    %3427 = vmatmul.bf16.gmra.mxu0 %v450
    %v3428 = vpop.f32.mrf.mxu0
    %v3429 = vadd.f32 %v286, %v3428
    %v3430 = vpop.f32.mrf.mxu0
    %v3431 = vadd.f32 %v286, %v3430
    %3432 = vmatmul.bf16.gmra.mxu0 %v451
    %v3433 = vpop.f32.mrf.mxu0
    %v3434 = vadd.f32 %v286, %v3433
    %v3435 = vpop.f32.mrf.mxu0
    %v3436 = vadd.f32 %v286, %v3435
    %3437 = vmatmul.bf16.gmra.mxu0 %v452
    %v3438 = vpop.f32.mrf.mxu0
    %v3439 = vadd.f32 %v286, %v3438
    %v3440 = vpop.f32.mrf.mxu0
    %v3441 = vadd.f32 %v286, %v3440
    %3442 = vmatmul.bf16.gmra.mxu0 %v453
    %v3443 = vpop.f32.mrf.mxu0
    %v3444 = vadd.f32 %v286, %v3443
    %v3445 = vpop.f32.mrf.mxu0
    %v3446 = vadd.f32 %v286, %v3445
    %3447 = vmatmul.bf16.gmra.mxu0 %v454
    %v3448 = vpop.f32.mrf.mxu0
    %v3449 = vadd.f32 %v286, %v3448
    %v3450 = vpop.f32.mrf.mxu0
    %v3451 = vadd.f32 %v286, %v3450
    %3452 = vmatmul.bf16.gmra.mxu0 %v455
    %v3453 = vpop.f32.mrf.mxu0
    %v3454 = vadd.f32 %v286, %v3453
    %v3455 = vpop.f32.mrf.mxu0
    %v3456 = vadd.f32 %v286, %v3455
    %3457 = vmatmul.bf16.gmra.mxu0 %v456
    %v3458 = vpop.f32.mrf.mxu0
    %v3459 = vadd.f32 %v286, %v3458
    %v3460 = vpop.f32.mrf.mxu0
    %v3461 = vadd.f32 %v286, %v3460
    %3462 = vmatmul.bf16.gmra.mxu0 %v457
    %v3463 = vpop.f32.mrf.mxu0
    %v3464 = vadd.f32 %v286, %v3463
    %v3465 = vpop.f32.mrf.mxu0
    %v3466 = vadd.f32 %v286, %v3465
    %3467 = vmatmul.bf16.gmra.mxu0 %v458
    %v3468 = vpop.f32.mrf.mxu0
    %v3469 = vadd.f32 %v286, %v3468
    %v3470 = vpop.f32.mrf.mxu0
    %v3471 = vadd.f32 %v286, %v3470
    %3472 = vmatmul.bf16.gmra.mxu0 %v459
    %v3473 = vpop.f32.mrf.mxu0
    %v3474 = vadd.f32 %v286, %v3473
    %v3475 = vpop.f32.mrf.mxu0
    %v3476 = vadd.f32 %v286, %v3475
    %3477 = vmatmul.bf16.gmra.mxu0 %v460
    %v3478 = vpop.f32.mrf.mxu0
    %v3479 = vadd.f32 %v286, %v3478
    %v3480 = vpop.f32.mrf.mxu0
    %v3481 = vadd.f32 %v286, %v3480
    %3482 = vmatmul.bf16.gmra.mxu0 %v461
    %v3483 = vpop.f32.mrf.mxu0
    %v3484 = vadd.f32 %v286, %v3483
    %v3485 = vpop.f32.mrf.mxu0
    %v3486 = vadd.f32 %v286, %v3485
    %3487 = vmatmul.bf16.gmra.mxu0 %v462
    %v3488 = vpop.f32.mrf.mxu0
    %v3489 = vadd.f32 %v286, %v3488
    %v3490 = vpop.f32.mrf.mxu0
    %v3491 = vadd.f32 %v286, %v3490
    %3492 = vmatmul.bf16.gmra.mxu0 %v463
    %v3493 = vpop.f32.mrf.mxu0
    %v3494 = vadd.f32 %v286, %v3493
    %v3495 = vpop.f32.mrf.mxu0
    %v3496 = vadd.f32 %v286, %v3495
    %3497 = vmatmul.bf16.gmra.mxu0 %v464
    %v3498 = vpop.f32.mrf.mxu0
    %v3499 = vadd.f32 %v286, %v3498
    %v3500 = vpop.f32.mrf.mxu0
    %v3501 = vadd.f32 %v286, %v3500
    %3502 = vdwg.mxu0
    %3503 = vmatpush.bf16.msra.mxu0 %v1007
    %3504 = vmatpush.bf16.msra.mxu0 %v991
    %3505 = vmatpush.bf16.msra.mxu0 %v975
    %3506 = vmatpush.bf16.msra.mxu0 %v959
    %3507 = vmatpush.bf16.msra.mxu0 %v943
    %3508 = vmatpush.bf16.msra.mxu0 %v927
    %3509 = vmatpush.bf16.msra.mxu0 %v911
    %3510 = vmatpush.bf16.msra.mxu0 %v895
    %3511 = vmatmul.bf16.gmra.mxu0 %v433
    %v3512 = vpop.f32.mrf.mxu0
    %v3513 = vadd.f32 %v287, %v3512
    %v3514 = vpop.f32.mrf.mxu0
    %v3515 = vadd.f32 %v287, %v3514
    %3516 = vmatmul.bf16.gmra.mxu0 %v434
    %v3517 = vpop.f32.mrf.mxu0
    %v3518 = vadd.f32 %v287, %v3517
    %v3519 = vpop.f32.mrf.mxu0
    %v3520 = vadd.f32 %v287, %v3519
    %3521 = vmatmul.bf16.gmra.mxu0 %v435
    %v3522 = vpop.f32.mrf.mxu0
    %v3523 = vadd.f32 %v287, %v3522
    %v3524 = vpop.f32.mrf.mxu0
    %v3525 = vadd.f32 %v287, %v3524
    %3526 = vmatmul.bf16.gmra.mxu0 %v436
    %v3527 = vpop.f32.mrf.mxu0
    %v3528 = vadd.f32 %v287, %v3527
    %v3529 = vpop.f32.mrf.mxu0
    %v3530 = vadd.f32 %v287, %v3529
    %3531 = vmatmul.bf16.gmra.mxu0 %v437
    %v3532 = vpop.f32.mrf.mxu0
    %v3533 = vadd.f32 %v287, %v3532
    %v3534 = vpop.f32.mrf.mxu0
    %v3535 = vadd.f32 %v287, %v3534
    %3536 = vmatmul.bf16.gmra.mxu0 %v438
    %v3537 = vpop.f32.mrf.mxu0
    %v3538 = vadd.f32 %v287, %v3537
    %v3539 = vpop.f32.mrf.mxu0
    %v3540 = vadd.f32 %v287, %v3539
    %3541 = vmatmul.bf16.gmra.mxu0 %v439
    %v3542 = vpop.f32.mrf.mxu0
    %v3543 = vadd.f32 %v287, %v3542
    %v3544 = vpop.f32.mrf.mxu0
    %v3545 = vadd.f32 %v287, %v3544
    %3546 = vmatmul.bf16.gmra.mxu0 %v440
    %v3547 = vpop.f32.mrf.mxu0
    %v3548 = vadd.f32 %v287, %v3547
    %v3549 = vpop.f32.mrf.mxu0
    %v3550 = vadd.f32 %v287, %v3549
    %3551 = vmatmul.bf16.gmra.mxu0 %v441
    %v3552 = vpop.f32.mrf.mxu0
    %v3553 = vadd.f32 %v287, %v3552
    %v3554 = vpop.f32.mrf.mxu0
    %v3555 = vadd.f32 %v287, %v3554
    %3556 = vmatmul.bf16.gmra.mxu0 %v442
    %v3557 = vpop.f32.mrf.mxu0
    %v3558 = vadd.f32 %v287, %v3557
    %v3559 = vpop.f32.mrf.mxu0
    %v3560 = vadd.f32 %v287, %v3559
    %3561 = vmatmul.bf16.gmra.mxu0 %v443
    %v3562 = vpop.f32.mrf.mxu0
    %v3563 = vadd.f32 %v287, %v3562
    %v3564 = vpop.f32.mrf.mxu0
    %v3565 = vadd.f32 %v287, %v3564
    %3566 = vmatmul.bf16.gmra.mxu0 %v444
    %v3567 = vpop.f32.mrf.mxu0
    %v3568 = vadd.f32 %v287, %v3567
    %v3569 = vpop.f32.mrf.mxu0
    %v3570 = vadd.f32 %v287, %v3569
    %3571 = vmatmul.bf16.gmra.mxu0 %v445
    %v3572 = vpop.f32.mrf.mxu0
    %v3573 = vadd.f32 %v287, %v3572
    %v3574 = vpop.f32.mrf.mxu0
    %v3575 = vadd.f32 %v287, %v3574
    %3576 = vmatmul.bf16.gmra.mxu0 %v446
    %v3577 = vpop.f32.mrf.mxu0
    %v3578 = vadd.f32 %v287, %v3577
    %v3579 = vpop.f32.mrf.mxu0
    %v3580 = vadd.f32 %v287, %v3579
    %3581 = vmatmul.bf16.gmra.mxu0 %v447
    %v3582 = vpop.f32.mrf.mxu0
    %v3583 = vadd.f32 %v287, %v3582
    %v3584 = vpop.f32.mrf.mxu0
    %v3585 = vadd.f32 %v287, %v3584
    %3586 = vmatmul.bf16.gmra.mxu0 %v448
    %v3587 = vpop.f32.mrf.mxu0
    %v3588 = vadd.f32 %v287, %v3587
    %v3589 = vpop.f32.mrf.mxu0
    %v3590 = vadd.f32 %v287, %v3589
    %3591 = vmatmul.bf16.gmra.mxu0 %v449
    %v3592 = vpop.f32.mrf.mxu0
    %v3593 = vadd.f32 %v287, %v3592
    %v3594 = vpop.f32.mrf.mxu0
    %v3595 = vadd.f32 %v287, %v3594
    %3596 = vmatmul.bf16.gmra.mxu0 %v450
    %v3597 = vpop.f32.mrf.mxu0
    %v3598 = vadd.f32 %v287, %v3597
    %v3599 = vpop.f32.mrf.mxu0
    %v3600 = vadd.f32 %v287, %v3599
    %3601 = vmatmul.bf16.gmra.mxu0 %v451
    %v3602 = vpop.f32.mrf.mxu0
    %v3603 = vadd.f32 %v287, %v3602
    %v3604 = vpop.f32.mrf.mxu0
    %v3605 = vadd.f32 %v287, %v3604
    %3606 = vmatmul.bf16.gmra.mxu0 %v452
    %v3607 = vpop.f32.mrf.mxu0
    %v3608 = vadd.f32 %v287, %v3607
    %v3609 = vpop.f32.mrf.mxu0
    %v3610 = vadd.f32 %v287, %v3609
    %3611 = vmatmul.bf16.gmra.mxu0 %v453
    %v3612 = vpop.f32.mrf.mxu0
    %v3613 = vadd.f32 %v287, %v3612
    %v3614 = vpop.f32.mrf.mxu0
    %v3615 = vadd.f32 %v287, %v3614
    %3616 = vmatmul.bf16.gmra.mxu0 %v454
    %v3617 = vpop.f32.mrf.mxu0
    %v3618 = vadd.f32 %v287, %v3617
    %v3619 = vpop.f32.mrf.mxu0
    %v3620 = vadd.f32 %v287, %v3619
    %3621 = vmatmul.bf16.gmra.mxu0 %v455
    %v3622 = vpop.f32.mrf.mxu0
    %v3623 = vadd.f32 %v287, %v3622
    %v3624 = vpop.f32.mrf.mxu0
    %v3625 = vadd.f32 %v287, %v3624
    %3626 = vmatmul.bf16.gmra.mxu0 %v456
    %v3627 = vpop.f32.mrf.mxu0
    %v3628 = vadd.f32 %v287, %v3627
    %v3629 = vpop.f32.mrf.mxu0
    %v3630 = vadd.f32 %v287, %v3629
    %3631 = vmatmul.bf16.gmra.mxu0 %v457
    %v3632 = vpop.f32.mrf.mxu0
    %v3633 = vadd.f32 %v287, %v3632
    %v3634 = vpop.f32.mrf.mxu0
    %v3635 = vadd.f32 %v287, %v3634
    %3636 = vmatmul.bf16.gmra.mxu0 %v458
    %v3637 = vpop.f32.mrf.mxu0
    %v3638 = vadd.f32 %v287, %v3637
    %v3639 = vpop.f32.mrf.mxu0
    %v3640 = vadd.f32 %v287, %v3639
    %3641 = vmatmul.bf16.gmra.mxu0 %v459
    %v3642 = vpop.f32.mrf.mxu0
    %v3643 = vadd.f32 %v287, %v3642
    %v3644 = vpop.f32.mrf.mxu0
    %v3645 = vadd.f32 %v287, %v3644
    %3646 = vmatmul.bf16.gmra.mxu0 %v460
    %v3647 = vpop.f32.mrf.mxu0
    %v3648 = vadd.f32 %v287, %v3647
    %v3649 = vpop.f32.mrf.mxu0
    %v3650 = vadd.f32 %v287, %v3649
    %3651 = vmatmul.bf16.gmra.mxu0 %v461
    %v3652 = vpop.f32.mrf.mxu0
    %v3653 = vadd.f32 %v287, %v3652
    %v3654 = vpop.f32.mrf.mxu0
    %v3655 = vadd.f32 %v287, %v3654
    %3656 = vmatmul.bf16.gmra.mxu0 %v462
    %v3657 = vpop.f32.mrf.mxu0
    %v3658 = vadd.f32 %v287, %v3657
    %v3659 = vpop.f32.mrf.mxu0
    %v3660 = vadd.f32 %v287, %v3659
    %3661 = vmatmul.bf16.gmra.mxu0 %v463
    %v3662 = vpop.f32.mrf.mxu0
    %v3663 = vadd.f32 %v287, %v3662
    %v3664 = vpop.f32.mrf.mxu0
    %v3665 = vadd.f32 %v287, %v3664
    %3666 = vmatmul.bf16.gmra.mxu0 %v464
    %v3667 = vpop.f32.mrf.mxu0
    %v3668 = vadd.f32 %v287, %v3667
    %v3669 = vpop.f32.mrf.mxu0
    %v3670 = vadd.f32 %v287, %v3669
    %3671 = vdwg.mxu0
    %3672 = vmatpush.bf16.msra.mxu0 %v1008
    %3673 = vmatpush.bf16.msra.mxu0 %v992
    %3674 = vmatpush.bf16.msra.mxu0 %v976
    %3675 = vmatpush.bf16.msra.mxu0 %v960
    %3676 = vmatpush.bf16.msra.mxu0 %v944
    %3677 = vmatpush.bf16.msra.mxu0 %v928
    %3678 = vmatpush.bf16.msra.mxu0 %v912
    %3679 = vmatpush.bf16.msra.mxu0 %v896
    %3680 = vmatmul.bf16.gmra.mxu0 %v433
    %v3681 = vpop.f32.mrf.mxu0
    %v3682 = vadd.f32 %v288, %v3681
    %v3683 = vpop.f32.mrf.mxu0
    %v3684 = vadd.f32 %v288, %v3683
    %3685 = vmatmul.bf16.gmra.mxu0 %v434
    %v3686 = vpop.f32.mrf.mxu0
    %v3687 = vadd.f32 %v288, %v3686
    %v3688 = vpop.f32.mrf.mxu0
    %v3689 = vadd.f32 %v288, %v3688
    %3690 = vmatmul.bf16.gmra.mxu0 %v435
    %v3691 = vpop.f32.mrf.mxu0
    %v3692 = vadd.f32 %v288, %v3691
    %v3693 = vpop.f32.mrf.mxu0
    %v3694 = vadd.f32 %v288, %v3693
    %3695 = vmatmul.bf16.gmra.mxu0 %v436
    %v3696 = vpop.f32.mrf.mxu0
    %v3697 = vadd.f32 %v288, %v3696
    %v3698 = vpop.f32.mrf.mxu0
    %v3699 = vadd.f32 %v288, %v3698
    %3700 = vmatmul.bf16.gmra.mxu0 %v437
    %v3701 = vpop.f32.mrf.mxu0
    %v3702 = vadd.f32 %v288, %v3701
    %v3703 = vpop.f32.mrf.mxu0
    %v3704 = vadd.f32 %v288, %v3703
    %3705 = vmatmul.bf16.gmra.mxu0 %v438
    %v3706 = vpop.f32.mrf.mxu0
    %v3707 = vadd.f32 %v288, %v3706
    %v3708 = vpop.f32.mrf.mxu0
    %v3709 = vadd.f32 %v288, %v3708
    %3710 = vmatmul.bf16.gmra.mxu0 %v439
    %v3711 = vpop.f32.mrf.mxu0
    %v3712 = vadd.f32 %v288, %v3711
    %v3713 = vpop.f32.mrf.mxu0
    %v3714 = vadd.f32 %v288, %v3713
    %3715 = vmatmul.bf16.gmra.mxu0 %v440
    %v3716 = vpop.f32.mrf.mxu0
    %v3717 = vadd.f32 %v288, %v3716
    %v3718 = vpop.f32.mrf.mxu0
    %v3719 = vadd.f32 %v288, %v3718
    %3720 = vmatmul.bf16.gmra.mxu0 %v441
    %v3721 = vpop.f32.mrf.mxu0
    %v3722 = vadd.f32 %v288, %v3721
    %v3723 = vpop.f32.mrf.mxu0
    %v3724 = vadd.f32 %v288, %v3723
    %3725 = vmatmul.bf16.gmra.mxu0 %v442
    %v3726 = vpop.f32.mrf.mxu0
    %v3727 = vadd.f32 %v288, %v3726
    %v3728 = vpop.f32.mrf.mxu0
    %v3729 = vadd.f32 %v288, %v3728
    %3730 = vmatmul.bf16.gmra.mxu0 %v443
    %v3731 = vpop.f32.mrf.mxu0
    %v3732 = vadd.f32 %v288, %v3731
    %v3733 = vpop.f32.mrf.mxu0
    %v3734 = vadd.f32 %v288, %v3733
    %3735 = vmatmul.bf16.gmra.mxu0 %v444
    %v3736 = vpop.f32.mrf.mxu0
    %v3737 = vadd.f32 %v288, %v3736
    %v3738 = vpop.f32.mrf.mxu0
    %v3739 = vadd.f32 %v288, %v3738
    %3740 = vmatmul.bf16.gmra.mxu0 %v445
    %v3741 = vpop.f32.mrf.mxu0
    %v3742 = vadd.f32 %v288, %v3741
    %v3743 = vpop.f32.mrf.mxu0
    %v3744 = vadd.f32 %v288, %v3743
    %3745 = vmatmul.bf16.gmra.mxu0 %v446
    %v3746 = vpop.f32.mrf.mxu0
    %v3747 = vadd.f32 %v288, %v3746
    %v3748 = vpop.f32.mrf.mxu0
    %v3749 = vadd.f32 %v288, %v3748
    %3750 = vmatmul.bf16.gmra.mxu0 %v447
    %v3751 = vpop.f32.mrf.mxu0
    %v3752 = vadd.f32 %v288, %v3751
    %v3753 = vpop.f32.mrf.mxu0
    %v3754 = vadd.f32 %v288, %v3753
    %3755 = vmatmul.bf16.gmra.mxu0 %v448
    %v3756 = vpop.f32.mrf.mxu0
    %v3757 = vadd.f32 %v288, %v3756
    %v3758 = vpop.f32.mrf.mxu0
    %v3759 = vadd.f32 %v288, %v3758
    %3760 = vmatmul.bf16.gmra.mxu0 %v449
    %v3761 = vpop.f32.mrf.mxu0
    %v3762 = vadd.f32 %v288, %v3761
    %v3763 = vpop.f32.mrf.mxu0
    %v3764 = vadd.f32 %v288, %v3763
    %3765 = vmatmul.bf16.gmra.mxu0 %v450
    %v3766 = vpop.f32.mrf.mxu0
    %v3767 = vadd.f32 %v288, %v3766
    %v3768 = vpop.f32.mrf.mxu0
    %v3769 = vadd.f32 %v288, %v3768
    %3770 = vmatmul.bf16.gmra.mxu0 %v451
    %v3771 = vpop.f32.mrf.mxu0
    %v3772 = vadd.f32 %v288, %v3771
    %v3773 = vpop.f32.mrf.mxu0
    %v3774 = vadd.f32 %v288, %v3773
    %3775 = vmatmul.bf16.gmra.mxu0 %v452
    %v3776 = vpop.f32.mrf.mxu0
    %v3777 = vadd.f32 %v288, %v3776
    %v3778 = vpop.f32.mrf.mxu0
    %v3779 = vadd.f32 %v288, %v3778
    %3780 = vmatmul.bf16.gmra.mxu0 %v453
    %v3781 = vpop.f32.mrf.mxu0
    %v3782 = vadd.f32 %v288, %v3781
    %v3783 = vpop.f32.mrf.mxu0
    %v3784 = vadd.f32 %v288, %v3783
    %3785 = vmatmul.bf16.gmra.mxu0 %v454
    %v3786 = vpop.f32.mrf.mxu0
    %v3787 = vadd.f32 %v288, %v3786
    %v3788 = vpop.f32.mrf.mxu0
    %v3789 = vadd.f32 %v288, %v3788
    %3790 = vmatmul.bf16.gmra.mxu0 %v455
    %v3791 = vpop.f32.mrf.mxu0
    %v3792 = vadd.f32 %v288, %v3791
    %v3793 = vpop.f32.mrf.mxu0
    %v3794 = vadd.f32 %v288, %v3793
    %3795 = vmatmul.bf16.gmra.mxu0 %v456
    %v3796 = vpop.f32.mrf.mxu0
    %v3797 = vadd.f32 %v288, %v3796
    %v3798 = vpop.f32.mrf.mxu0
    %v3799 = vadd.f32 %v288, %v3798
    %3800 = vmatmul.bf16.gmra.mxu0 %v457
    %v3801 = vpop.f32.mrf.mxu0
    %v3802 = vadd.f32 %v288, %v3801
    %v3803 = vpop.f32.mrf.mxu0
    %v3804 = vadd.f32 %v288, %v3803
    %3805 = vmatmul.bf16.gmra.mxu0 %v458
    %v3806 = vpop.f32.mrf.mxu0
    %v3807 = vadd.f32 %v288, %v3806
    %v3808 = vpop.f32.mrf.mxu0
    %v3809 = vadd.f32 %v288, %v3808
    %3810 = vmatmul.bf16.gmra.mxu0 %v459
    %v3811 = vpop.f32.mrf.mxu0
    %v3812 = vadd.f32 %v288, %v3811
    %v3813 = vpop.f32.mrf.mxu0
    %v3814 = vadd.f32 %v288, %v3813
    %3815 = vmatmul.bf16.gmra.mxu0 %v460
    %v3816 = vpop.f32.mrf.mxu0
    %v3817 = vadd.f32 %v288, %v3816
    %v3818 = vpop.f32.mrf.mxu0
    %v3819 = vadd.f32 %v288, %v3818
    %3820 = vmatmul.bf16.gmra.mxu0 %v461
    %v3821 = vpop.f32.mrf.mxu0
    %v3822 = vadd.f32 %v288, %v3821
    %v3823 = vpop.f32.mrf.mxu0
    %v3824 = vadd.f32 %v288, %v3823
    %3825 = vmatmul.bf16.gmra.mxu0 %v462
    %v3826 = vpop.f32.mrf.mxu0
    %v3827 = vadd.f32 %v288, %v3826
    %v3828 = vpop.f32.mrf.mxu0
    %v3829 = vadd.f32 %v288, %v3828
    %3830 = vmatmul.bf16.gmra.mxu0 %v463
    %v3831 = vpop.f32.mrf.mxu0
    %v3832 = vadd.f32 %v288, %v3831
    %v3833 = vpop.f32.mrf.mxu0
    %v3834 = vadd.f32 %v288, %v3833
    %3835 = vmatmul.bf16.gmra.mxu0 %v464
    %v3836 = vpop.f32.mrf.mxu0
    %v3837 = vadd.f32 %v288, %v3836
    %v3838 = vpop.f32.mrf.mxu0
    %v3839 = vadd.f32 %v288, %v3838
    %3840 = vdwg.mxu0
    %v3841 = vmax.f32 %v1147, 0.0
    %v3842 = vmax.f32 %v1316, 0.0
    %v3843 = vmax.f32 %v1485, 0.0
    %v3844 = vmax.f32 %v1654, 0.0
    %v3845 = vmax.f32 %v1823, 0.0
    %v3846 = vmax.f32 %v1992, 0.0
    %v3847 = vmax.f32 %v2161, 0.0
    %v3848 = vmax.f32 %v2330, 0.0
    %v3849 = vmax.f32 %v2499, 0.0
    %v3850 = vmax.f32 %v2668, 0.0
    %v3851 = vmax.f32 %v2837, 0.0
    %v3852 = vmax.f32 %v3006, 0.0
    %v3853 = vmax.f32 %v3175, 0.0
    %v3854 = vmax.f32 %v3344, 0.0
    %v3855 = vmax.f32 %v3513, 0.0
    %v3856 = vmax.f32 %v3682, 0.0
    %v3857 = vmax.f32 %v1149, 0.0
    %v3858 = vmax.f32 %v1318, 0.0
    %v3859 = vmax.f32 %v1487, 0.0
    %v3860 = vmax.f32 %v1656, 0.0
    %v3861 = vmax.f32 %v1825, 0.0
    %v3862 = vmax.f32 %v1994, 0.0
    %v3863 = vmax.f32 %v2163, 0.0
    %v3864 = vmax.f32 %v2332, 0.0
    %v3865 = vmax.f32 %v2501, 0.0
    %v3866 = vmax.f32 %v2670, 0.0
    %v3867 = vmax.f32 %v2839, 0.0
    %v3868 = vmax.f32 %v3008, 0.0
    %v3869 = vmax.f32 %v3177, 0.0
    %v3870 = vmax.f32 %v3346, 0.0
    %v3871 = vmax.f32 %v3515, 0.0
    %v3872 = vmax.f32 %v3684, 0.0
    %v3873 = vmax.f32 %v1152, 0.0
    %v3874 = vmax.f32 %v1321, 0.0
    %v3875 = vmax.f32 %v1490, 0.0
    %v3876 = vmax.f32 %v1659, 0.0
    %v3877 = vmax.f32 %v1828, 0.0
    %v3878 = vmax.f32 %v1997, 0.0
    %v3879 = vmax.f32 %v2166, 0.0
    %v3880 = vmax.f32 %v2335, 0.0
    %v3881 = vmax.f32 %v2504, 0.0
    %v3882 = vmax.f32 %v2673, 0.0
    %v3883 = vmax.f32 %v2842, 0.0
    %v3884 = vmax.f32 %v3011, 0.0
    %v3885 = vmax.f32 %v3180, 0.0
    %v3886 = vmax.f32 %v3349, 0.0
    %v3887 = vmax.f32 %v3518, 0.0
    %v3888 = vmax.f32 %v3687, 0.0
    %v3889 = vmax.f32 %v1154, 0.0
    %v3890 = vmax.f32 %v1323, 0.0
    %v3891 = vmax.f32 %v1492, 0.0
    %v3892 = vmax.f32 %v1661, 0.0
    %v3893 = vmax.f32 %v1830, 0.0
    %v3894 = vmax.f32 %v1999, 0.0
    %v3895 = vmax.f32 %v2168, 0.0
    %v3896 = vmax.f32 %v2337, 0.0
    %v3897 = vmax.f32 %v2506, 0.0
    %v3898 = vmax.f32 %v2675, 0.0
    %v3899 = vmax.f32 %v2844, 0.0
    %v3900 = vmax.f32 %v3013, 0.0
    %v3901 = vmax.f32 %v3182, 0.0
    %v3902 = vmax.f32 %v3351, 0.0
    %v3903 = vmax.f32 %v3520, 0.0
    %v3904 = vmax.f32 %v3689, 0.0
    %v3905 = vmax.f32 %v1157, 0.0
    %v3906 = vmax.f32 %v1326, 0.0
    %v3907 = vmax.f32 %v1495, 0.0
    %v3908 = vmax.f32 %v1664, 0.0
    %v3909 = vmax.f32 %v1833, 0.0
    %v3910 = vmax.f32 %v2002, 0.0
    %v3911 = vmax.f32 %v2171, 0.0
    %v3912 = vmax.f32 %v2340, 0.0
    %v3913 = vmax.f32 %v2509, 0.0
    %v3914 = vmax.f32 %v2678, 0.0
    %v3915 = vmax.f32 %v2847, 0.0
    %v3916 = vmax.f32 %v3016, 0.0
    %v3917 = vmax.f32 %v3185, 0.0
    %v3918 = vmax.f32 %v3354, 0.0
    %v3919 = vmax.f32 %v3523, 0.0
    %v3920 = vmax.f32 %v3692, 0.0
    %v3921 = vmax.f32 %v1159, 0.0
    %v3922 = vmax.f32 %v1328, 0.0
    %v3923 = vmax.f32 %v1497, 0.0
    %v3924 = vmax.f32 %v1666, 0.0
    %v3925 = vmax.f32 %v1835, 0.0
    %v3926 = vmax.f32 %v2004, 0.0
    %v3927 = vmax.f32 %v2173, 0.0
    %v3928 = vmax.f32 %v2342, 0.0
    %v3929 = vmax.f32 %v2511, 0.0
    %v3930 = vmax.f32 %v2680, 0.0
    %v3931 = vmax.f32 %v2849, 0.0
    %v3932 = vmax.f32 %v3018, 0.0
    %v3933 = vmax.f32 %v3187, 0.0
    %v3934 = vmax.f32 %v3356, 0.0
    %v3935 = vmax.f32 %v3525, 0.0
    %v3936 = vmax.f32 %v3694, 0.0
    %v3937 = vmax.f32 %v1162, 0.0
    %v3938 = vmax.f32 %v1331, 0.0
    %v3939 = vmax.f32 %v1500, 0.0
    %v3940 = vmax.f32 %v1669, 0.0
    %v3941 = vmax.f32 %v1838, 0.0
    %v3942 = vmax.f32 %v2007, 0.0
    %v3943 = vmax.f32 %v2176, 0.0
    %v3944 = vmax.f32 %v2345, 0.0
    %v3945 = vmax.f32 %v2514, 0.0
    %v3946 = vmax.f32 %v2683, 0.0
    %v3947 = vmax.f32 %v2852, 0.0
    %v3948 = vmax.f32 %v3021, 0.0
    %v3949 = vmax.f32 %v3190, 0.0
    %v3950 = vmax.f32 %v3359, 0.0
    %v3951 = vmax.f32 %v3528, 0.0
    %v3952 = vmax.f32 %v3697, 0.0
    %v3953 = vmax.f32 %v1164, 0.0
    %v3954 = vmax.f32 %v1333, 0.0
    %v3955 = vmax.f32 %v1502, 0.0
    %v3956 = vmax.f32 %v1671, 0.0
    %v3957 = vmax.f32 %v1840, 0.0
    %v3958 = vmax.f32 %v2009, 0.0
    %v3959 = vmax.f32 %v2178, 0.0
    %v3960 = vmax.f32 %v2347, 0.0
    %v3961 = vmax.f32 %v2516, 0.0
    %v3962 = vmax.f32 %v2685, 0.0
    %v3963 = vmax.f32 %v2854, 0.0
    %v3964 = vmax.f32 %v3023, 0.0
    %v3965 = vmax.f32 %v3192, 0.0
    %v3966 = vmax.f32 %v3361, 0.0
    %v3967 = vmax.f32 %v3530, 0.0
    %v3968 = vmax.f32 %v3699, 0.0
    %v3969 = vmax.f32 %v1167, 0.0
    %v3970 = vmax.f32 %v1336, 0.0
    %v3971 = vmax.f32 %v1505, 0.0
    %v3972 = vmax.f32 %v1674, 0.0
    %v3973 = vmax.f32 %v1843, 0.0
    %v3974 = vmax.f32 %v2012, 0.0
    %v3975 = vmax.f32 %v2181, 0.0
    %v3976 = vmax.f32 %v2350, 0.0
    %v3977 = vmax.f32 %v2519, 0.0
    %v3978 = vmax.f32 %v2688, 0.0
    %v3979 = vmax.f32 %v2857, 0.0
    %v3980 = vmax.f32 %v3026, 0.0
    %v3981 = vmax.f32 %v3195, 0.0
    %v3982 = vmax.f32 %v3364, 0.0
    %v3983 = vmax.f32 %v3533, 0.0
    %v3984 = vmax.f32 %v3702, 0.0
    %v3985 = vmax.f32 %v1169, 0.0
    %v3986 = vmax.f32 %v1338, 0.0
    %v3987 = vmax.f32 %v1507, 0.0
    %v3988 = vmax.f32 %v1676, 0.0
    %v3989 = vmax.f32 %v1845, 0.0
    %v3990 = vmax.f32 %v2014, 0.0
    %v3991 = vmax.f32 %v2183, 0.0
    %v3992 = vmax.f32 %v2352, 0.0
    %v3993 = vmax.f32 %v2521, 0.0
    %v3994 = vmax.f32 %v2690, 0.0
    %v3995 = vmax.f32 %v2859, 0.0
    %v3996 = vmax.f32 %v3028, 0.0
    %v3997 = vmax.f32 %v3197, 0.0
    %v3998 = vmax.f32 %v3366, 0.0
    %v3999 = vmax.f32 %v3535, 0.0
    %v4000 = vmax.f32 %v3704, 0.0
    %v4001 = vmax.f32 %v1172, 0.0
    %v4002 = vmax.f32 %v1341, 0.0
    %v4003 = vmax.f32 %v1510, 0.0
    %v4004 = vmax.f32 %v1679, 0.0
    %v4005 = vmax.f32 %v1848, 0.0
    %v4006 = vmax.f32 %v2017, 0.0
    %v4007 = vmax.f32 %v2186, 0.0
    %v4008 = vmax.f32 %v2355, 0.0
    %v4009 = vmax.f32 %v2524, 0.0
    %v4010 = vmax.f32 %v2693, 0.0
    %v4011 = vmax.f32 %v2862, 0.0
    %v4012 = vmax.f32 %v3031, 0.0
    %v4013 = vmax.f32 %v3200, 0.0
    %v4014 = vmax.f32 %v3369, 0.0
    %v4015 = vmax.f32 %v3538, 0.0
    %v4016 = vmax.f32 %v3707, 0.0
    %v4017 = vmax.f32 %v1174, 0.0
    %v4018 = vmax.f32 %v1343, 0.0
    %v4019 = vmax.f32 %v1512, 0.0
    %v4020 = vmax.f32 %v1681, 0.0
    %v4021 = vmax.f32 %v1850, 0.0
    %v4022 = vmax.f32 %v2019, 0.0
    %v4023 = vmax.f32 %v2188, 0.0
    %v4024 = vmax.f32 %v2357, 0.0
    %v4025 = vmax.f32 %v2526, 0.0
    %v4026 = vmax.f32 %v2695, 0.0
    %v4027 = vmax.f32 %v2864, 0.0
    %v4028 = vmax.f32 %v3033, 0.0
    %v4029 = vmax.f32 %v3202, 0.0
    %v4030 = vmax.f32 %v3371, 0.0
    %v4031 = vmax.f32 %v3540, 0.0
    %v4032 = vmax.f32 %v3709, 0.0
    %v4033 = vmax.f32 %v1177, 0.0
    %v4034 = vmax.f32 %v1346, 0.0
    %v4035 = vmax.f32 %v1515, 0.0
    %v4036 = vmax.f32 %v1684, 0.0
    %v4037 = vmax.f32 %v1853, 0.0
    %v4038 = vmax.f32 %v2022, 0.0
    %v4039 = vmax.f32 %v2191, 0.0
    %v4040 = vmax.f32 %v2360, 0.0
    %v4041 = vmax.f32 %v2529, 0.0
    %v4042 = vmax.f32 %v2698, 0.0
    %v4043 = vmax.f32 %v2867, 0.0
    %v4044 = vmax.f32 %v3036, 0.0
    %v4045 = vmax.f32 %v3205, 0.0
    %v4046 = vmax.f32 %v3374, 0.0
    %v4047 = vmax.f32 %v3543, 0.0
    %v4048 = vmax.f32 %v3712, 0.0
    %v4049 = vmax.f32 %v1179, 0.0
    %v4050 = vmax.f32 %v1348, 0.0
    %v4051 = vmax.f32 %v1517, 0.0
    %v4052 = vmax.f32 %v1686, 0.0
    %v4053 = vmax.f32 %v1855, 0.0
    %v4054 = vmax.f32 %v2024, 0.0
    %v4055 = vmax.f32 %v2193, 0.0
    %v4056 = vmax.f32 %v2362, 0.0
    %v4057 = vmax.f32 %v2531, 0.0
    %v4058 = vmax.f32 %v2700, 0.0
    %v4059 = vmax.f32 %v2869, 0.0
    %v4060 = vmax.f32 %v3038, 0.0
    %v4061 = vmax.f32 %v3207, 0.0
    %v4062 = vmax.f32 %v3376, 0.0
    %v4063 = vmax.f32 %v3545, 0.0
    %v4064 = vmax.f32 %v3714, 0.0
    %v4065 = vmax.f32 %v1182, 0.0
    %v4066 = vmax.f32 %v1351, 0.0
    %v4067 = vmax.f32 %v1520, 0.0
    %v4068 = vmax.f32 %v1689, 0.0
    %v4069 = vmax.f32 %v1858, 0.0
    %v4070 = vmax.f32 %v2027, 0.0
    %v4071 = vmax.f32 %v2196, 0.0
    %v4072 = vmax.f32 %v2365, 0.0
    %v4073 = vmax.f32 %v2534, 0.0
    %v4074 = vmax.f32 %v2703, 0.0
    %v4075 = vmax.f32 %v2872, 0.0
    %v4076 = vmax.f32 %v3041, 0.0
    %v4077 = vmax.f32 %v3210, 0.0
    %v4078 = vmax.f32 %v3379, 0.0
    %v4079 = vmax.f32 %v3548, 0.0
    %v4080 = vmax.f32 %v3717, 0.0
    %v4081 = vmax.f32 %v1184, 0.0
    %v4082 = vmax.f32 %v1353, 0.0
    %v4083 = vmax.f32 %v1522, 0.0
    %v4084 = vmax.f32 %v1691, 0.0
    %v4085 = vmax.f32 %v1860, 0.0
    %v4086 = vmax.f32 %v2029, 0.0
    %v4087 = vmax.f32 %v2198, 0.0
    %v4088 = vmax.f32 %v2367, 0.0
    %v4089 = vmax.f32 %v2536, 0.0
    %v4090 = vmax.f32 %v2705, 0.0
    %v4091 = vmax.f32 %v2874, 0.0
    %v4092 = vmax.f32 %v3043, 0.0
    %v4093 = vmax.f32 %v3212, 0.0
    %v4094 = vmax.f32 %v3381, 0.0
    %v4095 = vmax.f32 %v3550, 0.0
    %v4096 = vmax.f32 %v3719, 0.0
    %v4097 = vmax.f32 %v1187, 0.0
    %v4098 = vmax.f32 %v1356, 0.0
    %v4099 = vmax.f32 %v1525, 0.0
    %v4100 = vmax.f32 %v1694, 0.0
    %v4101 = vmax.f32 %v1863, 0.0
    %v4102 = vmax.f32 %v2032, 0.0
    %v4103 = vmax.f32 %v2201, 0.0
    %v4104 = vmax.f32 %v2370, 0.0
    %v4105 = vmax.f32 %v2539, 0.0
    %v4106 = vmax.f32 %v2708, 0.0
    %v4107 = vmax.f32 %v2877, 0.0
    %v4108 = vmax.f32 %v3046, 0.0
    %v4109 = vmax.f32 %v3215, 0.0
    %v4110 = vmax.f32 %v3384, 0.0
    %v4111 = vmax.f32 %v3553, 0.0
    %v4112 = vmax.f32 %v3722, 0.0
    %v4113 = vmax.f32 %v1189, 0.0
    %v4114 = vmax.f32 %v1358, 0.0
    %v4115 = vmax.f32 %v1527, 0.0
    %v4116 = vmax.f32 %v1696, 0.0
    %v4117 = vmax.f32 %v1865, 0.0
    %v4118 = vmax.f32 %v2034, 0.0
    %v4119 = vmax.f32 %v2203, 0.0
    %v4120 = vmax.f32 %v2372, 0.0
    %v4121 = vmax.f32 %v2541, 0.0
    %v4122 = vmax.f32 %v2710, 0.0
    %v4123 = vmax.f32 %v2879, 0.0
    %v4124 = vmax.f32 %v3048, 0.0
    %v4125 = vmax.f32 %v3217, 0.0
    %v4126 = vmax.f32 %v3386, 0.0
    %v4127 = vmax.f32 %v3555, 0.0
    %v4128 = vmax.f32 %v3724, 0.0
    %v4129 = vmax.f32 %v1192, 0.0
    %v4130 = vmax.f32 %v1361, 0.0
    %v4131 = vmax.f32 %v1530, 0.0
    %v4132 = vmax.f32 %v1699, 0.0
    %v4133 = vmax.f32 %v1868, 0.0
    %v4134 = vmax.f32 %v2037, 0.0
    %v4135 = vmax.f32 %v2206, 0.0
    %v4136 = vmax.f32 %v2375, 0.0
    %v4137 = vmax.f32 %v2544, 0.0
    %v4138 = vmax.f32 %v2713, 0.0
    %v4139 = vmax.f32 %v2882, 0.0
    %v4140 = vmax.f32 %v3051, 0.0
    %v4141 = vmax.f32 %v3220, 0.0
    %v4142 = vmax.f32 %v3389, 0.0
    %v4143 = vmax.f32 %v3558, 0.0
    %v4144 = vmax.f32 %v3727, 0.0
    %v4145 = vmax.f32 %v1194, 0.0
    %v4146 = vmax.f32 %v1363, 0.0
    %v4147 = vmax.f32 %v1532, 0.0
    %v4148 = vmax.f32 %v1701, 0.0
    %v4149 = vmax.f32 %v1870, 0.0
    %v4150 = vmax.f32 %v2039, 0.0
    %v4151 = vmax.f32 %v2208, 0.0
    %v4152 = vmax.f32 %v2377, 0.0
    %v4153 = vmax.f32 %v2546, 0.0
    %v4154 = vmax.f32 %v2715, 0.0
    %v4155 = vmax.f32 %v2884, 0.0
    %v4156 = vmax.f32 %v3053, 0.0
    %v4157 = vmax.f32 %v3222, 0.0
    %v4158 = vmax.f32 %v3391, 0.0
    %v4159 = vmax.f32 %v3560, 0.0
    %v4160 = vmax.f32 %v3729, 0.0
    %v4161 = vmax.f32 %v1197, 0.0
    %v4162 = vmax.f32 %v1366, 0.0
    %v4163 = vmax.f32 %v1535, 0.0
    %v4164 = vmax.f32 %v1704, 0.0
    %v4165 = vmax.f32 %v1873, 0.0
    %v4166 = vmax.f32 %v2042, 0.0
    %v4167 = vmax.f32 %v2211, 0.0
    %v4168 = vmax.f32 %v2380, 0.0
    %v4169 = vmax.f32 %v2549, 0.0
    %v4170 = vmax.f32 %v2718, 0.0
    %v4171 = vmax.f32 %v2887, 0.0
    %v4172 = vmax.f32 %v3056, 0.0
    %v4173 = vmax.f32 %v3225, 0.0
    %v4174 = vmax.f32 %v3394, 0.0
    %v4175 = vmax.f32 %v3563, 0.0
    %v4176 = vmax.f32 %v3732, 0.0
    %v4177 = vmax.f32 %v1199, 0.0
    %v4178 = vmax.f32 %v1368, 0.0
    %v4179 = vmax.f32 %v1537, 0.0
    %v4180 = vmax.f32 %v1706, 0.0
    %v4181 = vmax.f32 %v1875, 0.0
    %v4182 = vmax.f32 %v2044, 0.0
    %v4183 = vmax.f32 %v2213, 0.0
    %v4184 = vmax.f32 %v2382, 0.0
    %v4185 = vmax.f32 %v2551, 0.0
    %v4186 = vmax.f32 %v2720, 0.0
    %v4187 = vmax.f32 %v2889, 0.0
    %v4188 = vmax.f32 %v3058, 0.0
    %v4189 = vmax.f32 %v3227, 0.0
    %v4190 = vmax.f32 %v3396, 0.0
    %v4191 = vmax.f32 %v3565, 0.0
    %v4192 = vmax.f32 %v3734, 0.0
    %v4193 = vmax.f32 %v1202, 0.0
    %v4194 = vmax.f32 %v1371, 0.0
    %v4195 = vmax.f32 %v1540, 0.0
    %v4196 = vmax.f32 %v1709, 0.0
    %v4197 = vmax.f32 %v1878, 0.0
    %v4198 = vmax.f32 %v2047, 0.0
    %v4199 = vmax.f32 %v2216, 0.0
    %v4200 = vmax.f32 %v2385, 0.0
    %v4201 = vmax.f32 %v2554, 0.0
    %v4202 = vmax.f32 %v2723, 0.0
    %v4203 = vmax.f32 %v2892, 0.0
    %v4204 = vmax.f32 %v3061, 0.0
    %v4205 = vmax.f32 %v3230, 0.0
    %v4206 = vmax.f32 %v3399, 0.0
    %v4207 = vmax.f32 %v3568, 0.0
    %v4208 = vmax.f32 %v3737, 0.0
    %v4209 = vmax.f32 %v1204, 0.0
    %v4210 = vmax.f32 %v1373, 0.0
    %v4211 = vmax.f32 %v1542, 0.0
    %v4212 = vmax.f32 %v1711, 0.0
    %v4213 = vmax.f32 %v1880, 0.0
    %v4214 = vmax.f32 %v2049, 0.0
    %v4215 = vmax.f32 %v2218, 0.0
    %v4216 = vmax.f32 %v2387, 0.0
    %v4217 = vmax.f32 %v2556, 0.0
    %v4218 = vmax.f32 %v2725, 0.0
    %v4219 = vmax.f32 %v2894, 0.0
    %v4220 = vmax.f32 %v3063, 0.0
    %v4221 = vmax.f32 %v3232, 0.0
    %v4222 = vmax.f32 %v3401, 0.0
    %v4223 = vmax.f32 %v3570, 0.0
    %v4224 = vmax.f32 %v3739, 0.0
    %v4225 = vmax.f32 %v1207, 0.0
    %v4226 = vmax.f32 %v1376, 0.0
    %v4227 = vmax.f32 %v1545, 0.0
    %v4228 = vmax.f32 %v1714, 0.0
    %v4229 = vmax.f32 %v1883, 0.0
    %v4230 = vmax.f32 %v2052, 0.0
    %v4231 = vmax.f32 %v2221, 0.0
    %v4232 = vmax.f32 %v2390, 0.0
    %v4233 = vmax.f32 %v2559, 0.0
    %v4234 = vmax.f32 %v2728, 0.0
    %v4235 = vmax.f32 %v2897, 0.0
    %v4236 = vmax.f32 %v3066, 0.0
    %v4237 = vmax.f32 %v3235, 0.0
    %v4238 = vmax.f32 %v3404, 0.0
    %v4239 = vmax.f32 %v3573, 0.0
    %v4240 = vmax.f32 %v3742, 0.0
    %v4241 = vmax.f32 %v1209, 0.0
    %v4242 = vmax.f32 %v1378, 0.0
    %v4243 = vmax.f32 %v1547, 0.0
    %v4244 = vmax.f32 %v1716, 0.0
    %v4245 = vmax.f32 %v1885, 0.0
    %v4246 = vmax.f32 %v2054, 0.0
    %v4247 = vmax.f32 %v2223, 0.0
    %v4248 = vmax.f32 %v2392, 0.0
    %v4249 = vmax.f32 %v2561, 0.0
    %v4250 = vmax.f32 %v2730, 0.0
    %v4251 = vmax.f32 %v2899, 0.0
    %v4252 = vmax.f32 %v3068, 0.0
    %v4253 = vmax.f32 %v3237, 0.0
    %v4254 = vmax.f32 %v3406, 0.0
    %v4255 = vmax.f32 %v3575, 0.0
    %v4256 = vmax.f32 %v3744, 0.0
    %v4257 = vmax.f32 %v1212, 0.0
    %v4258 = vmax.f32 %v1381, 0.0
    %v4259 = vmax.f32 %v1550, 0.0
    %v4260 = vmax.f32 %v1719, 0.0
    %v4261 = vmax.f32 %v1888, 0.0
    %v4262 = vmax.f32 %v2057, 0.0
    %v4263 = vmax.f32 %v2226, 0.0
    %v4264 = vmax.f32 %v2395, 0.0
    %v4265 = vmax.f32 %v2564, 0.0
    %v4266 = vmax.f32 %v2733, 0.0
    %v4267 = vmax.f32 %v2902, 0.0
    %v4268 = vmax.f32 %v3071, 0.0
    %v4269 = vmax.f32 %v3240, 0.0
    %v4270 = vmax.f32 %v3409, 0.0
    %v4271 = vmax.f32 %v3578, 0.0
    %v4272 = vmax.f32 %v3747, 0.0
    %v4273 = vmax.f32 %v1214, 0.0
    %v4274 = vmax.f32 %v1383, 0.0
    %v4275 = vmax.f32 %v1552, 0.0
    %v4276 = vmax.f32 %v1721, 0.0
    %v4277 = vmax.f32 %v1890, 0.0
    %v4278 = vmax.f32 %v2059, 0.0
    %v4279 = vmax.f32 %v2228, 0.0
    %v4280 = vmax.f32 %v2397, 0.0
    %v4281 = vmax.f32 %v2566, 0.0
    %v4282 = vmax.f32 %v2735, 0.0
    %v4283 = vmax.f32 %v2904, 0.0
    %v4284 = vmax.f32 %v3073, 0.0
    %v4285 = vmax.f32 %v3242, 0.0
    %v4286 = vmax.f32 %v3411, 0.0
    %v4287 = vmax.f32 %v3580, 0.0
    %v4288 = vmax.f32 %v3749, 0.0
    %v4289 = vmax.f32 %v1217, 0.0
    %v4290 = vmax.f32 %v1386, 0.0
    %v4291 = vmax.f32 %v1555, 0.0
    %v4292 = vmax.f32 %v1724, 0.0
    %v4293 = vmax.f32 %v1893, 0.0
    %v4294 = vmax.f32 %v2062, 0.0
    %v4295 = vmax.f32 %v2231, 0.0
    %v4296 = vmax.f32 %v2400, 0.0
    %v4297 = vmax.f32 %v2569, 0.0
    %v4298 = vmax.f32 %v2738, 0.0
    %v4299 = vmax.f32 %v2907, 0.0
    %v4300 = vmax.f32 %v3076, 0.0
    %v4301 = vmax.f32 %v3245, 0.0
    %v4302 = vmax.f32 %v3414, 0.0
    %v4303 = vmax.f32 %v3583, 0.0
    %v4304 = vmax.f32 %v3752, 0.0
    %v4305 = vmax.f32 %v1219, 0.0
    %v4306 = vmax.f32 %v1388, 0.0
    %v4307 = vmax.f32 %v1557, 0.0
    %v4308 = vmax.f32 %v1726, 0.0
    %v4309 = vmax.f32 %v1895, 0.0
    %v4310 = vmax.f32 %v2064, 0.0
    %v4311 = vmax.f32 %v2233, 0.0
    %v4312 = vmax.f32 %v2402, 0.0
    %v4313 = vmax.f32 %v2571, 0.0
    %v4314 = vmax.f32 %v2740, 0.0
    %v4315 = vmax.f32 %v2909, 0.0
    %v4316 = vmax.f32 %v3078, 0.0
    %v4317 = vmax.f32 %v3247, 0.0
    %v4318 = vmax.f32 %v3416, 0.0
    %v4319 = vmax.f32 %v3585, 0.0
    %v4320 = vmax.f32 %v3754, 0.0
    %v4321 = vmax.f32 %v1222, 0.0
    %v4322 = vmax.f32 %v1391, 0.0
    %v4323 = vmax.f32 %v1560, 0.0
    %v4324 = vmax.f32 %v1729, 0.0
    %v4325 = vmax.f32 %v1898, 0.0
    %v4326 = vmax.f32 %v2067, 0.0
    %v4327 = vmax.f32 %v2236, 0.0
    %v4328 = vmax.f32 %v2405, 0.0
    %v4329 = vmax.f32 %v2574, 0.0
    %v4330 = vmax.f32 %v2743, 0.0
    %v4331 = vmax.f32 %v2912, 0.0
    %v4332 = vmax.f32 %v3081, 0.0
    %v4333 = vmax.f32 %v3250, 0.0
    %v4334 = vmax.f32 %v3419, 0.0
    %v4335 = vmax.f32 %v3588, 0.0
    %v4336 = vmax.f32 %v3757, 0.0
    %v4337 = vmax.f32 %v1224, 0.0
    %v4338 = vmax.f32 %v1393, 0.0
    %v4339 = vmax.f32 %v1562, 0.0
    %v4340 = vmax.f32 %v1731, 0.0
    %v4341 = vmax.f32 %v1900, 0.0
    %v4342 = vmax.f32 %v2069, 0.0
    %v4343 = vmax.f32 %v2238, 0.0
    %v4344 = vmax.f32 %v2407, 0.0
    %v4345 = vmax.f32 %v2576, 0.0
    %v4346 = vmax.f32 %v2745, 0.0
    %v4347 = vmax.f32 %v2914, 0.0
    %v4348 = vmax.f32 %v3083, 0.0
    %v4349 = vmax.f32 %v3252, 0.0
    %v4350 = vmax.f32 %v3421, 0.0
    %v4351 = vmax.f32 %v3590, 0.0
    %v4352 = vmax.f32 %v3759, 0.0
    %v4353 = vmax.f32 %v1227, 0.0
    %v4354 = vmax.f32 %v1396, 0.0
    %v4355 = vmax.f32 %v1565, 0.0
    %v4356 = vmax.f32 %v1734, 0.0
    %v4357 = vmax.f32 %v1903, 0.0
    %v4358 = vmax.f32 %v2072, 0.0
    %v4359 = vmax.f32 %v2241, 0.0
    %v4360 = vmax.f32 %v2410, 0.0
    %v4361 = vmax.f32 %v2579, 0.0
    %v4362 = vmax.f32 %v2748, 0.0
    %v4363 = vmax.f32 %v2917, 0.0
    %v4364 = vmax.f32 %v3086, 0.0
    %v4365 = vmax.f32 %v3255, 0.0
    %v4366 = vmax.f32 %v3424, 0.0
    %v4367 = vmax.f32 %v3593, 0.0
    %v4368 = vmax.f32 %v3762, 0.0
    %v4369 = vmax.f32 %v1229, 0.0
    %v4370 = vmax.f32 %v1398, 0.0
    %v4371 = vmax.f32 %v1567, 0.0
    %v4372 = vmax.f32 %v1736, 0.0
    %v4373 = vmax.f32 %v1905, 0.0
    %v4374 = vmax.f32 %v2074, 0.0
    %v4375 = vmax.f32 %v2243, 0.0
    %v4376 = vmax.f32 %v2412, 0.0
    %v4377 = vmax.f32 %v2581, 0.0
    %v4378 = vmax.f32 %v2750, 0.0
    %v4379 = vmax.f32 %v2919, 0.0
    %v4380 = vmax.f32 %v3088, 0.0
    %v4381 = vmax.f32 %v3257, 0.0
    %v4382 = vmax.f32 %v3426, 0.0
    %v4383 = vmax.f32 %v3595, 0.0
    %v4384 = vmax.f32 %v3764, 0.0
    %v4385 = vmax.f32 %v1232, 0.0
    %v4386 = vmax.f32 %v1401, 0.0
    %v4387 = vmax.f32 %v1570, 0.0
    %v4388 = vmax.f32 %v1739, 0.0
    %v4389 = vmax.f32 %v1908, 0.0
    %v4390 = vmax.f32 %v2077, 0.0
    %v4391 = vmax.f32 %v2246, 0.0
    %v4392 = vmax.f32 %v2415, 0.0
    %v4393 = vmax.f32 %v2584, 0.0
    %v4394 = vmax.f32 %v2753, 0.0
    %v4395 = vmax.f32 %v2922, 0.0
    %v4396 = vmax.f32 %v3091, 0.0
    %v4397 = vmax.f32 %v3260, 0.0
    %v4398 = vmax.f32 %v3429, 0.0
    %v4399 = vmax.f32 %v3598, 0.0
    %v4400 = vmax.f32 %v3767, 0.0
    %v4401 = vmax.f32 %v1234, 0.0
    %v4402 = vmax.f32 %v1403, 0.0
    %v4403 = vmax.f32 %v1572, 0.0
    %v4404 = vmax.f32 %v1741, 0.0
    %v4405 = vmax.f32 %v1910, 0.0
    %v4406 = vmax.f32 %v2079, 0.0
    %v4407 = vmax.f32 %v2248, 0.0
    %v4408 = vmax.f32 %v2417, 0.0
    %v4409 = vmax.f32 %v2586, 0.0
    %v4410 = vmax.f32 %v2755, 0.0
    %v4411 = vmax.f32 %v2924, 0.0
    %v4412 = vmax.f32 %v3093, 0.0
    %v4413 = vmax.f32 %v3262, 0.0
    %v4414 = vmax.f32 %v3431, 0.0
    %v4415 = vmax.f32 %v3600, 0.0
    %v4416 = vmax.f32 %v3769, 0.0
    %v4417 = vmax.f32 %v1237, 0.0
    %v4418 = vmax.f32 %v1406, 0.0
    %v4419 = vmax.f32 %v1575, 0.0
    %v4420 = vmax.f32 %v1744, 0.0
    %v4421 = vmax.f32 %v1913, 0.0
    %v4422 = vmax.f32 %v2082, 0.0
    %v4423 = vmax.f32 %v2251, 0.0
    %v4424 = vmax.f32 %v2420, 0.0
    %v4425 = vmax.f32 %v2589, 0.0
    %v4426 = vmax.f32 %v2758, 0.0
    %v4427 = vmax.f32 %v2927, 0.0
    %v4428 = vmax.f32 %v3096, 0.0
    %v4429 = vmax.f32 %v3265, 0.0
    %v4430 = vmax.f32 %v3434, 0.0
    %v4431 = vmax.f32 %v3603, 0.0
    %v4432 = vmax.f32 %v3772, 0.0
    %v4433 = vmax.f32 %v1239, 0.0
    %v4434 = vmax.f32 %v1408, 0.0
    %v4435 = vmax.f32 %v1577, 0.0
    %v4436 = vmax.f32 %v1746, 0.0
    %v4437 = vmax.f32 %v1915, 0.0
    %v4438 = vmax.f32 %v2084, 0.0
    %v4439 = vmax.f32 %v2253, 0.0
    %v4440 = vmax.f32 %v2422, 0.0
    %v4441 = vmax.f32 %v2591, 0.0
    %v4442 = vmax.f32 %v2760, 0.0
    %v4443 = vmax.f32 %v2929, 0.0
    %v4444 = vmax.f32 %v3098, 0.0
    %v4445 = vmax.f32 %v3267, 0.0
    %v4446 = vmax.f32 %v3436, 0.0
    %v4447 = vmax.f32 %v3605, 0.0
    %v4448 = vmax.f32 %v3774, 0.0
    %v4449 = vmax.f32 %v1242, 0.0
    %v4450 = vmax.f32 %v1411, 0.0
    %v4451 = vmax.f32 %v1580, 0.0
    %v4452 = vmax.f32 %v1749, 0.0
    %v4453 = vmax.f32 %v1918, 0.0
    %v4454 = vmax.f32 %v2087, 0.0
    %v4455 = vmax.f32 %v2256, 0.0
    %v4456 = vmax.f32 %v2425, 0.0
    %v4457 = vmax.f32 %v2594, 0.0
    %v4458 = vmax.f32 %v2763, 0.0
    %v4459 = vmax.f32 %v2932, 0.0
    %v4460 = vmax.f32 %v3101, 0.0
    %v4461 = vmax.f32 %v3270, 0.0
    %v4462 = vmax.f32 %v3439, 0.0
    %v4463 = vmax.f32 %v3608, 0.0
    %v4464 = vmax.f32 %v3777, 0.0
    %v4465 = vmax.f32 %v1244, 0.0
    %v4466 = vmax.f32 %v1413, 0.0
    %v4467 = vmax.f32 %v1582, 0.0
    %v4468 = vmax.f32 %v1751, 0.0
    %v4469 = vmax.f32 %v1920, 0.0
    %v4470 = vmax.f32 %v2089, 0.0
    %v4471 = vmax.f32 %v2258, 0.0
    %v4472 = vmax.f32 %v2427, 0.0
    %v4473 = vmax.f32 %v2596, 0.0
    %v4474 = vmax.f32 %v2765, 0.0
    %v4475 = vmax.f32 %v2934, 0.0
    %v4476 = vmax.f32 %v3103, 0.0
    %v4477 = vmax.f32 %v3272, 0.0
    %v4478 = vmax.f32 %v3441, 0.0
    %v4479 = vmax.f32 %v3610, 0.0
    %v4480 = vmax.f32 %v3779, 0.0
    %v4481 = vmax.f32 %v1247, 0.0
    %v4482 = vmax.f32 %v1416, 0.0
    %v4483 = vmax.f32 %v1585, 0.0
    %v4484 = vmax.f32 %v1754, 0.0
    %v4485 = vmax.f32 %v1923, 0.0
    %v4486 = vmax.f32 %v2092, 0.0
    %v4487 = vmax.f32 %v2261, 0.0
    %v4488 = vmax.f32 %v2430, 0.0
    %v4489 = vmax.f32 %v2599, 0.0
    %v4490 = vmax.f32 %v2768, 0.0
    %v4491 = vmax.f32 %v2937, 0.0
    %v4492 = vmax.f32 %v3106, 0.0
    %v4493 = vmax.f32 %v3275, 0.0
    %v4494 = vmax.f32 %v3444, 0.0
    %v4495 = vmax.f32 %v3613, 0.0
    %v4496 = vmax.f32 %v3782, 0.0
    %v4497 = vmax.f32 %v1249, 0.0
    %v4498 = vmax.f32 %v1418, 0.0
    %v4499 = vmax.f32 %v1587, 0.0
    %v4500 = vmax.f32 %v1756, 0.0
    %v4501 = vmax.f32 %v1925, 0.0
    %v4502 = vmax.f32 %v2094, 0.0
    %v4503 = vmax.f32 %v2263, 0.0
    %v4504 = vmax.f32 %v2432, 0.0
    %v4505 = vmax.f32 %v2601, 0.0
    %v4506 = vmax.f32 %v2770, 0.0
    %v4507 = vmax.f32 %v2939, 0.0
    %v4508 = vmax.f32 %v3108, 0.0
    %v4509 = vmax.f32 %v3277, 0.0
    %v4510 = vmax.f32 %v3446, 0.0
    %v4511 = vmax.f32 %v3615, 0.0
    %v4512 = vmax.f32 %v3784, 0.0
    %v4513 = vmax.f32 %v1252, 0.0
    %v4514 = vmax.f32 %v1421, 0.0
    %v4515 = vmax.f32 %v1590, 0.0
    %v4516 = vmax.f32 %v1759, 0.0
    %v4517 = vmax.f32 %v1928, 0.0
    %v4518 = vmax.f32 %v2097, 0.0
    %v4519 = vmax.f32 %v2266, 0.0
    %v4520 = vmax.f32 %v2435, 0.0
    %v4521 = vmax.f32 %v2604, 0.0
    %v4522 = vmax.f32 %v2773, 0.0
    %v4523 = vmax.f32 %v2942, 0.0
    %v4524 = vmax.f32 %v3111, 0.0
    %v4525 = vmax.f32 %v3280, 0.0
    %v4526 = vmax.f32 %v3449, 0.0
    %v4527 = vmax.f32 %v3618, 0.0
    %v4528 = vmax.f32 %v3787, 0.0
    %v4529 = vmax.f32 %v1254, 0.0
    %v4530 = vmax.f32 %v1423, 0.0
    %v4531 = vmax.f32 %v1592, 0.0
    %v4532 = vmax.f32 %v1761, 0.0
    %v4533 = vmax.f32 %v1930, 0.0
    %v4534 = vmax.f32 %v2099, 0.0
    %v4535 = vmax.f32 %v2268, 0.0
    %v4536 = vmax.f32 %v2437, 0.0
    %v4537 = vmax.f32 %v2606, 0.0
    %v4538 = vmax.f32 %v2775, 0.0
    %v4539 = vmax.f32 %v2944, 0.0
    %v4540 = vmax.f32 %v3113, 0.0
    %v4541 = vmax.f32 %v3282, 0.0
    %v4542 = vmax.f32 %v3451, 0.0
    %v4543 = vmax.f32 %v3620, 0.0
    %v4544 = vmax.f32 %v3789, 0.0
    %v4545 = vmax.f32 %v1257, 0.0
    %v4546 = vmax.f32 %v1426, 0.0
    %v4547 = vmax.f32 %v1595, 0.0
    %v4548 = vmax.f32 %v1764, 0.0
    %v4549 = vmax.f32 %v1933, 0.0
    %v4550 = vmax.f32 %v2102, 0.0
    %v4551 = vmax.f32 %v2271, 0.0
    %v4552 = vmax.f32 %v2440, 0.0
    %v4553 = vmax.f32 %v2609, 0.0
    %v4554 = vmax.f32 %v2778, 0.0
    %v4555 = vmax.f32 %v2947, 0.0
    %v4556 = vmax.f32 %v3116, 0.0
    %v4557 = vmax.f32 %v3285, 0.0
    %v4558 = vmax.f32 %v3454, 0.0
    %v4559 = vmax.f32 %v3623, 0.0
    %v4560 = vmax.f32 %v3792, 0.0
    %v4561 = vmax.f32 %v1259, 0.0
    %v4562 = vmax.f32 %v1428, 0.0
    %v4563 = vmax.f32 %v1597, 0.0
    %v4564 = vmax.f32 %v1766, 0.0
    %v4565 = vmax.f32 %v1935, 0.0
    %v4566 = vmax.f32 %v2104, 0.0
    %v4567 = vmax.f32 %v2273, 0.0
    %v4568 = vmax.f32 %v2442, 0.0
    %v4569 = vmax.f32 %v2611, 0.0
    %v4570 = vmax.f32 %v2780, 0.0
    %v4571 = vmax.f32 %v2949, 0.0
    %v4572 = vmax.f32 %v3118, 0.0
    %v4573 = vmax.f32 %v3287, 0.0
    %v4574 = vmax.f32 %v3456, 0.0
    %v4575 = vmax.f32 %v3625, 0.0
    %v4576 = vmax.f32 %v3794, 0.0
    %v4577 = vmax.f32 %v1262, 0.0
    %v4578 = vmax.f32 %v1431, 0.0
    %v4579 = vmax.f32 %v1600, 0.0
    %v4580 = vmax.f32 %v1769, 0.0
    %v4581 = vmax.f32 %v1938, 0.0
    %v4582 = vmax.f32 %v2107, 0.0
    %v4583 = vmax.f32 %v2276, 0.0
    %v4584 = vmax.f32 %v2445, 0.0
    %v4585 = vmax.f32 %v2614, 0.0
    %v4586 = vmax.f32 %v2783, 0.0
    %v4587 = vmax.f32 %v2952, 0.0
    %v4588 = vmax.f32 %v3121, 0.0
    %v4589 = vmax.f32 %v3290, 0.0
    %v4590 = vmax.f32 %v3459, 0.0
    %v4591 = vmax.f32 %v3628, 0.0
    %v4592 = vmax.f32 %v3797, 0.0
    %v4593 = vmax.f32 %v1264, 0.0
    %v4594 = vmax.f32 %v1433, 0.0
    %v4595 = vmax.f32 %v1602, 0.0
    %v4596 = vmax.f32 %v1771, 0.0
    %v4597 = vmax.f32 %v1940, 0.0
    %v4598 = vmax.f32 %v2109, 0.0
    %v4599 = vmax.f32 %v2278, 0.0
    %v4600 = vmax.f32 %v2447, 0.0
    %v4601 = vmax.f32 %v2616, 0.0
    %v4602 = vmax.f32 %v2785, 0.0
    %v4603 = vmax.f32 %v2954, 0.0
    %v4604 = vmax.f32 %v3123, 0.0
    %v4605 = vmax.f32 %v3292, 0.0
    %v4606 = vmax.f32 %v3461, 0.0
    %v4607 = vmax.f32 %v3630, 0.0
    %v4608 = vmax.f32 %v3799, 0.0
    %v4609 = vmax.f32 %v1267, 0.0
    %v4610 = vmax.f32 %v1436, 0.0
    %v4611 = vmax.f32 %v1605, 0.0
    %v4612 = vmax.f32 %v1774, 0.0
    %v4613 = vmax.f32 %v1943, 0.0
    %v4614 = vmax.f32 %v2112, 0.0
    %v4615 = vmax.f32 %v2281, 0.0
    %v4616 = vmax.f32 %v2450, 0.0
    %v4617 = vmax.f32 %v2619, 0.0
    %v4618 = vmax.f32 %v2788, 0.0
    %v4619 = vmax.f32 %v2957, 0.0
    %v4620 = vmax.f32 %v3126, 0.0
    %v4621 = vmax.f32 %v3295, 0.0
    %v4622 = vmax.f32 %v3464, 0.0
    %v4623 = vmax.f32 %v3633, 0.0
    %v4624 = vmax.f32 %v3802, 0.0
    %v4625 = vmax.f32 %v1269, 0.0
    %v4626 = vmax.f32 %v1438, 0.0
    %v4627 = vmax.f32 %v1607, 0.0
    %v4628 = vmax.f32 %v1776, 0.0
    %v4629 = vmax.f32 %v1945, 0.0
    %v4630 = vmax.f32 %v2114, 0.0
    %v4631 = vmax.f32 %v2283, 0.0
    %v4632 = vmax.f32 %v2452, 0.0
    %v4633 = vmax.f32 %v2621, 0.0
    %v4634 = vmax.f32 %v2790, 0.0
    %v4635 = vmax.f32 %v2959, 0.0
    %v4636 = vmax.f32 %v3128, 0.0
    %v4637 = vmax.f32 %v3297, 0.0
    %v4638 = vmax.f32 %v3466, 0.0
    %v4639 = vmax.f32 %v3635, 0.0
    %v4640 = vmax.f32 %v3804, 0.0
    %v4641 = vmax.f32 %v1272, 0.0
    %v4642 = vmax.f32 %v1441, 0.0
    %v4643 = vmax.f32 %v1610, 0.0
    %v4644 = vmax.f32 %v1779, 0.0
    %v4645 = vmax.f32 %v1948, 0.0
    %v4646 = vmax.f32 %v2117, 0.0
    %v4647 = vmax.f32 %v2286, 0.0
    %v4648 = vmax.f32 %v2455, 0.0
    %v4649 = vmax.f32 %v2624, 0.0
    %v4650 = vmax.f32 %v2793, 0.0
    %v4651 = vmax.f32 %v2962, 0.0
    %v4652 = vmax.f32 %v3131, 0.0
    %v4653 = vmax.f32 %v3300, 0.0
    %v4654 = vmax.f32 %v3469, 0.0
    %v4655 = vmax.f32 %v3638, 0.0
    %v4656 = vmax.f32 %v3807, 0.0
    %v4657 = vmax.f32 %v1274, 0.0
    %v4658 = vmax.f32 %v1443, 0.0
    %v4659 = vmax.f32 %v1612, 0.0
    %v4660 = vmax.f32 %v1781, 0.0
    %v4661 = vmax.f32 %v1950, 0.0
    %v4662 = vmax.f32 %v2119, 0.0
    %v4663 = vmax.f32 %v2288, 0.0
    %v4664 = vmax.f32 %v2457, 0.0
    %v4665 = vmax.f32 %v2626, 0.0
    %v4666 = vmax.f32 %v2795, 0.0
    %v4667 = vmax.f32 %v2964, 0.0
    %v4668 = vmax.f32 %v3133, 0.0
    %v4669 = vmax.f32 %v3302, 0.0
    %v4670 = vmax.f32 %v3471, 0.0
    %v4671 = vmax.f32 %v3640, 0.0
    %v4672 = vmax.f32 %v3809, 0.0
    %v4673 = vmax.f32 %v1277, 0.0
    %v4674 = vmax.f32 %v1446, 0.0
    %v4675 = vmax.f32 %v1615, 0.0
    %v4676 = vmax.f32 %v1784, 0.0
    %v4677 = vmax.f32 %v1953, 0.0
    %v4678 = vmax.f32 %v2122, 0.0
    %v4679 = vmax.f32 %v2291, 0.0
    %v4680 = vmax.f32 %v2460, 0.0
    %v4681 = vmax.f32 %v2629, 0.0
    %v4682 = vmax.f32 %v2798, 0.0
    %v4683 = vmax.f32 %v2967, 0.0
    %v4684 = vmax.f32 %v3136, 0.0
    %v4685 = vmax.f32 %v3305, 0.0
    %v4686 = vmax.f32 %v3474, 0.0
    %v4687 = vmax.f32 %v3643, 0.0
    %v4688 = vmax.f32 %v3812, 0.0
    %v4689 = vmax.f32 %v1279, 0.0
    %v4690 = vmax.f32 %v1448, 0.0
    %v4691 = vmax.f32 %v1617, 0.0
    %v4692 = vmax.f32 %v1786, 0.0
    %v4693 = vmax.f32 %v1955, 0.0
    %v4694 = vmax.f32 %v2124, 0.0
    %v4695 = vmax.f32 %v2293, 0.0
    %v4696 = vmax.f32 %v2462, 0.0
    %v4697 = vmax.f32 %v2631, 0.0
    %v4698 = vmax.f32 %v2800, 0.0
    %v4699 = vmax.f32 %v2969, 0.0
    %v4700 = vmax.f32 %v3138, 0.0
    %v4701 = vmax.f32 %v3307, 0.0
    %v4702 = vmax.f32 %v3476, 0.0
    %v4703 = vmax.f32 %v3645, 0.0
    %v4704 = vmax.f32 %v3814, 0.0
    %v4705 = vmax.f32 %v1282, 0.0
    %v4706 = vmax.f32 %v1451, 0.0
    %v4707 = vmax.f32 %v1620, 0.0
    %v4708 = vmax.f32 %v1789, 0.0
    %v4709 = vmax.f32 %v1958, 0.0
    %v4710 = vmax.f32 %v2127, 0.0
    %v4711 = vmax.f32 %v2296, 0.0
    %v4712 = vmax.f32 %v2465, 0.0
    %v4713 = vmax.f32 %v2634, 0.0
    %v4714 = vmax.f32 %v2803, 0.0
    %v4715 = vmax.f32 %v2972, 0.0
    %v4716 = vmax.f32 %v3141, 0.0
    %v4717 = vmax.f32 %v3310, 0.0
    %v4718 = vmax.f32 %v3479, 0.0
    %v4719 = vmax.f32 %v3648, 0.0
    %v4720 = vmax.f32 %v3817, 0.0
    %v4721 = vmax.f32 %v1284, 0.0
    %v4722 = vmax.f32 %v1453, 0.0
    %v4723 = vmax.f32 %v1622, 0.0
    %v4724 = vmax.f32 %v1791, 0.0
    %v4725 = vmax.f32 %v1960, 0.0
    %v4726 = vmax.f32 %v2129, 0.0
    %v4727 = vmax.f32 %v2298, 0.0
    %v4728 = vmax.f32 %v2467, 0.0
    %v4729 = vmax.f32 %v2636, 0.0
    %v4730 = vmax.f32 %v2805, 0.0
    %v4731 = vmax.f32 %v2974, 0.0
    %v4732 = vmax.f32 %v3143, 0.0
    %v4733 = vmax.f32 %v3312, 0.0
    %v4734 = vmax.f32 %v3481, 0.0
    %v4735 = vmax.f32 %v3650, 0.0
    %v4736 = vmax.f32 %v3819, 0.0
    %v4737 = vmax.f32 %v1287, 0.0
    %v4738 = vmax.f32 %v1456, 0.0
    %v4739 = vmax.f32 %v1625, 0.0
    %v4740 = vmax.f32 %v1794, 0.0
    %v4741 = vmax.f32 %v1963, 0.0
    %v4742 = vmax.f32 %v2132, 0.0
    %v4743 = vmax.f32 %v2301, 0.0
    %v4744 = vmax.f32 %v2470, 0.0
    %v4745 = vmax.f32 %v2639, 0.0
    %v4746 = vmax.f32 %v2808, 0.0
    %v4747 = vmax.f32 %v2977, 0.0
    %v4748 = vmax.f32 %v3146, 0.0
    %v4749 = vmax.f32 %v3315, 0.0
    %v4750 = vmax.f32 %v3484, 0.0
    %v4751 = vmax.f32 %v3653, 0.0
    %v4752 = vmax.f32 %v3822, 0.0
    %v4753 = vmax.f32 %v1289, 0.0
    %v4754 = vmax.f32 %v1458, 0.0
    %v4755 = vmax.f32 %v1627, 0.0
    %v4756 = vmax.f32 %v1796, 0.0
    %v4757 = vmax.f32 %v1965, 0.0
    %v4758 = vmax.f32 %v2134, 0.0
    %v4759 = vmax.f32 %v2303, 0.0
    %v4760 = vmax.f32 %v2472, 0.0
    %v4761 = vmax.f32 %v2641, 0.0
    %v4762 = vmax.f32 %v2810, 0.0
    %v4763 = vmax.f32 %v2979, 0.0
    %v4764 = vmax.f32 %v3148, 0.0
    %v4765 = vmax.f32 %v3317, 0.0
    %v4766 = vmax.f32 %v3486, 0.0
    %v4767 = vmax.f32 %v3655, 0.0
    %v4768 = vmax.f32 %v3824, 0.0
    %v4769 = vmax.f32 %v1292, 0.0
    %v4770 = vmax.f32 %v1461, 0.0
    %v4771 = vmax.f32 %v1630, 0.0
    %v4772 = vmax.f32 %v1799, 0.0
    %v4773 = vmax.f32 %v1968, 0.0
    %v4774 = vmax.f32 %v2137, 0.0
    %v4775 = vmax.f32 %v2306, 0.0
    %v4776 = vmax.f32 %v2475, 0.0
    %v4777 = vmax.f32 %v2644, 0.0
    %v4778 = vmax.f32 %v2813, 0.0
    %v4779 = vmax.f32 %v2982, 0.0
    %v4780 = vmax.f32 %v3151, 0.0
    %v4781 = vmax.f32 %v3320, 0.0
    %v4782 = vmax.f32 %v3489, 0.0
    %v4783 = vmax.f32 %v3658, 0.0
    %v4784 = vmax.f32 %v3827, 0.0
    %v4785 = vmax.f32 %v1294, 0.0
    %v4786 = vmax.f32 %v1463, 0.0
    %v4787 = vmax.f32 %v1632, 0.0
    %v4788 = vmax.f32 %v1801, 0.0
    %v4789 = vmax.f32 %v1970, 0.0
    %v4790 = vmax.f32 %v2139, 0.0
    %v4791 = vmax.f32 %v2308, 0.0
    %v4792 = vmax.f32 %v2477, 0.0
    %v4793 = vmax.f32 %v2646, 0.0
    %v4794 = vmax.f32 %v2815, 0.0
    %v4795 = vmax.f32 %v2984, 0.0
    %v4796 = vmax.f32 %v3153, 0.0
    %v4797 = vmax.f32 %v3322, 0.0
    %v4798 = vmax.f32 %v3491, 0.0
    %v4799 = vmax.f32 %v3660, 0.0
    %v4800 = vmax.f32 %v3829, 0.0
    %v4801 = vmax.f32 %v1297, 0.0
    %v4802 = vmax.f32 %v1466, 0.0
    %v4803 = vmax.f32 %v1635, 0.0
    %v4804 = vmax.f32 %v1804, 0.0
    %v4805 = vmax.f32 %v1973, 0.0
    %v4806 = vmax.f32 %v2142, 0.0
    %v4807 = vmax.f32 %v2311, 0.0
    %v4808 = vmax.f32 %v2480, 0.0
    %v4809 = vmax.f32 %v2649, 0.0
    %v4810 = vmax.f32 %v2818, 0.0
    %v4811 = vmax.f32 %v2987, 0.0
    %v4812 = vmax.f32 %v3156, 0.0
    %v4813 = vmax.f32 %v3325, 0.0
    %v4814 = vmax.f32 %v3494, 0.0
    %v4815 = vmax.f32 %v3663, 0.0
    %v4816 = vmax.f32 %v3832, 0.0
    %v4817 = vmax.f32 %v1299, 0.0
    %v4818 = vmax.f32 %v1468, 0.0
    %v4819 = vmax.f32 %v1637, 0.0
    %v4820 = vmax.f32 %v1806, 0.0
    %v4821 = vmax.f32 %v1975, 0.0
    %v4822 = vmax.f32 %v2144, 0.0
    %v4823 = vmax.f32 %v2313, 0.0
    %v4824 = vmax.f32 %v2482, 0.0
    %v4825 = vmax.f32 %v2651, 0.0
    %v4826 = vmax.f32 %v2820, 0.0
    %v4827 = vmax.f32 %v2989, 0.0
    %v4828 = vmax.f32 %v3158, 0.0
    %v4829 = vmax.f32 %v3327, 0.0
    %v4830 = vmax.f32 %v3496, 0.0
    %v4831 = vmax.f32 %v3665, 0.0
    %v4832 = vmax.f32 %v3834, 0.0
    %v4833 = vmax.f32 %v1302, 0.0
    %v4834 = vmax.f32 %v1471, 0.0
    %v4835 = vmax.f32 %v1640, 0.0
    %v4836 = vmax.f32 %v1809, 0.0
    %v4837 = vmax.f32 %v1978, 0.0
    %v4838 = vmax.f32 %v2147, 0.0
    %v4839 = vmax.f32 %v2316, 0.0
    %v4840 = vmax.f32 %v2485, 0.0
    %v4841 = vmax.f32 %v2654, 0.0
    %v4842 = vmax.f32 %v2823, 0.0
    %v4843 = vmax.f32 %v2992, 0.0
    %v4844 = vmax.f32 %v3161, 0.0
    %v4845 = vmax.f32 %v3330, 0.0
    %v4846 = vmax.f32 %v3499, 0.0
    %v4847 = vmax.f32 %v3668, 0.0
    %v4848 = vmax.f32 %v3837, 0.0
    %v4849 = vmax.f32 %v1304, 0.0
    %v4850 = vmax.f32 %v1473, 0.0
    %v4851 = vmax.f32 %v1642, 0.0
    %v4852 = vmax.f32 %v1811, 0.0
    %v4853 = vmax.f32 %v1980, 0.0
    %v4854 = vmax.f32 %v2149, 0.0
    %v4855 = vmax.f32 %v2318, 0.0
    %v4856 = vmax.f32 %v2487, 0.0
    %v4857 = vmax.f32 %v2656, 0.0
    %v4858 = vmax.f32 %v2825, 0.0
    %v4859 = vmax.f32 %v2994, 0.0
    %v4860 = vmax.f32 %v3163, 0.0
    %v4861 = vmax.f32 %v3332, 0.0
    %v4862 = vmax.f32 %v3501, 0.0
    %v4863 = vmax.f32 %v3670, 0.0
    %v4864 = vmax.f32 %v3839, 0.0
    %v4865 = vld [vmem:[#allocation8] sm:$0xff]
    %4867 = vst [vmem:[#allocation1] ss:$4 sm:$0xff] %v4865
    %v4868 = vld.sshfl [vmem:[#allocation1] sm:$0xff pattern:$0x73625140]
    %v4869 = vld.sshfl [vmem:[#allocation1 + $0x8] sm:$0xff pattern:$0x73625140]
    %v4870 = vld.sshfl [vmem:[#allocation1 + $0x10] sm:$0xff pattern:$0x73625140]
    %v4871 = vld.sshfl [vmem:[#allocation1 + $0x18] sm:$0xff pattern:$0x73625140]
    %4876 = vmatpush.msra.mxu0 %v4081
    %4877 = vmatpush.msra.mxu0 %v4065
    %4878 = vmatpush.msra.mxu0 %v4049
    %4879 = vmatpush.msra.mxu0 %v4033
    %4880 = vmatpush.msra.mxu0 %v4017
    %4881 = vmatpush.msra.mxu0 %v4001
    %4882 = vmatpush.msra.mxu0 %v3985
    %4883 = vmatpush.msra.mxu0 %v3969
    %4884 = vmatpush.msra.mxu0 %v3953
    %4885 = vmatpush.msra.mxu0 %v3937
    %4886 = vmatpush.msra.mxu0 %v3921
    %4887 = vmatpush.msra.mxu0 %v3905
    %4888 = vmatpush.msra.mxu0 %v3889
    %4889 = vmatpush.msra.mxu0 %v3873
    %4890 = vmatpush.msra.mxu0 %v3857
    %4891 = vmatpush.msra.mxu0 %v3841
    %4892 = vmatmul.f32.gmra.mxu0 %v4868
    %v4893 = vpop.f32.mrf.mxu0
    %v4894 = vadd.f32 0.0, %v4893
    %4895 = vdwg.mxu0
    %4896 = vmatpush.msra.mxu0 %v4337
    %4897 = vmatpush.msra.mxu0 %v4321
    %4898 = vmatpush.msra.mxu0 %v4305
    %4899 = vmatpush.msra.mxu0 %v4289
    %4900 = vmatpush.msra.mxu0 %v4273
    %4901 = vmatpush.msra.mxu0 %v4257
    %4902 = vmatpush.msra.mxu0 %v4241
    %4903 = vmatpush.msra.mxu0 %v4225
    %4904 = vmatpush.msra.mxu0 %v4209
    %4905 = vmatpush.msra.mxu0 %v4193
    %4906 = vmatpush.msra.mxu0 %v4177
    %4907 = vmatpush.msra.mxu0 %v4161
    %4908 = vmatpush.msra.mxu0 %v4145
    %4909 = vmatpush.msra.mxu0 %v4129
    %4910 = vmatpush.msra.mxu0 %v4113
    %4911 = vmatpush.msra.mxu0 %v4097
    %4912 = vmatmul.f32.gmra.mxu0 %v4869
    %v4913 = vpop.f32.mrf.mxu0
    %v4914 = vadd.f32 %v4894, %v4913
    %4915 = vdwg.mxu0
    %4916 = vmatpush.msra.mxu0 %v4593
    %4917 = vmatpush.msra.mxu0 %v4577
    %4918 = vmatpush.msra.mxu0 %v4561
    %4919 = vmatpush.msra.mxu0 %v4545
    %4920 = vmatpush.msra.mxu0 %v4529
    %4921 = vmatpush.msra.mxu0 %v4513
    %4922 = vmatpush.msra.mxu0 %v4497
    %4923 = vmatpush.msra.mxu0 %v4481
    %4924 = vmatpush.msra.mxu0 %v4465
    %4925 = vmatpush.msra.mxu0 %v4449
    %4926 = vmatpush.msra.mxu0 %v4433
    %4927 = vmatpush.msra.mxu0 %v4417
    %4928 = vmatpush.msra.mxu0 %v4401
    %4929 = vmatpush.msra.mxu0 %v4385
    %4930 = vmatpush.msra.mxu0 %v4369
    %4931 = vmatpush.msra.mxu0 %v4353
    %4932 = vmatmul.f32.gmra.mxu0 %v4870
    %v4933 = vpop.f32.mrf.mxu0
    %v4934 = vadd.f32 %v4914, %v4933
    %4935 = vdwg.mxu0
    %4936 = vmatpush.msra.mxu0 %v4849
    %4937 = vmatpush.msra.mxu0 %v4833
    %4938 = vmatpush.msra.mxu0 %v4817
    %4939 = vmatpush.msra.mxu0 %v4801
    %4940 = vmatpush.msra.mxu0 %v4785
    %4941 = vmatpush.msra.mxu0 %v4769
    %4942 = vmatpush.msra.mxu0 %v4753
    %4943 = vmatpush.msra.mxu0 %v4737
    %4944 = vmatpush.msra.mxu0 %v4721
    %4945 = vmatpush.msra.mxu0 %v4705
    %4946 = vmatpush.msra.mxu0 %v4689
    %4947 = vmatpush.msra.mxu0 %v4673
    %4948 = vmatpush.msra.mxu0 %v4657
    %4949 = vmatpush.msra.mxu0 %v4641
    %4950 = vmatpush.msra.mxu0 %v4625
    %4951 = vmatpush.msra.mxu0 %v4609
    %4952 = vmatmul.f32.gmra.mxu0 %v4871
    %v4953 = vpop.f32.mrf.mxu0
    %v4954 = vadd.f32 %v4934, %v4953
    %4955 = vdwg.mxu0
    %4956 = vmatpush.msra.mxu0 %v4082
    %4957 = vmatpush.msra.mxu0 %v4066
    %4958 = vmatpush.msra.mxu0 %v4050
    %4959 = vmatpush.msra.mxu0 %v4034
    %4960 = vmatpush.msra.mxu0 %v4018
    %4961 = vmatpush.msra.mxu0 %v4002
    %4962 = vmatpush.msra.mxu0 %v3986
    %4963 = vmatpush.msra.mxu0 %v3970
    %4964 = vmatpush.msra.mxu0 %v3954
    %4965 = vmatpush.msra.mxu0 %v3938
    %4966 = vmatpush.msra.mxu0 %v3922
    %4967 = vmatpush.msra.mxu0 %v3906
    %4968 = vmatpush.msra.mxu0 %v3890
    %4969 = vmatpush.msra.mxu0 %v3874
    %4970 = vmatpush.msra.mxu0 %v3858
    %4971 = vmatpush.msra.mxu0 %v3842
    %4972 = vmatmul.f32.gmra.mxu0 %v4868
    %v4973 = vpop.f32.mrf.mxu0
    %v4974 = vadd.f32 0.0, %v4973
    %4975 = vdwg.mxu0
    %4976 = vmatpush.msra.mxu0 %v4338
    %4977 = vmatpush.msra.mxu0 %v4322
    %4978 = vmatpush.msra.mxu0 %v4306
    %4979 = vmatpush.msra.mxu0 %v4290
    %4980 = vmatpush.msra.mxu0 %v4274
    %4981 = vmatpush.msra.mxu0 %v4258
    %4982 = vmatpush.msra.mxu0 %v4242
    %4983 = vmatpush.msra.mxu0 %v4226
    %4984 = vmatpush.msra.mxu0 %v4210
    %4985 = vmatpush.msra.mxu0 %v4194
    %4986 = vmatpush.msra.mxu0 %v4178
    %4987 = vmatpush.msra.mxu0 %v4162
    %4988 = vmatpush.msra.mxu0 %v4146
    %4989 = vmatpush.msra.mxu0 %v4130
    %4990 = vmatpush.msra.mxu0 %v4114
    %4991 = vmatpush.msra.mxu0 %v4098
    %4992 = vmatmul.f32.gmra.mxu0 %v4869
    %v4993 = vpop.f32.mrf.mxu0
    %v4994 = vadd.f32 %v4974, %v4993
    %4995 = vdwg.mxu0
    %4996 = vmatpush.msra.mxu0 %v4594
    %4997 = vmatpush.msra.mxu0 %v4578
    %4998 = vmatpush.msra.mxu0 %v4562
    %4999 = vmatpush.msra.mxu0 %v4546
    %5000 = vmatpush.msra.mxu0 %v4530
    %5001 = vmatpush.msra.mxu0 %v4514
    %5002 = vmatpush.msra.mxu0 %v4498
    %5003 = vmatpush.msra.mxu0 %v4482
    %5004 = vmatpush.msra.mxu0 %v4466
    %5005 = vmatpush.msra.mxu0 %v4450
    %5006 = vmatpush.msra.mxu0 %v4434
    %5007 = vmatpush.msra.mxu0 %v4418
    %5008 = vmatpush.msra.mxu0 %v4402
    %5009 = vmatpush.msra.mxu0 %v4386
    %5010 = vmatpush.msra.mxu0 %v4370
    %5011 = vmatpush.msra.mxu0 %v4354
    %5012 = vmatmul.f32.gmra.mxu0 %v4870
    %v5013 = vpop.f32.mrf.mxu0
    %v5014 = vadd.f32 %v4994, %v5013
    %5015 = vdwg.mxu0
    %5016 = vmatpush.msra.mxu0 %v4850
    %5017 = vmatpush.msra.mxu0 %v4834
    %5018 = vmatpush.msra.mxu0 %v4818
    %5019 = vmatpush.msra.mxu0 %v4802
    %5020 = vmatpush.msra.mxu0 %v4786
    %5021 = vmatpush.msra.mxu0 %v4770
    %5022 = vmatpush.msra.mxu0 %v4754
    %5023 = vmatpush.msra.mxu0 %v4738
    %5024 = vmatpush.msra.mxu0 %v4722
    %5025 = vmatpush.msra.mxu0 %v4706
    %5026 = vmatpush.msra.mxu0 %v4690
    %5027 = vmatpush.msra.mxu0 %v4674
    %5028 = vmatpush.msra.mxu0 %v4658
    %5029 = vmatpush.msra.mxu0 %v4642
    %5030 = vmatpush.msra.mxu0 %v4626
    %5031 = vmatpush.msra.mxu0 %v4610
    %5032 = vmatmul.f32.gmra.mxu0 %v4871
    %v5033 = vpop.f32.mrf.mxu0
    %v5034 = vadd.f32 %v5014, %v5033
    %5035 = vdwg.mxu0
    %5036 = vmatpush.msra.mxu0 %v4083
    %5037 = vmatpush.msra.mxu0 %v4067
    %5038 = vmatpush.msra.mxu0 %v4051
    %5039 = vmatpush.msra.mxu0 %v4035
    %5040 = vmatpush.msra.mxu0 %v4019
    %5041 = vmatpush.msra.mxu0 %v4003
    %5042 = vmatpush.msra.mxu0 %v3987
    %5043 = vmatpush.msra.mxu0 %v3971
    %5044 = vmatpush.msra.mxu0 %v3955
    %5045 = vmatpush.msra.mxu0 %v3939
    %5046 = vmatpush.msra.mxu0 %v3923
    %5047 = vmatpush.msra.mxu0 %v3907
    %5048 = vmatpush.msra.mxu0 %v3891
    %5049 = vmatpush.msra.mxu0 %v3875
    %5050 = vmatpush.msra.mxu0 %v3859
    %5051 = vmatpush.msra.mxu0 %v3843
    %5052 = vmatmul.f32.gmra.mxu0 %v4868
    %v5053 = vpop.f32.mrf.mxu0
    %v5054 = vadd.f32 0.0, %v5053
    %5055 = vdwg.mxu0
    %5056 = vmatpush.msra.mxu0 %v4339
    %5057 = vmatpush.msra.mxu0 %v4323
    %5058 = vmatpush.msra.mxu0 %v4307
    %5059 = vmatpush.msra.mxu0 %v4291
    %5060 = vmatpush.msra.mxu0 %v4275
    %5061 = vmatpush.msra.mxu0 %v4259
    %5062 = vmatpush.msra.mxu0 %v4243
    %5063 = vmatpush.msra.mxu0 %v4227
    %5064 = vmatpush.msra.mxu0 %v4211
    %5065 = vmatpush.msra.mxu0 %v4195
    %5066 = vmatpush.msra.mxu0 %v4179
    %5067 = vmatpush.msra.mxu0 %v4163
    %5068 = vmatpush.msra.mxu0 %v4147
    %5069 = vmatpush.msra.mxu0 %v4131
    %5070 = vmatpush.msra.mxu0 %v4115
    %5071 = vmatpush.msra.mxu0 %v4099
    %5072 = vmatmul.f32.gmra.mxu0 %v4869
    %v5073 = vpop.f32.mrf.mxu0
    %v5074 = vadd.f32 %v5054, %v5073
    %5075 = vdwg.mxu0
    %5076 = vmatpush.msra.mxu0 %v4595
    %5077 = vmatpush.msra.mxu0 %v4579
    %5078 = vmatpush.msra.mxu0 %v4563
    %5079 = vmatpush.msra.mxu0 %v4547
    %5080 = vmatpush.msra.mxu0 %v4531
    %5081 = vmatpush.msra.mxu0 %v4515
    %5082 = vmatpush.msra.mxu0 %v4499
    %5083 = vmatpush.msra.mxu0 %v4483
    %5084 = vmatpush.msra.mxu0 %v4467
    %5085 = vmatpush.msra.mxu0 %v4451
    %5086 = vmatpush.msra.mxu0 %v4435
    %5087 = vmatpush.msra.mxu0 %v4419
    %5088 = vmatpush.msra.mxu0 %v4403
    %5089 = vmatpush.msra.mxu0 %v4387
    %5090 = vmatpush.msra.mxu0 %v4371
    %5091 = vmatpush.msra.mxu0 %v4355
    %5092 = vmatmul.f32.gmra.mxu0 %v4870
    %v5093 = vpop.f32.mrf.mxu0
    %v5094 = vadd.f32 %v5074, %v5093
    %5095 = vdwg.mxu0
    %5096 = vmatpush.msra.mxu0 %v4851
    %5097 = vmatpush.msra.mxu0 %v4835
    %5098 = vmatpush.msra.mxu0 %v4819
    %5099 = vmatpush.msra.mxu0 %v4803
    %5100 = vmatpush.msra.mxu0 %v4787
    %5101 = vmatpush.msra.mxu0 %v4771
    %5102 = vmatpush.msra.mxu0 %v4755
    %5103 = vmatpush.msra.mxu0 %v4739
    %5104 = vmatpush.msra.mxu0 %v4723
    %5105 = vmatpush.msra.mxu0 %v4707
    %5106 = vmatpush.msra.mxu0 %v4691
    %5107 = vmatpush.msra.mxu0 %v4675
    %5108 = vmatpush.msra.mxu0 %v4659
    %5109 = vmatpush.msra.mxu0 %v4643
    %5110 = vmatpush.msra.mxu0 %v4627
    %5111 = vmatpush.msra.mxu0 %v4611
    %5112 = vmatmul.f32.gmra.mxu0 %v4871
    %v5113 = vpop.f32.mrf.mxu0
    %v5114 = vadd.f32 %v5094, %v5113
    %5115 = vdwg.mxu0
    %5116 = vmatpush.msra.mxu0 %v4084
    %5117 = vmatpush.msra.mxu0 %v4068
    %5118 = vmatpush.msra.mxu0 %v4052
    %5119 = vmatpush.msra.mxu0 %v4036
    %5120 = vmatpush.msra.mxu0 %v4020
    %5121 = vmatpush.msra.mxu0 %v4004
    %5122 = vmatpush.msra.mxu0 %v3988
    %5123 = vmatpush.msra.mxu0 %v3972
    %5124 = vmatpush.msra.mxu0 %v3956
    %5125 = vmatpush.msra.mxu0 %v3940
    %5126 = vmatpush.msra.mxu0 %v3924
    %5127 = vmatpush.msra.mxu0 %v3908
    %5128 = vmatpush.msra.mxu0 %v3892
    %5129 = vmatpush.msra.mxu0 %v3876
    %5130 = vmatpush.msra.mxu0 %v3860
    %5131 = vmatpush.msra.mxu0 %v3844
    %5132 = vmatmul.f32.gmra.mxu0 %v4868
    %v5133 = vpop.f32.mrf.mxu0
    %v5134 = vadd.f32 0.0, %v5133
    %5135 = vdwg.mxu0
    %5136 = vmatpush.msra.mxu0 %v4340
    %5137 = vmatpush.msra.mxu0 %v4324
    %5138 = vmatpush.msra.mxu0 %v4308
    %5139 = vmatpush.msra.mxu0 %v4292
    %5140 = vmatpush.msra.mxu0 %v4276
    %5141 = vmatpush.msra.mxu0 %v4260
    %5142 = vmatpush.msra.mxu0 %v4244
    %5143 = vmatpush.msra.mxu0 %v4228
    %5144 = vmatpush.msra.mxu0 %v4212
    %5145 = vmatpush.msra.mxu0 %v4196
    %5146 = vmatpush.msra.mxu0 %v4180
    %5147 = vmatpush.msra.mxu0 %v4164
    %5148 = vmatpush.msra.mxu0 %v4148
    %5149 = vmatpush.msra.mxu0 %v4132
    %5150 = vmatpush.msra.mxu0 %v4116
    %5151 = vmatpush.msra.mxu0 %v4100
    %5152 = vmatmul.f32.gmra.mxu0 %v4869
    %v5153 = vpop.f32.mrf.mxu0
    %v5154 = vadd.f32 %v5134, %v5153
    %5155 = vdwg.mxu0
    %5156 = vmatpush.msra.mxu0 %v4596
    %5157 = vmatpush.msra.mxu0 %v4580
    %5158 = vmatpush.msra.mxu0 %v4564
    %5159 = vmatpush.msra.mxu0 %v4548
    %5160 = vmatpush.msra.mxu0 %v4532
    %5161 = vmatpush.msra.mxu0 %v4516
    %5162 = vmatpush.msra.mxu0 %v4500
    %5163 = vmatpush.msra.mxu0 %v4484
    %5164 = vmatpush.msra.mxu0 %v4468
    %5165 = vmatpush.msra.mxu0 %v4452
    %5166 = vmatpush.msra.mxu0 %v4436
    %5167 = vmatpush.msra.mxu0 %v4420
    %5168 = vmatpush.msra.mxu0 %v4404
    %5169 = vmatpush.msra.mxu0 %v4388
    %5170 = vmatpush.msra.mxu0 %v4372
    %5171 = vmatpush.msra.mxu0 %v4356
    %5172 = vmatmul.f32.gmra.mxu0 %v4870
    %v5173 = vpop.f32.mrf.mxu0
    %v5174 = vadd.f32 %v5154, %v5173
    %5175 = vdwg.mxu0
    %5176 = vmatpush.msra.mxu0 %v4852
    %5177 = vmatpush.msra.mxu0 %v4836
    %5178 = vmatpush.msra.mxu0 %v4820
    %5179 = vmatpush.msra.mxu0 %v4804
    %5180 = vmatpush.msra.mxu0 %v4788
    %5181 = vmatpush.msra.mxu0 %v4772
    %5182 = vmatpush.msra.mxu0 %v4756
    %5183 = vmatpush.msra.mxu0 %v4740
    %5184 = vmatpush.msra.mxu0 %v4724
    %5185 = vmatpush.msra.mxu0 %v4708
    %5186 = vmatpush.msra.mxu0 %v4692
    %5187 = vmatpush.msra.mxu0 %v4676
    %5188 = vmatpush.msra.mxu0 %v4660
    %5189 = vmatpush.msra.mxu0 %v4644
    %5190 = vmatpush.msra.mxu0 %v4628
    %5191 = vmatpush.msra.mxu0 %v4612
    %5192 = vmatmul.f32.gmra.mxu0 %v4871
    %v5193 = vpop.f32.mrf.mxu0
    %v5194 = vadd.f32 %v5174, %v5193
    %5195 = vdwg.mxu0
    %5196 = vmatpush.msra.mxu0 %v4085
    %5197 = vmatpush.msra.mxu0 %v4069
    %5198 = vmatpush.msra.mxu0 %v4053
    %5199 = vmatpush.msra.mxu0 %v4037
    %5200 = vmatpush.msra.mxu0 %v4021
    %5201 = vmatpush.msra.mxu0 %v4005
    %5202 = vmatpush.msra.mxu0 %v3989
    %5203 = vmatpush.msra.mxu0 %v3973
    %5204 = vmatpush.msra.mxu0 %v3957
    %5205 = vmatpush.msra.mxu0 %v3941
    %5206 = vmatpush.msra.mxu0 %v3925
    %5207 = vmatpush.msra.mxu0 %v3909
    %5208 = vmatpush.msra.mxu0 %v3893
    %5209 = vmatpush.msra.mxu0 %v3877
    %5210 = vmatpush.msra.mxu0 %v3861
    %5211 = vmatpush.msra.mxu0 %v3845
    %5212 = vmatmul.f32.gmra.mxu0 %v4868
    %v5213 = vpop.f32.mrf.mxu0
    %v5214 = vadd.f32 0.0, %v5213
    %5215 = vdwg.mxu0
    %5216 = vmatpush.msra.mxu0 %v4341
    %5217 = vmatpush.msra.mxu0 %v4325
    %5218 = vmatpush.msra.mxu0 %v4309
    %5219 = vmatpush.msra.mxu0 %v4293
    %5220 = vmatpush.msra.mxu0 %v4277
    %5221 = vmatpush.msra.mxu0 %v4261
    %5222 = vmatpush.msra.mxu0 %v4245
    %5223 = vmatpush.msra.mxu0 %v4229
    %5224 = vmatpush.msra.mxu0 %v4213
    %5225 = vmatpush.msra.mxu0 %v4197
    %5226 = vmatpush.msra.mxu0 %v4181
    %5227 = vmatpush.msra.mxu0 %v4165
    %5228 = vmatpush.msra.mxu0 %v4149
    %5229 = vmatpush.msra.mxu0 %v4133
    %5230 = vmatpush.msra.mxu0 %v4117
    %5231 = vmatpush.msra.mxu0 %v4101
    %5232 = vmatmul.f32.gmra.mxu0 %v4869
    %v5233 = vpop.f32.mrf.mxu0
    %v5234 = vadd.f32 %v5214, %v5233
    %5235 = vdwg.mxu0
    %5236 = vmatpush.msra.mxu0 %v4597
    %5237 = vmatpush.msra.mxu0 %v4581
    %5238 = vmatpush.msra.mxu0 %v4565
    %5239 = vmatpush.msra.mxu0 %v4549
    %5240 = vmatpush.msra.mxu0 %v4533
    %5241 = vmatpush.msra.mxu0 %v4517
    %5242 = vmatpush.msra.mxu0 %v4501
    %5243 = vmatpush.msra.mxu0 %v4485
    %5244 = vmatpush.msra.mxu0 %v4469
    %5245 = vmatpush.msra.mxu0 %v4453
    %5246 = vmatpush.msra.mxu0 %v4437
    %5247 = vmatpush.msra.mxu0 %v4421
    %5248 = vmatpush.msra.mxu0 %v4405
    %5249 = vmatpush.msra.mxu0 %v4389
    %5250 = vmatpush.msra.mxu0 %v4373
    %5251 = vmatpush.msra.mxu0 %v4357
    %5252 = vmatmul.f32.gmra.mxu0 %v4870
    %v5253 = vpop.f32.mrf.mxu0
    %v5254 = vadd.f32 %v5234, %v5253
    %5255 = vdwg.mxu0
    %5256 = vmatpush.msra.mxu0 %v4853
    %5257 = vmatpush.msra.mxu0 %v4837
    %5258 = vmatpush.msra.mxu0 %v4821
    %5259 = vmatpush.msra.mxu0 %v4805
    %5260 = vmatpush.msra.mxu0 %v4789
    %5261 = vmatpush.msra.mxu0 %v4773
    %5262 = vmatpush.msra.mxu0 %v4757
    %5263 = vmatpush.msra.mxu0 %v4741
    %5264 = vmatpush.msra.mxu0 %v4725
    %5265 = vmatpush.msra.mxu0 %v4709
    %5266 = vmatpush.msra.mxu0 %v4693
    %5267 = vmatpush.msra.mxu0 %v4677
    %5268 = vmatpush.msra.mxu0 %v4661
    %5269 = vmatpush.msra.mxu0 %v4645
    %5270 = vmatpush.msra.mxu0 %v4629
    %5271 = vmatpush.msra.mxu0 %v4613
    %5272 = vmatmul.f32.gmra.mxu0 %v4871
    %v5273 = vpop.f32.mrf.mxu0
    %v5274 = vadd.f32 %v5254, %v5273
    %5275 = vdwg.mxu0
    %5276 = vmatpush.msra.mxu0 %v4086
    %5277 = vmatpush.msra.mxu0 %v4070
    %5278 = vmatpush.msra.mxu0 %v4054
    %5279 = vmatpush.msra.mxu0 %v4038
    %5280 = vmatpush.msra.mxu0 %v4022
    %5281 = vmatpush.msra.mxu0 %v4006
    %5282 = vmatpush.msra.mxu0 %v3990
    %5283 = vmatpush.msra.mxu0 %v3974
    %5284 = vmatpush.msra.mxu0 %v3958
    %5285 = vmatpush.msra.mxu0 %v3942
    %5286 = vmatpush.msra.mxu0 %v3926
    %5287 = vmatpush.msra.mxu0 %v3910
    %5288 = vmatpush.msra.mxu0 %v3894
    %5289 = vmatpush.msra.mxu0 %v3878
    %5290 = vmatpush.msra.mxu0 %v3862
    %5291 = vmatpush.msra.mxu0 %v3846
    %5292 = vmatmul.f32.gmra.mxu0 %v4868
    %v5293 = vpop.f32.mrf.mxu0
    %v5294 = vadd.f32 0.0, %v5293
    %5295 = vdwg.mxu0
    %5296 = vmatpush.msra.mxu0 %v4342
    %5297 = vmatpush.msra.mxu0 %v4326
    %5298 = vmatpush.msra.mxu0 %v4310
    %5299 = vmatpush.msra.mxu0 %v4294
    %5300 = vmatpush.msra.mxu0 %v4278
    %5301 = vmatpush.msra.mxu0 %v4262
    %5302 = vmatpush.msra.mxu0 %v4246
    %5303 = vmatpush.msra.mxu0 %v4230
    %5304 = vmatpush.msra.mxu0 %v4214
    %5305 = vmatpush.msra.mxu0 %v4198
    %5306 = vmatpush.msra.mxu0 %v4182
    %5307 = vmatpush.msra.mxu0 %v4166
    %5308 = vmatpush.msra.mxu0 %v4150
    %5309 = vmatpush.msra.mxu0 %v4134
    %5310 = vmatpush.msra.mxu0 %v4118
    %5311 = vmatpush.msra.mxu0 %v4102
    %5312 = vmatmul.f32.gmra.mxu0 %v4869
    %v5313 = vpop.f32.mrf.mxu0
    %v5314 = vadd.f32 %v5294, %v5313
    %5315 = vdwg.mxu0
    %5316 = vmatpush.msra.mxu0 %v4598
    %5317 = vmatpush.msra.mxu0 %v4582
    %5318 = vmatpush.msra.mxu0 %v4566
    %5319 = vmatpush.msra.mxu0 %v4550
    %5320 = vmatpush.msra.mxu0 %v4534
    %5321 = vmatpush.msra.mxu0 %v4518
    %5322 = vmatpush.msra.mxu0 %v4502
    %5323 = vmatpush.msra.mxu0 %v4486
    %5324 = vmatpush.msra.mxu0 %v4470
    %5325 = vmatpush.msra.mxu0 %v4454
    %5326 = vmatpush.msra.mxu0 %v4438
    %5327 = vmatpush.msra.mxu0 %v4422
    %5328 = vmatpush.msra.mxu0 %v4406
    %5329 = vmatpush.msra.mxu0 %v4390
    %5330 = vmatpush.msra.mxu0 %v4374
    %5331 = vmatpush.msra.mxu0 %v4358
    %5332 = vmatmul.f32.gmra.mxu0 %v4870
    %v5333 = vpop.f32.mrf.mxu0
    %v5334 = vadd.f32 %v5314, %v5333
    %5335 = vdwg.mxu0
    %5336 = vmatpush.msra.mxu0 %v4854
    %5337 = vmatpush.msra.mxu0 %v4838
    %5338 = vmatpush.msra.mxu0 %v4822
    %5339 = vmatpush.msra.mxu0 %v4806
    %5340 = vmatpush.msra.mxu0 %v4790
    %5341 = vmatpush.msra.mxu0 %v4774
    %5342 = vmatpush.msra.mxu0 %v4758
    %5343 = vmatpush.msra.mxu0 %v4742
    %5344 = vmatpush.msra.mxu0 %v4726
    %5345 = vmatpush.msra.mxu0 %v4710
    %5346 = vmatpush.msra.mxu0 %v4694
    %5347 = vmatpush.msra.mxu0 %v4678
    %5348 = vmatpush.msra.mxu0 %v4662
    %5349 = vmatpush.msra.mxu0 %v4646
    %5350 = vmatpush.msra.mxu0 %v4630
    %5351 = vmatpush.msra.mxu0 %v4614
    %5352 = vmatmul.f32.gmra.mxu0 %v4871
    %v5353 = vpop.f32.mrf.mxu0
    %v5354 = vadd.f32 %v5334, %v5353
    %5355 = vdwg.mxu0
    %5356 = vmatpush.msra.mxu0 %v4087
    %5357 = vmatpush.msra.mxu0 %v4071
    %5358 = vmatpush.msra.mxu0 %v4055
    %5359 = vmatpush.msra.mxu0 %v4039
    %5360 = vmatpush.msra.mxu0 %v4023
    %5361 = vmatpush.msra.mxu0 %v4007
    %5362 = vmatpush.msra.mxu0 %v3991
    %5363 = vmatpush.msra.mxu0 %v3975
    %5364 = vmatpush.msra.mxu0 %v3959
    %5365 = vmatpush.msra.mxu0 %v3943
    %5366 = vmatpush.msra.mxu0 %v3927
    %5367 = vmatpush.msra.mxu0 %v3911
    %5368 = vmatpush.msra.mxu0 %v3895
    %5369 = vmatpush.msra.mxu0 %v3879
    %5370 = vmatpush.msra.mxu0 %v3863
    %5371 = vmatpush.msra.mxu0 %v3847
    %5372 = vmatmul.f32.gmra.mxu0 %v4868
    %v5373 = vpop.f32.mrf.mxu0
    %v5374 = vadd.f32 0.0, %v5373
    %5375 = vdwg.mxu0
    %5376 = vmatpush.msra.mxu0 %v4343
    %5377 = vmatpush.msra.mxu0 %v4327
    %5378 = vmatpush.msra.mxu0 %v4311
    %5379 = vmatpush.msra.mxu0 %v4295
    %5380 = vmatpush.msra.mxu0 %v4279
    %5381 = vmatpush.msra.mxu0 %v4263
    %5382 = vmatpush.msra.mxu0 %v4247
    %5383 = vmatpush.msra.mxu0 %v4231
    %5384 = vmatpush.msra.mxu0 %v4215
    %5385 = vmatpush.msra.mxu0 %v4199
    %5386 = vmatpush.msra.mxu0 %v4183
    %5387 = vmatpush.msra.mxu0 %v4167
    %5388 = vmatpush.msra.mxu0 %v4151
    %5389 = vmatpush.msra.mxu0 %v4135
    %5390 = vmatpush.msra.mxu0 %v4119
    %5391 = vmatpush.msra.mxu0 %v4103
    %5392 = vmatmul.f32.gmra.mxu0 %v4869
    %v5393 = vpop.f32.mrf.mxu0
    %v5394 = vadd.f32 %v5374, %v5393
    %5395 = vdwg.mxu0
    %5396 = vmatpush.msra.mxu0 %v4599
    %5397 = vmatpush.msra.mxu0 %v4583
    %5398 = vmatpush.msra.mxu0 %v4567
    %5399 = vmatpush.msra.mxu0 %v4551
    %5400 = vmatpush.msra.mxu0 %v4535
    %5401 = vmatpush.msra.mxu0 %v4519
    %5402 = vmatpush.msra.mxu0 %v4503
    %5403 = vmatpush.msra.mxu0 %v4487
    %5404 = vmatpush.msra.mxu0 %v4471
    %5405 = vmatpush.msra.mxu0 %v4455
    %5406 = vmatpush.msra.mxu0 %v4439
    %5407 = vmatpush.msra.mxu0 %v4423
    %5408 = vmatpush.msra.mxu0 %v4407
    %5409 = vmatpush.msra.mxu0 %v4391
    %5410 = vmatpush.msra.mxu0 %v4375
    %5411 = vmatpush.msra.mxu0 %v4359
    %5412 = vmatmul.f32.gmra.mxu0 %v4870
    %v5413 = vpop.f32.mrf.mxu0
    %v5414 = vadd.f32 %v5394, %v5413
    %5415 = vdwg.mxu0
    %5416 = vmatpush.msra.mxu0 %v4855
    %5417 = vmatpush.msra.mxu0 %v4839
    %5418 = vmatpush.msra.mxu0 %v4823
    %5419 = vmatpush.msra.mxu0 %v4807
    %5420 = vmatpush.msra.mxu0 %v4791
    %5421 = vmatpush.msra.mxu0 %v4775
    %5422 = vmatpush.msra.mxu0 %v4759
    %5423 = vmatpush.msra.mxu0 %v4743
    %5424 = vmatpush.msra.mxu0 %v4727
    %5425 = vmatpush.msra.mxu0 %v4711
    %5426 = vmatpush.msra.mxu0 %v4695
    %5427 = vmatpush.msra.mxu0 %v4679
    %5428 = vmatpush.msra.mxu0 %v4663
    %5429 = vmatpush.msra.mxu0 %v4647
    %5430 = vmatpush.msra.mxu0 %v4631
    %5431 = vmatpush.msra.mxu0 %v4615
    %5432 = vmatmul.f32.gmra.mxu0 %v4871
    %v5433 = vpop.f32.mrf.mxu0
    %v5434 = vadd.f32 %v5414, %v5433
    %5435 = vdwg.mxu0
    %5436 = vmatpush.msra.mxu0 %v4088
    %5437 = vmatpush.msra.mxu0 %v4072
    %5438 = vmatpush.msra.mxu0 %v4056
    %5439 = vmatpush.msra.mxu0 %v4040
    %5440 = vmatpush.msra.mxu0 %v4024
    %5441 = vmatpush.msra.mxu0 %v4008
    %5442 = vmatpush.msra.mxu0 %v3992
    %5443 = vmatpush.msra.mxu0 %v3976
    %5444 = vmatpush.msra.mxu0 %v3960
    %5445 = vmatpush.msra.mxu0 %v3944
    %5446 = vmatpush.msra.mxu0 %v3928
    %5447 = vmatpush.msra.mxu0 %v3912
    %5448 = vmatpush.msra.mxu0 %v3896
    %5449 = vmatpush.msra.mxu0 %v3880
    %5450 = vmatpush.msra.mxu0 %v3864
    %5451 = vmatpush.msra.mxu0 %v3848
    %5452 = vmatmul.f32.gmra.mxu0 %v4868
    %v5453 = vpop.f32.mrf.mxu0
    %v5454 = vadd.f32 0.0, %v5453
    %5455 = vdwg.mxu0
    %5456 = vmatpush.msra.mxu0 %v4344
    %5457 = vmatpush.msra.mxu0 %v4328
    %5458 = vmatpush.msra.mxu0 %v4312
    %5459 = vmatpush.msra.mxu0 %v4296
    %5460 = vmatpush.msra.mxu0 %v4280
    %5461 = vmatpush.msra.mxu0 %v4264
    %5462 = vmatpush.msra.mxu0 %v4248
    %5463 = vmatpush.msra.mxu0 %v4232
    %5464 = vmatpush.msra.mxu0 %v4216
    %5465 = vmatpush.msra.mxu0 %v4200
    %5466 = vmatpush.msra.mxu0 %v4184
    %5467 = vmatpush.msra.mxu0 %v4168
    %5468 = vmatpush.msra.mxu0 %v4152
    %5469 = vmatpush.msra.mxu0 %v4136
    %5470 = vmatpush.msra.mxu0 %v4120
    %5471 = vmatpush.msra.mxu0 %v4104
    %5472 = vmatmul.f32.gmra.mxu0 %v4869
    %v5473 = vpop.f32.mrf.mxu0
    %v5474 = vadd.f32 %v5454, %v5473
    %5475 = vdwg.mxu0
    %5476 = vmatpush.msra.mxu0 %v4600
    %5477 = vmatpush.msra.mxu0 %v4584
    %5478 = vmatpush.msra.mxu0 %v4568
    %5479 = vmatpush.msra.mxu0 %v4552
    %5480 = vmatpush.msra.mxu0 %v4536
    %5481 = vmatpush.msra.mxu0 %v4520
    %5482 = vmatpush.msra.mxu0 %v4504
    %5483 = vmatpush.msra.mxu0 %v4488
    %5484 = vmatpush.msra.mxu0 %v4472
    %5485 = vmatpush.msra.mxu0 %v4456
    %5486 = vmatpush.msra.mxu0 %v4440
    %5487 = vmatpush.msra.mxu0 %v4424
    %5488 = vmatpush.msra.mxu0 %v4408
    %5489 = vmatpush.msra.mxu0 %v4392
    %5490 = vmatpush.msra.mxu0 %v4376
    %5491 = vmatpush.msra.mxu0 %v4360
    %5492 = vmatmul.f32.gmra.mxu0 %v4870
    %v5493 = vpop.f32.mrf.mxu0
    %v5494 = vadd.f32 %v5474, %v5493
    %5495 = vdwg.mxu0
    %5496 = vmatpush.msra.mxu0 %v4856
    %5497 = vmatpush.msra.mxu0 %v4840
    %5498 = vmatpush.msra.mxu0 %v4824
    %5499 = vmatpush.msra.mxu0 %v4808
    %5500 = vmatpush.msra.mxu0 %v4792
    %5501 = vmatpush.msra.mxu0 %v4776
    %5502 = vmatpush.msra.mxu0 %v4760
    %5503 = vmatpush.msra.mxu0 %v4744
    %5504 = vmatpush.msra.mxu0 %v4728
    %5505 = vmatpush.msra.mxu0 %v4712
    %5506 = vmatpush.msra.mxu0 %v4696
    %5507 = vmatpush.msra.mxu0 %v4680
    %5508 = vmatpush.msra.mxu0 %v4664
    %5509 = vmatpush.msra.mxu0 %v4648
    %5510 = vmatpush.msra.mxu0 %v4632
    %5511 = vmatpush.msra.mxu0 %v4616
    %5512 = vmatmul.f32.gmra.mxu0 %v4871
    %v5513 = vpop.f32.mrf.mxu0
    %v5514 = vadd.f32 %v5494, %v5513
    %5515 = vdwg.mxu0
    %5516 = vmatpush.msra.mxu0 %v4089
    %5517 = vmatpush.msra.mxu0 %v4073
    %5518 = vmatpush.msra.mxu0 %v4057
    %5519 = vmatpush.msra.mxu0 %v4041
    %5520 = vmatpush.msra.mxu0 %v4025
    %5521 = vmatpush.msra.mxu0 %v4009
    %5522 = vmatpush.msra.mxu0 %v3993
    %5523 = vmatpush.msra.mxu0 %v3977
    %5524 = vmatpush.msra.mxu0 %v3961
    %5525 = vmatpush.msra.mxu0 %v3945
    %5526 = vmatpush.msra.mxu0 %v3929
    %5527 = vmatpush.msra.mxu0 %v3913
    %5528 = vmatpush.msra.mxu0 %v3897
    %5529 = vmatpush.msra.mxu0 %v3881
    %5530 = vmatpush.msra.mxu0 %v3865
    %5531 = vmatpush.msra.mxu0 %v3849
    %5532 = vmatmul.f32.gmra.mxu0 %v4868
    %v5533 = vpop.f32.mrf.mxu0
    %v5534 = vadd.f32 0.0, %v5533
    %5535 = vdwg.mxu0
    %5536 = vmatpush.msra.mxu0 %v4345
    %5537 = vmatpush.msra.mxu0 %v4329
    %5538 = vmatpush.msra.mxu0 %v4313
    %5539 = vmatpush.msra.mxu0 %v4297
    %5540 = vmatpush.msra.mxu0 %v4281
    %5541 = vmatpush.msra.mxu0 %v4265
    %5542 = vmatpush.msra.mxu0 %v4249
    %5543 = vmatpush.msra.mxu0 %v4233
    %5544 = vmatpush.msra.mxu0 %v4217
    %5545 = vmatpush.msra.mxu0 %v4201
    %5546 = vmatpush.msra.mxu0 %v4185
    %5547 = vmatpush.msra.mxu0 %v4169
    %5548 = vmatpush.msra.mxu0 %v4153
    %5549 = vmatpush.msra.mxu0 %v4137
    %5550 = vmatpush.msra.mxu0 %v4121
    %5551 = vmatpush.msra.mxu0 %v4105
    %5552 = vmatmul.f32.gmra.mxu0 %v4869
    %v5553 = vpop.f32.mrf.mxu0
    %v5554 = vadd.f32 %v5534, %v5553
    %5555 = vdwg.mxu0
    %5556 = vmatpush.msra.mxu0 %v4601
    %5557 = vmatpush.msra.mxu0 %v4585
    %5558 = vmatpush.msra.mxu0 %v4569
    %5559 = vmatpush.msra.mxu0 %v4553
    %5560 = vmatpush.msra.mxu0 %v4537
    %5561 = vmatpush.msra.mxu0 %v4521
    %5562 = vmatpush.msra.mxu0 %v4505
    %5563 = vmatpush.msra.mxu0 %v4489
    %5564 = vmatpush.msra.mxu0 %v4473
    %5565 = vmatpush.msra.mxu0 %v4457
    %5566 = vmatpush.msra.mxu0 %v4441
    %5567 = vmatpush.msra.mxu0 %v4425
    %5568 = vmatpush.msra.mxu0 %v4409
    %5569 = vmatpush.msra.mxu0 %v4393
    %5570 = vmatpush.msra.mxu0 %v4377
    %5571 = vmatpush.msra.mxu0 %v4361
    %5572 = vmatmul.f32.gmra.mxu0 %v4870
    %v5573 = vpop.f32.mrf.mxu0
    %v5574 = vadd.f32 %v5554, %v5573
    %5575 = vdwg.mxu0
    %5576 = vmatpush.msra.mxu0 %v4857
    %5577 = vmatpush.msra.mxu0 %v4841
    %5578 = vmatpush.msra.mxu0 %v4825
    %5579 = vmatpush.msra.mxu0 %v4809
    %5580 = vmatpush.msra.mxu0 %v4793
    %5581 = vmatpush.msra.mxu0 %v4777
    %5582 = vmatpush.msra.mxu0 %v4761
    %5583 = vmatpush.msra.mxu0 %v4745
    %5584 = vmatpush.msra.mxu0 %v4729
    %5585 = vmatpush.msra.mxu0 %v4713
    %5586 = vmatpush.msra.mxu0 %v4697
    %5587 = vmatpush.msra.mxu0 %v4681
    %5588 = vmatpush.msra.mxu0 %v4665
    %5589 = vmatpush.msra.mxu0 %v4649
    %5590 = vmatpush.msra.mxu0 %v4633
    %5591 = vmatpush.msra.mxu0 %v4617
    %5592 = vmatmul.f32.gmra.mxu0 %v4871
    %v5593 = vpop.f32.mrf.mxu0
    %v5594 = vadd.f32 %v5574, %v5593
    %5595 = vdwg.mxu0
    %5596 = vmatpush.msra.mxu0 %v4090
    %5597 = vmatpush.msra.mxu0 %v4074
    %5598 = vmatpush.msra.mxu0 %v4058
    %5599 = vmatpush.msra.mxu0 %v4042
    %5600 = vmatpush.msra.mxu0 %v4026
    %5601 = vmatpush.msra.mxu0 %v4010
    %5602 = vmatpush.msra.mxu0 %v3994
    %5603 = vmatpush.msra.mxu0 %v3978
    %5604 = vmatpush.msra.mxu0 %v3962
    %5605 = vmatpush.msra.mxu0 %v3946
    %5606 = vmatpush.msra.mxu0 %v3930
    %5607 = vmatpush.msra.mxu0 %v3914
    %5608 = vmatpush.msra.mxu0 %v3898
    %5609 = vmatpush.msra.mxu0 %v3882
    %5610 = vmatpush.msra.mxu0 %v3866
    %5611 = vmatpush.msra.mxu0 %v3850
    %5612 = vmatmul.f32.gmra.mxu0 %v4868
    %v5613 = vpop.f32.mrf.mxu0
    %v5614 = vadd.f32 0.0, %v5613
    %5615 = vdwg.mxu0
    %5616 = vmatpush.msra.mxu0 %v4346
    %5617 = vmatpush.msra.mxu0 %v4330
    %5618 = vmatpush.msra.mxu0 %v4314
    %5619 = vmatpush.msra.mxu0 %v4298
    %5620 = vmatpush.msra.mxu0 %v4282
    %5621 = vmatpush.msra.mxu0 %v4266
    %5622 = vmatpush.msra.mxu0 %v4250
    %5623 = vmatpush.msra.mxu0 %v4234
    %5624 = vmatpush.msra.mxu0 %v4218
    %5625 = vmatpush.msra.mxu0 %v4202
    %5626 = vmatpush.msra.mxu0 %v4186
    %5627 = vmatpush.msra.mxu0 %v4170
    %5628 = vmatpush.msra.mxu0 %v4154
    %5629 = vmatpush.msra.mxu0 %v4138
    %5630 = vmatpush.msra.mxu0 %v4122
    %5631 = vmatpush.msra.mxu0 %v4106
    %5632 = vmatmul.f32.gmra.mxu0 %v4869
    %v5633 = vpop.f32.mrf.mxu0
    %v5634 = vadd.f32 %v5614, %v5633
    %5635 = vdwg.mxu0
    %5636 = vmatpush.msra.mxu0 %v4602
    %5637 = vmatpush.msra.mxu0 %v4586
    %5638 = vmatpush.msra.mxu0 %v4570
    %5639 = vmatpush.msra.mxu0 %v4554
    %5640 = vmatpush.msra.mxu0 %v4538
    %5641 = vmatpush.msra.mxu0 %v4522
    %5642 = vmatpush.msra.mxu0 %v4506
    %5643 = vmatpush.msra.mxu0 %v4490
    %5644 = vmatpush.msra.mxu0 %v4474
    %5645 = vmatpush.msra.mxu0 %v4458
    %5646 = vmatpush.msra.mxu0 %v4442
    %5647 = vmatpush.msra.mxu0 %v4426
    %5648 = vmatpush.msra.mxu0 %v4410
    %5649 = vmatpush.msra.mxu0 %v4394
    %5650 = vmatpush.msra.mxu0 %v4378
    %5651 = vmatpush.msra.mxu0 %v4362
    %5652 = vmatmul.f32.gmra.mxu0 %v4870
    %v5653 = vpop.f32.mrf.mxu0
    %v5654 = vadd.f32 %v5634, %v5653
    %5655 = vdwg.mxu0
    %5656 = vmatpush.msra.mxu0 %v4858
    %5657 = vmatpush.msra.mxu0 %v4842
    %5658 = vmatpush.msra.mxu0 %v4826
    %5659 = vmatpush.msra.mxu0 %v4810
    %5660 = vmatpush.msra.mxu0 %v4794
    %5661 = vmatpush.msra.mxu0 %v4778
    %5662 = vmatpush.msra.mxu0 %v4762
    %5663 = vmatpush.msra.mxu0 %v4746
    %5664 = vmatpush.msra.mxu0 %v4730
    %5665 = vmatpush.msra.mxu0 %v4714
    %5666 = vmatpush.msra.mxu0 %v4698
    %5667 = vmatpush.msra.mxu0 %v4682
    %5668 = vmatpush.msra.mxu0 %v4666
    %5669 = vmatpush.msra.mxu0 %v4650
    %5670 = vmatpush.msra.mxu0 %v4634
    %5671 = vmatpush.msra.mxu0 %v4618
    %5672 = vmatmul.f32.gmra.mxu0 %v4871
    %v5673 = vpop.f32.mrf.mxu0
    %v5674 = vadd.f32 %v5654, %v5673
    %5675 = vdwg.mxu0
    %5676 = vmatpush.msra.mxu0 %v4091
    %5677 = vmatpush.msra.mxu0 %v4075
    %5678 = vmatpush.msra.mxu0 %v4059
    %5679 = vmatpush.msra.mxu0 %v4043
    %5680 = vmatpush.msra.mxu0 %v4027
    %5681 = vmatpush.msra.mxu0 %v4011
    %5682 = vmatpush.msra.mxu0 %v3995
    %5683 = vmatpush.msra.mxu0 %v3979
    %5684 = vmatpush.msra.mxu0 %v3963
    %5685 = vmatpush.msra.mxu0 %v3947
    %5686 = vmatpush.msra.mxu0 %v3931
    %5687 = vmatpush.msra.mxu0 %v3915
    %5688 = vmatpush.msra.mxu0 %v3899
    %5689 = vmatpush.msra.mxu0 %v3883
    %5690 = vmatpush.msra.mxu0 %v3867
    %5691 = vmatpush.msra.mxu0 %v3851
    %5692 = vmatmul.f32.gmra.mxu0 %v4868
    %v5693 = vpop.f32.mrf.mxu0
    %v5694 = vadd.f32 0.0, %v5693
    %5695 = vdwg.mxu0
    %5696 = vmatpush.msra.mxu0 %v4347
    %5697 = vmatpush.msra.mxu0 %v4331
    %5698 = vmatpush.msra.mxu0 %v4315
    %5699 = vmatpush.msra.mxu0 %v4299
    %5700 = vmatpush.msra.mxu0 %v4283
    %5701 = vmatpush.msra.mxu0 %v4267
    %5702 = vmatpush.msra.mxu0 %v4251
    %5703 = vmatpush.msra.mxu0 %v4235
    %5704 = vmatpush.msra.mxu0 %v4219
    %5705 = vmatpush.msra.mxu0 %v4203
    %5706 = vmatpush.msra.mxu0 %v4187
    %5707 = vmatpush.msra.mxu0 %v4171
    %5708 = vmatpush.msra.mxu0 %v4155
    %5709 = vmatpush.msra.mxu0 %v4139
    %5710 = vmatpush.msra.mxu0 %v4123
    %5711 = vmatpush.msra.mxu0 %v4107
    %5712 = vmatmul.f32.gmra.mxu0 %v4869
    %v5713 = vpop.f32.mrf.mxu0
    %v5714 = vadd.f32 %v5694, %v5713
    %5715 = vdwg.mxu0
    %5716 = vmatpush.msra.mxu0 %v4603
    %5717 = vmatpush.msra.mxu0 %v4587
    %5718 = vmatpush.msra.mxu0 %v4571
    %5719 = vmatpush.msra.mxu0 %v4555
    %5720 = vmatpush.msra.mxu0 %v4539
    %5721 = vmatpush.msra.mxu0 %v4523
    %5722 = vmatpush.msra.mxu0 %v4507
    %5723 = vmatpush.msra.mxu0 %v4491
    %5724 = vmatpush.msra.mxu0 %v4475
    %5725 = vmatpush.msra.mxu0 %v4459
    %5726 = vmatpush.msra.mxu0 %v4443
    %5727 = vmatpush.msra.mxu0 %v4427
    %5728 = vmatpush.msra.mxu0 %v4411
    %5729 = vmatpush.msra.mxu0 %v4395
    %5730 = vmatpush.msra.mxu0 %v4379
    %5731 = vmatpush.msra.mxu0 %v4363
    %5732 = vmatmul.f32.gmra.mxu0 %v4870
    %v5733 = vpop.f32.mrf.mxu0
    %v5734 = vadd.f32 %v5714, %v5733
    %5735 = vdwg.mxu0
    %5736 = vmatpush.msra.mxu0 %v4859
    %5737 = vmatpush.msra.mxu0 %v4843
    %5738 = vmatpush.msra.mxu0 %v4827
    %5739 = vmatpush.msra.mxu0 %v4811
    %5740 = vmatpush.msra.mxu0 %v4795
    %5741 = vmatpush.msra.mxu0 %v4779
    %5742 = vmatpush.msra.mxu0 %v4763
    %5743 = vmatpush.msra.mxu0 %v4747
    %5744 = vmatpush.msra.mxu0 %v4731
    %5745 = vmatpush.msra.mxu0 %v4715
    %5746 = vmatpush.msra.mxu0 %v4699
    %5747 = vmatpush.msra.mxu0 %v4683
    %5748 = vmatpush.msra.mxu0 %v4667
    %5749 = vmatpush.msra.mxu0 %v4651
    %5750 = vmatpush.msra.mxu0 %v4635
    %5751 = vmatpush.msra.mxu0 %v4619
    %5752 = vmatmul.f32.gmra.mxu0 %v4871
    %v5753 = vpop.f32.mrf.mxu0
    %v5754 = vadd.f32 %v5734, %v5753
    %5755 = vdwg.mxu0
    %5756 = vmatpush.msra.mxu0 %v4092
    %5757 = vmatpush.msra.mxu0 %v4076
    %5758 = vmatpush.msra.mxu0 %v4060
    %5759 = vmatpush.msra.mxu0 %v4044
    %5760 = vmatpush.msra.mxu0 %v4028
    %5761 = vmatpush.msra.mxu0 %v4012
    %5762 = vmatpush.msra.mxu0 %v3996
    %5763 = vmatpush.msra.mxu0 %v3980
    %5764 = vmatpush.msra.mxu0 %v3964
    %5765 = vmatpush.msra.mxu0 %v3948
    %5766 = vmatpush.msra.mxu0 %v3932
    %5767 = vmatpush.msra.mxu0 %v3916
    %5768 = vmatpush.msra.mxu0 %v3900
    %5769 = vmatpush.msra.mxu0 %v3884
    %5770 = vmatpush.msra.mxu0 %v3868
    %5771 = vmatpush.msra.mxu0 %v3852
    %5772 = vmatmul.f32.gmra.mxu0 %v4868
    %v5773 = vpop.f32.mrf.mxu0
    %v5774 = vadd.f32 0.0, %v5773
    %5775 = vdwg.mxu0
    %5776 = vmatpush.msra.mxu0 %v4348
    %5777 = vmatpush.msra.mxu0 %v4332
    %5778 = vmatpush.msra.mxu0 %v4316
    %5779 = vmatpush.msra.mxu0 %v4300
    %5780 = vmatpush.msra.mxu0 %v4284
    %5781 = vmatpush.msra.mxu0 %v4268
    %5782 = vmatpush.msra.mxu0 %v4252
    %5783 = vmatpush.msra.mxu0 %v4236
    %5784 = vmatpush.msra.mxu0 %v4220
    %5785 = vmatpush.msra.mxu0 %v4204
    %5786 = vmatpush.msra.mxu0 %v4188
    %5787 = vmatpush.msra.mxu0 %v4172
    %5788 = vmatpush.msra.mxu0 %v4156
    %5789 = vmatpush.msra.mxu0 %v4140
    %5790 = vmatpush.msra.mxu0 %v4124
    %5791 = vmatpush.msra.mxu0 %v4108
    %5792 = vmatmul.f32.gmra.mxu0 %v4869
    %v5793 = vpop.f32.mrf.mxu0
    %v5794 = vadd.f32 %v5774, %v5793
    %5795 = vdwg.mxu0
    %5796 = vmatpush.msra.mxu0 %v4604
    %5797 = vmatpush.msra.mxu0 %v4588
    %5798 = vmatpush.msra.mxu0 %v4572
    %5799 = vmatpush.msra.mxu0 %v4556
    %5800 = vmatpush.msra.mxu0 %v4540
    %5801 = vmatpush.msra.mxu0 %v4524
    %5802 = vmatpush.msra.mxu0 %v4508
    %5803 = vmatpush.msra.mxu0 %v4492
    %5804 = vmatpush.msra.mxu0 %v4476
    %5805 = vmatpush.msra.mxu0 %v4460
    %5806 = vmatpush.msra.mxu0 %v4444
    %5807 = vmatpush.msra.mxu0 %v4428
    %5808 = vmatpush.msra.mxu0 %v4412
    %5809 = vmatpush.msra.mxu0 %v4396
    %5810 = vmatpush.msra.mxu0 %v4380
    %5811 = vmatpush.msra.mxu0 %v4364
    %5812 = vmatmul.f32.gmra.mxu0 %v4870
    %v5813 = vpop.f32.mrf.mxu0
    %v5814 = vadd.f32 %v5794, %v5813
    %5815 = vdwg.mxu0
    %5816 = vmatpush.msra.mxu0 %v4860
    %5817 = vmatpush.msra.mxu0 %v4844
    %5818 = vmatpush.msra.mxu0 %v4828
    %5819 = vmatpush.msra.mxu0 %v4812
    %5820 = vmatpush.msra.mxu0 %v4796
    %5821 = vmatpush.msra.mxu0 %v4780
    %5822 = vmatpush.msra.mxu0 %v4764
    %5823 = vmatpush.msra.mxu0 %v4748
    %5824 = vmatpush.msra.mxu0 %v4732
    %5825 = vmatpush.msra.mxu0 %v4716
    %5826 = vmatpush.msra.mxu0 %v4700
    %5827 = vmatpush.msra.mxu0 %v4684
    %5828 = vmatpush.msra.mxu0 %v4668
    %5829 = vmatpush.msra.mxu0 %v4652
    %5830 = vmatpush.msra.mxu0 %v4636
    %5831 = vmatpush.msra.mxu0 %v4620
    %5832 = vmatmul.f32.gmra.mxu0 %v4871
    %v5833 = vpop.f32.mrf.mxu0
    %v5834 = vadd.f32 %v5814, %v5833
    %5835 = vdwg.mxu0
    %5836 = vmatpush.msra.mxu0 %v4093
    %5837 = vmatpush.msra.mxu0 %v4077
    %5838 = vmatpush.msra.mxu0 %v4061
    %5839 = vmatpush.msra.mxu0 %v4045
    %5840 = vmatpush.msra.mxu0 %v4029
    %5841 = vmatpush.msra.mxu0 %v4013
    %5842 = vmatpush.msra.mxu0 %v3997
    %5843 = vmatpush.msra.mxu0 %v3981
    %5844 = vmatpush.msra.mxu0 %v3965
    %5845 = vmatpush.msra.mxu0 %v3949
    %5846 = vmatpush.msra.mxu0 %v3933
    %5847 = vmatpush.msra.mxu0 %v3917
    %5848 = vmatpush.msra.mxu0 %v3901
    %5849 = vmatpush.msra.mxu0 %v3885
    %5850 = vmatpush.msra.mxu0 %v3869
    %5851 = vmatpush.msra.mxu0 %v3853
    %5852 = vmatmul.f32.gmra.mxu0 %v4868
    %v5853 = vpop.f32.mrf.mxu0
    %v5854 = vadd.f32 0.0, %v5853
    %5855 = vdwg.mxu0
    %5856 = vmatpush.msra.mxu0 %v4349
    %5857 = vmatpush.msra.mxu0 %v4333
    %5858 = vmatpush.msra.mxu0 %v4317
    %5859 = vmatpush.msra.mxu0 %v4301
    %5860 = vmatpush.msra.mxu0 %v4285
    %5861 = vmatpush.msra.mxu0 %v4269
    %5862 = vmatpush.msra.mxu0 %v4253
    %5863 = vmatpush.msra.mxu0 %v4237
    %5864 = vmatpush.msra.mxu0 %v4221
    %5865 = vmatpush.msra.mxu0 %v4205
    %5866 = vmatpush.msra.mxu0 %v4189
    %5867 = vmatpush.msra.mxu0 %v4173
    %5868 = vmatpush.msra.mxu0 %v4157
    %5869 = vmatpush.msra.mxu0 %v4141
    %5870 = vmatpush.msra.mxu0 %v4125
    %5871 = vmatpush.msra.mxu0 %v4109
    %5872 = vmatmul.f32.gmra.mxu0 %v4869
    %v5873 = vpop.f32.mrf.mxu0
    %v5874 = vadd.f32 %v5854, %v5873
    %5875 = vdwg.mxu0
    %5876 = vmatpush.msra.mxu0 %v4605
    %5877 = vmatpush.msra.mxu0 %v4589
    %5878 = vmatpush.msra.mxu0 %v4573
    %5879 = vmatpush.msra.mxu0 %v4557
    %5880 = vmatpush.msra.mxu0 %v4541
    %5881 = vmatpush.msra.mxu0 %v4525
    %5882 = vmatpush.msra.mxu0 %v4509
    %5883 = vmatpush.msra.mxu0 %v4493
    %5884 = vmatpush.msra.mxu0 %v4477
    %5885 = vmatpush.msra.mxu0 %v4461
    %5886 = vmatpush.msra.mxu0 %v4445
    %5887 = vmatpush.msra.mxu0 %v4429
    %5888 = vmatpush.msra.mxu0 %v4413
    %5889 = vmatpush.msra.mxu0 %v4397
    %5890 = vmatpush.msra.mxu0 %v4381
    %5891 = vmatpush.msra.mxu0 %v4365
    %5892 = vmatmul.f32.gmra.mxu0 %v4870
    %v5893 = vpop.f32.mrf.mxu0
    %v5894 = vadd.f32 %v5874, %v5893
    %5895 = vdwg.mxu0
    %5896 = vmatpush.msra.mxu0 %v4861
    %5897 = vmatpush.msra.mxu0 %v4845
    %5898 = vmatpush.msra.mxu0 %v4829
    %5899 = vmatpush.msra.mxu0 %v4813
    %5900 = vmatpush.msra.mxu0 %v4797
    %5901 = vmatpush.msra.mxu0 %v4781
    %5902 = vmatpush.msra.mxu0 %v4765
    %5903 = vmatpush.msra.mxu0 %v4749
    %5904 = vmatpush.msra.mxu0 %v4733
    %5905 = vmatpush.msra.mxu0 %v4717
    %5906 = vmatpush.msra.mxu0 %v4701
    %5907 = vmatpush.msra.mxu0 %v4685
    %5908 = vmatpush.msra.mxu0 %v4669
    %5909 = vmatpush.msra.mxu0 %v4653
    %5910 = vmatpush.msra.mxu0 %v4637
    %5911 = vmatpush.msra.mxu0 %v4621
    %5912 = vmatmul.f32.gmra.mxu0 %v4871
    %v5913 = vpop.f32.mrf.mxu0
    %v5914 = vadd.f32 %v5894, %v5913
    %5915 = vdwg.mxu0
    %5916 = vmatpush.msra.mxu0 %v4094
    %5917 = vmatpush.msra.mxu0 %v4078
    %5918 = vmatpush.msra.mxu0 %v4062
    %5919 = vmatpush.msra.mxu0 %v4046
    %5920 = vmatpush.msra.mxu0 %v4030
    %5921 = vmatpush.msra.mxu0 %v4014
    %5922 = vmatpush.msra.mxu0 %v3998
    %5923 = vmatpush.msra.mxu0 %v3982
    %5924 = vmatpush.msra.mxu0 %v3966
    %5925 = vmatpush.msra.mxu0 %v3950
    %5926 = vmatpush.msra.mxu0 %v3934
    %5927 = vmatpush.msra.mxu0 %v3918
    %5928 = vmatpush.msra.mxu0 %v3902
    %5929 = vmatpush.msra.mxu0 %v3886
    %5930 = vmatpush.msra.mxu0 %v3870
    %5931 = vmatpush.msra.mxu0 %v3854
    %5932 = vmatmul.f32.gmra.mxu0 %v4868
    %v5933 = vpop.f32.mrf.mxu0
    %v5934 = vadd.f32 0.0, %v5933
    %5935 = vdwg.mxu0
    %5936 = vmatpush.msra.mxu0 %v4350
    %5937 = vmatpush.msra.mxu0 %v4334
    %5938 = vmatpush.msra.mxu0 %v4318
    %5939 = vmatpush.msra.mxu0 %v4302
    %5940 = vmatpush.msra.mxu0 %v4286
    %5941 = vmatpush.msra.mxu0 %v4270
    %5942 = vmatpush.msra.mxu0 %v4254
    %5943 = vmatpush.msra.mxu0 %v4238
    %5944 = vmatpush.msra.mxu0 %v4222
    %5945 = vmatpush.msra.mxu0 %v4206
    %5946 = vmatpush.msra.mxu0 %v4190
    %5947 = vmatpush.msra.mxu0 %v4174
    %5948 = vmatpush.msra.mxu0 %v4158
    %5949 = vmatpush.msra.mxu0 %v4142
    %5950 = vmatpush.msra.mxu0 %v4126
    %5951 = vmatpush.msra.mxu0 %v4110
    %5952 = vmatmul.f32.gmra.mxu0 %v4869
    %v5953 = vpop.f32.mrf.mxu0
    %v5954 = vadd.f32 %v5934, %v5953
    %5955 = vdwg.mxu0
    %5956 = vmatpush.msra.mxu0 %v4606
    %5957 = vmatpush.msra.mxu0 %v4590
    %5958 = vmatpush.msra.mxu0 %v4574
    %5959 = vmatpush.msra.mxu0 %v4558
    %5960 = vmatpush.msra.mxu0 %v4542
    %5961 = vmatpush.msra.mxu0 %v4526
    %5962 = vmatpush.msra.mxu0 %v4510
    %5963 = vmatpush.msra.mxu0 %v4494
    %5964 = vmatpush.msra.mxu0 %v4478
    %5965 = vmatpush.msra.mxu0 %v4462
    %5966 = vmatpush.msra.mxu0 %v4446
    %5967 = vmatpush.msra.mxu0 %v4430
    %5968 = vmatpush.msra.mxu0 %v4414
    %5969 = vmatpush.msra.mxu0 %v4398
    %5970 = vmatpush.msra.mxu0 %v4382
    %5971 = vmatpush.msra.mxu0 %v4366
    %5972 = vmatmul.f32.gmra.mxu0 %v4870
    %v5973 = vpop.f32.mrf.mxu0
    %v5974 = vadd.f32 %v5954, %v5973
    %5975 = vdwg.mxu0
    %5976 = vmatpush.msra.mxu0 %v4862
    %5977 = vmatpush.msra.mxu0 %v4846
    %5978 = vmatpush.msra.mxu0 %v4830
    %5979 = vmatpush.msra.mxu0 %v4814
    %5980 = vmatpush.msra.mxu0 %v4798
    %5981 = vmatpush.msra.mxu0 %v4782
    %5982 = vmatpush.msra.mxu0 %v4766
    %5983 = vmatpush.msra.mxu0 %v4750
    %5984 = vmatpush.msra.mxu0 %v4734
    %5985 = vmatpush.msra.mxu0 %v4718
    %5986 = vmatpush.msra.mxu0 %v4702
    %5987 = vmatpush.msra.mxu0 %v4686
    %5988 = vmatpush.msra.mxu0 %v4670
    %5989 = vmatpush.msra.mxu0 %v4654
    %5990 = vmatpush.msra.mxu0 %v4638
    %5991 = vmatpush.msra.mxu0 %v4622
    %5992 = vmatmul.f32.gmra.mxu0 %v4871
    %v5993 = vpop.f32.mrf.mxu0
    %v5994 = vadd.f32 %v5974, %v5993
    %5995 = vdwg.mxu0
    %5996 = vmatpush.msra.mxu0 %v4095
    %5997 = vmatpush.msra.mxu0 %v4079
    %5998 = vmatpush.msra.mxu0 %v4063
    %5999 = vmatpush.msra.mxu0 %v4047
    %6000 = vmatpush.msra.mxu0 %v4031
    %6001 = vmatpush.msra.mxu0 %v4015
    %6002 = vmatpush.msra.mxu0 %v3999
    %6003 = vmatpush.msra.mxu0 %v3983
    %6004 = vmatpush.msra.mxu0 %v3967
    %6005 = vmatpush.msra.mxu0 %v3951
    %6006 = vmatpush.msra.mxu0 %v3935
    %6007 = vmatpush.msra.mxu0 %v3919
    %6008 = vmatpush.msra.mxu0 %v3903
    %6009 = vmatpush.msra.mxu0 %v3887
    %6010 = vmatpush.msra.mxu0 %v3871
    %6011 = vmatpush.msra.mxu0 %v3855
    %6012 = vmatmul.f32.gmra.mxu0 %v4868
    %v6013 = vpop.f32.mrf.mxu0
    %v6014 = vadd.f32 0.0, %v6013
    %6015 = vdwg.mxu0
    %6016 = vmatpush.msra.mxu0 %v4351
    %6017 = vmatpush.msra.mxu0 %v4335
    %6018 = vmatpush.msra.mxu0 %v4319
    %6019 = vmatpush.msra.mxu0 %v4303
    %6020 = vmatpush.msra.mxu0 %v4287
    %6021 = vmatpush.msra.mxu0 %v4271
    %6022 = vmatpush.msra.mxu0 %v4255
    %6023 = vmatpush.msra.mxu0 %v4239
    %6024 = vmatpush.msra.mxu0 %v4223
    %6025 = vmatpush.msra.mxu0 %v4207
    %6026 = vmatpush.msra.mxu0 %v4191
    %6027 = vmatpush.msra.mxu0 %v4175
    %6028 = vmatpush.msra.mxu0 %v4159
    %6029 = vmatpush.msra.mxu0 %v4143
    %6030 = vmatpush.msra.mxu0 %v4127
    %6031 = vmatpush.msra.mxu0 %v4111
    %6032 = vmatmul.f32.gmra.mxu0 %v4869
    %v6033 = vpop.f32.mrf.mxu0
    %v6034 = vadd.f32 %v6014, %v6033
    %6035 = vdwg.mxu0
    %6036 = vmatpush.msra.mxu0 %v4607
    %6037 = vmatpush.msra.mxu0 %v4591
    %6038 = vmatpush.msra.mxu0 %v4575
    %6039 = vmatpush.msra.mxu0 %v4559
    %6040 = vmatpush.msra.mxu0 %v4543
    %6041 = vmatpush.msra.mxu0 %v4527
    %6042 = vmatpush.msra.mxu0 %v4511
    %6043 = vmatpush.msra.mxu0 %v4495
    %6044 = vmatpush.msra.mxu0 %v4479
    %6045 = vmatpush.msra.mxu0 %v4463
    %6046 = vmatpush.msra.mxu0 %v4447
    %6047 = vmatpush.msra.mxu0 %v4431
    %6048 = vmatpush.msra.mxu0 %v4415
    %6049 = vmatpush.msra.mxu0 %v4399
    %6050 = vmatpush.msra.mxu0 %v4383
    %6051 = vmatpush.msra.mxu0 %v4367
    %6052 = vmatmul.f32.gmra.mxu0 %v4870
    %v6053 = vpop.f32.mrf.mxu0
    %v6054 = vadd.f32 %v6034, %v6053
    %6055 = vdwg.mxu0
    %6056 = vmatpush.msra.mxu0 %v4863
    %6057 = vmatpush.msra.mxu0 %v4847
    %6058 = vmatpush.msra.mxu0 %v4831
    %6059 = vmatpush.msra.mxu0 %v4815
    %6060 = vmatpush.msra.mxu0 %v4799
    %6061 = vmatpush.msra.mxu0 %v4783
    %6062 = vmatpush.msra.mxu0 %v4767
    %6063 = vmatpush.msra.mxu0 %v4751
    %6064 = vmatpush.msra.mxu0 %v4735
    %6065 = vmatpush.msra.mxu0 %v4719
    %6066 = vmatpush.msra.mxu0 %v4703
    %6067 = vmatpush.msra.mxu0 %v4687
    %6068 = vmatpush.msra.mxu0 %v4671
    %6069 = vmatpush.msra.mxu0 %v4655
    %6070 = vmatpush.msra.mxu0 %v4639
    %6071 = vmatpush.msra.mxu0 %v4623
    %6072 = vmatmul.f32.gmra.mxu0 %v4871
    %v6073 = vpop.f32.mrf.mxu0
    %v6074 = vadd.f32 %v6054, %v6073
    %6075 = vdwg.mxu0
    %6076 = vmatpush.msra.mxu0 %v4096
    %6077 = vmatpush.msra.mxu0 %v4080
    %6078 = vmatpush.msra.mxu0 %v4064
    %6079 = vmatpush.msra.mxu0 %v4048
    %6080 = vmatpush.msra.mxu0 %v4032
    %6081 = vmatpush.msra.mxu0 %v4016
    %6082 = vmatpush.msra.mxu0 %v4000
    %6083 = vmatpush.msra.mxu0 %v3984
    %6084 = vmatpush.msra.mxu0 %v3968
    %6085 = vmatpush.msra.mxu0 %v3952
    %6086 = vmatpush.msra.mxu0 %v3936
    %6087 = vmatpush.msra.mxu0 %v3920
    %6088 = vmatpush.msra.mxu0 %v3904
    %6089 = vmatpush.msra.mxu0 %v3888
    %6090 = vmatpush.msra.mxu0 %v3872
    %6091 = vmatpush.msra.mxu0 %v3856
    %6092 = vmatmul.f32.gmra.mxu0 %v4868
    %v6093 = vpop.f32.mrf.mxu0
    %v6094 = vadd.f32 0.0, %v6093
    %6095 = vdwg.mxu0
    %6096 = vmatpush.msra.mxu0 %v4352
    %6097 = vmatpush.msra.mxu0 %v4336
    %6098 = vmatpush.msra.mxu0 %v4320
    %6099 = vmatpush.msra.mxu0 %v4304
    %6100 = vmatpush.msra.mxu0 %v4288
    %6101 = vmatpush.msra.mxu0 %v4272
    %6102 = vmatpush.msra.mxu0 %v4256
    %6103 = vmatpush.msra.mxu0 %v4240
    %6104 = vmatpush.msra.mxu0 %v4224
    %6105 = vmatpush.msra.mxu0 %v4208
    %6106 = vmatpush.msra.mxu0 %v4192
    %6107 = vmatpush.msra.mxu0 %v4176
    %6108 = vmatpush.msra.mxu0 %v4160
    %6109 = vmatpush.msra.mxu0 %v4144
    %6110 = vmatpush.msra.mxu0 %v4128
    %6111 = vmatpush.msra.mxu0 %v4112
    %6112 = vmatmul.f32.gmra.mxu0 %v4869
    %v6113 = vpop.f32.mrf.mxu0
    %v6114 = vadd.f32 %v6094, %v6113
    %6115 = vdwg.mxu0
    %6116 = vmatpush.msra.mxu0 %v4608
    %6117 = vmatpush.msra.mxu0 %v4592
    %6118 = vmatpush.msra.mxu0 %v4576
    %6119 = vmatpush.msra.mxu0 %v4560
    %6120 = vmatpush.msra.mxu0 %v4544
    %6121 = vmatpush.msra.mxu0 %v4528
    %6122 = vmatpush.msra.mxu0 %v4512
    %6123 = vmatpush.msra.mxu0 %v4496
    %6124 = vmatpush.msra.mxu0 %v4480
    %6125 = vmatpush.msra.mxu0 %v4464
    %6126 = vmatpush.msra.mxu0 %v4448
    %6127 = vmatpush.msra.mxu0 %v4432
    %6128 = vmatpush.msra.mxu0 %v4416
    %6129 = vmatpush.msra.mxu0 %v4400
    %6130 = vmatpush.msra.mxu0 %v4384
    %6131 = vmatpush.msra.mxu0 %v4368
    %6132 = vmatmul.f32.gmra.mxu0 %v4870
    %v6133 = vpop.f32.mrf.mxu0
    %v6134 = vadd.f32 %v6114, %v6133
    %6135 = vdwg.mxu0
    %6136 = vmatpush.msra.mxu0 %v4864
    %6137 = vmatpush.msra.mxu0 %v4848
    %6138 = vmatpush.msra.mxu0 %v4832
    %6139 = vmatpush.msra.mxu0 %v4816
    %6140 = vmatpush.msra.mxu0 %v4800
    %6141 = vmatpush.msra.mxu0 %v4784
    %6142 = vmatpush.msra.mxu0 %v4768
    %6143 = vmatpush.msra.mxu0 %v4752
    %6144 = vmatpush.msra.mxu0 %v4736
    %6145 = vmatpush.msra.mxu0 %v4720
    %6146 = vmatpush.msra.mxu0 %v4704
    %6147 = vmatpush.msra.mxu0 %v4688
    %6148 = vmatpush.msra.mxu0 %v4672
    %6149 = vmatpush.msra.mxu0 %v4656
    %6150 = vmatpush.msra.mxu0 %v4640
    %6151 = vmatpush.msra.mxu0 %v4624
    %6152 = vmatmul.f32.gmra.mxu0 %v4871
    %v6153 = vpop.f32.mrf.mxu0
    %v6154 = vadd.f32 %v6134, %v6153
    %6155 = vdwg.mxu0
    %v6172 = vrot.slane %v5034, 6
    %v6173 = vrot.slane %v5114, 4
    %v6174 = vrot.slane %v5194, 2
    %v6175 = vrot.slane %v5354, 6
    %v6176 = vrot.slane %v5434, 4
    %v6177 = vrot.slane %v5514, 2
    %v6178 = vrot.slane %v5674, 6
    %v6179 = vrot.slane %v5754, 4
    %v6180 = vrot.slane %v5834, 2
    %v6181 = vrot.slane %v5994, 6
    %v6182 = vrot.slane %v6074, 4
    %v6183 = vrot.slane %v6154, 2
    %vm6184 = vcmask 1041408
    %v6185 = vsel %vm6184, %v4954, %v6172
    %vm6186 = vcmask 1045508
    %v6187 = vsel %vm6186, %v6173, %v6174
    %vm6188 = vcmask 1043456
    %v6189 = vsel %vm6188, %v6185, %v6187
    %v6190 = vsel %vm6184, %v5274, %v6175
    %v6191 = vsel %vm6186, %v6176, %v6177
    %v6192 = vsel %vm6188, %v6190, %v6191
    %v6193 = vsel %vm6184, %v5594, %v6178
    %v6194 = vsel %vm6186, %v6179, %v6180
    %v6195 = vsel %vm6188, %v6193, %v6194
    %v6196 = vsel %vm6184, %v5914, %v6181
    %v6197 = vsel %vm6186, %v6182, %v6183
    %v6198 = vsel %vm6188, %v6196, %v6197
    %6203 = vst [vmem:[#allocation10] sm:$0xff] %v6189
    %6204 = vst [vmem:[#allocation10 + $0x8] sm:$0xff] %v6192
    %6205 = vst [vmem:[#allocation10 + $0x10] sm:$0xff] %v6195
    %6206 = vst [vmem:[#allocation10 + $0x18] sm:$0xff] %v6198
    // Predicated region
    $region34: #{tpu_custom_call.1} parent=1 // pred_check
      _
    $region35: #{tpu_custom_call.1} parent=1 // pred_check_branch
      %6208 = sbr.rel (0) target = $region37
    $region36: #{tpu_custom_call.1} parent=1 // pred_region
      %6210 = vsyncadd [#allocation4], 0
      %s6212 = sshll.u32 [#allocation10], 4
      %s6213 = int_to_ptr.vmem [resolvable:$true] %s6212
      %s6214 = sshll.u32 %s4, 4
      %s6215 = int_to_ptr.hbm [resolvable:$true] %s6214
      %6217 = dma.vmem_to_hbm [thread:$0]  %s6213, 512, %s6215, [#allocation4]
    $region37: #{tpu_custom_call.1} parent=1 // pred_fallthru
      _
    // Predicated region
    $region38: #{tpu_custom_call.1} parent=1 // pred_check
      _
    $region39: #{tpu_custom_call.1} parent=1 // pred_check_branch
      %6219 = sbr.rel (0) target = $region41
    $region40: #{tpu_custom_call.1} parent=1 // pred_region
      %6221 = dma.done [#allocation4], 512
    $region41: #{tpu_custom_call.1} parent=1 // pred_fallthru
      _
    %6222 = vsyncpa [#allocation3], 1
    %6223 = vsyncpa [#allocation6], 1
    %6224 = vsyncpa [#allocation9], 1
    %6225 = vsyncpa [#allocation4], 1

</llo_original>
